<compile_context>
chip_gen: v7x
topology: tpu7x:2x2x1
jax: 0.10.0
libtpu: 0.0.40
codegen_flags: <defaults>
</compile_context>

<pallas_src>
import numpy as np

import jax
import jax.numpy as jnp
from jax.experimental import pallas as pl
from jax.experimental.pallas import tpu as pltpu


# ----------------------------------------------------------------------------
# Fused forward kernel: one grid step == one batch tile, everything in VMEM
# ----------------------------------------------------------------------------
def _net_kernel(x_ref, m1_ref, b1_ref, a1_ref, c1_ref, m2_ref, b2_ref, a2_ref, c2_ref,
                w3_ref, b3_ref, w4_ref, b4_ref, w5_ref, b5_ref, out_ref):
    mm = lambda a, b: jnp.dot(a, b, preferred_element_type=jnp.float32)
    bt = x_ref.shape[0]

    # Hoist grid-invariant weight loads out of the per-image loop.
    m1 = [m1_ref[k] for k in range(3)]
    a1 = [a1_ref[d] for d in range(2)]
    c1 = [c1_ref[d] for d in range(2)]
    m2 = [m2_ref[k] for k in range(3)]
    a2 = [a2_ref[d] for d in range(2)]
    c2 = [c2_ref[d] for d in range(2)]
    w3 = [w3_ref[h] for h in range(6)]
    b1 = b1_ref[...]
    b2 = b2_ref[...]

    # Per-image conv/pool stack; fc1 partial rows staged directly into out_ref (VMEM).
    for i in range(bt):
        x = x_ref[i]                                           # (32, 32), Cin == 1

        # conv1 (3x3 valid) + bias + ReLU  ->  (30, 6*30), lanes = co*30 + ow
        y1 = mm(x[0:30, :], m1[0]) + mm(x[1:31, :], m1[1]) + mm(x[2:32, :], m1[2])
        y1 = jnp.maximum(y1 + b1, 0.0)

        # 2x2 max-pool  ->  (15, 6*15), lanes = ci*15 + w
        r1 = jnp.maximum(mm(a1[0], y1), mm(a1[1], y1))
        p1 = jnp.maximum(mm(r1, c1[0]), mm(r1, c1[1]))

        # conv2 (3x3 valid, 6->16) + bias + ReLU  ->  (13, 16*13), lanes = co*13 + ow
        y2 = mm(p1[0:13, :], m2[0]) + mm(p1[1:14, :], m2[1]) + mm(p1[2:15, :], m2[2])
        y2 = jnp.maximum(y2 + b2, 0.0)

        # 2x2 max-pool (floor semantics: 13 -> 6)  ->  (6, 16*6), lanes = co*6 + w
        r2 = jnp.maximum(mm(a2[0], y2), mm(a2[1], y2))
        q = jnp.maximum(mm(r2, c2[0]), mm(r2, c2[1]))

        # fc1 partial (bias/ReLU applied after stacking the tile), lanes padded to 128
        fi = mm(q[0:1, :], w3[0])
        for h in range(1, 6):
            fi = fi + mm(q[h:h + 1, :], w3[h])
        out_ref[pl.ds(i, 1), :] = fi.astype(out_ref.dtype)    # stage row i

    # Batched tail: fc1 bias+ReLU, fc2+ReLU, fc3 — all 128-lane matmuls, full-vreg store.
    f = jnp.maximum(out_ref[...] + b3_ref[...], 0.0)          # (bt, 128)
    f = jnp.maximum(mm(f, w4_ref[...]) + b4_ref[...], 0.0)
    f = mm(f, w5_ref[...]) + b5_ref[...]
    out_ref[...] = f.astype(out_ref.dtype)


def _const_spec(a):
    """Full-array, grid-invariant block (weight stays resident in VMEM)."""
    nd = a.ndim
    return pl.BlockSpec(a.shape, lambda b, _nd=nd: (0,) * _nd)


def net_forward(kparams, x):
    """Fused forward pass.  x: (B, 1, 32, 32) NCHW float32 -> (B, 10)."""
    B = x.shape[0]
    bt = B if B <= 8 else 8                      # batch tile per grid step
    n_tiles = -(-B // bt)
    b_pad = n_tiles * bt

    x2 = x.reshape(B, 32, 32).astype(jnp.float32)
    if b_pad != B:
        x2 = jnp.pad(x2, ((0, b_pad - B), (0, 0), (0, 0)))

    kp = kparams
    operands = (x2, kp["m1"], kp["b1e"], kp["a1"], kp["c1"], kp["m2"], kp["b2e"],
                kp["a2"], kp["c2"], kp["w3"], kp["b3"], kp["w4"], kp["b4"],
                kp["w5"], kp["b5"])

    in_specs = [pl.BlockSpec((bt, 32, 32), lambda b: (b, 0, 0))]
    in_specs += [_const_spec(a) for a in operands[1:]]

    out = pl.pallas_call(
        _net_kernel,
        out_shape=jax.ShapeDtypeStruct((b_pad, 128), jnp.float32),
        grid=(n_tiles,),
        in_specs=in_specs,
        out_specs=pl.BlockSpec((bt, 128), lambda b: (b, 0)),
        compiler_params=pltpu.CompilerParams(dimension_semantics=("parallel",)),
    )(*operands)
    return out[:B, :10]


# ----------------------------------------------------------------------------
# One-time host-side repack of PyTorch-layout params into kernel operands
# ----------------------------------------------------------------------------
def prepare_kernel_params(params):
    w1 = np.asarray(params["conv1_w"], np.float32)           # (6, 1, 3, 3)
    b1 = np.asarray(params["conv1_b"], np.float32)
    w2 = np.asarray(params["conv2_w"], np.float32)           # (16, 6, 3, 3)
    b2 = np.asarray(params["conv2_b"], np.float32)

    # conv1 as 3 banded matrices: M1[kh][iw, co*30+ow] = w1[co, 0, kh, iw-ow]
    m1 = np.zeros((3, 32, 6 * 30), np.float32)
    for kh in range(3):
        for co in range(6):
            for kw in range(3):
                for ow in range(30):
                    m1[kh, ow + kw, co * 30 + ow] = w1[co, 0, kh, kw]
    b1e = np.repeat(b1, 30).reshape(1, 180)

    # conv2 as 3 banded matrices: M2[kh][ci*15+iw, co*13+ow] = w2[co, ci, kh, iw-ow]
    m2 = np.zeros((3, 6 * 15, 16 * 13), np.float32)
    for kh in range(3):
        for co in range(16):
            for ci in range(6):
                for kw in range(3):
                    for ow in range(13):
                        m2[kh, ci * 15 + ow + kw, co * 13 + ow] = w2[co, ci, kh, kw]
    b2e = np.repeat(b2, 13).reshape(1, 208)

    # 2x2 max-pool selection matrices (row select + block-diagonal column select).
    a1 = np.zeros((2, 15, 30), np.float32)
    c1 = np.zeros((2, 180, 90), np.float32)
    a2 = np.zeros((2, 6, 13), np.float32)
    c2 = np.zeros((2, 208, 96), np.float32)
    for d in range(2):
        for i in range(15):
            a1[d, i, 2 * i + d] = 1.0
        for c in range(6):
            for j in range(15):
                c1[d, c * 30 + 2 * j + d, c * 15 + j] = 1.0
        for i in range(6):
            a2[d, i, 2 * i + d] = 1.0
        for c in range(16):
            for j in range(6):
                c2[d, c * 13 + 2 * j + d, c * 6 + j] = 1.0

    fc1_w = np.asarray(params["fc1_w"], np.float32)           # (576, 120)
    fc1_b = np.asarray(params["fc1_b"], np.float32)
    fc2_w = np.asarray(params["fc2_w"], np.float32)           # (120, 84)
    fc2_b = np.asarray(params["fc2_b"], np.float32)
    fc3_w = np.asarray(params["fc3_w"], np.float32)           # (84, 10)
    fc3_b = np.asarray(params["fc3_b"], np.float32)

    # fc1 rows permuted from PyTorch NCHW-flatten (c, h, w) to kernel layout (h, c*6+w);
    # all FC layers zero-padded to 128 lanes (exact: padded lanes stay 0 through relu).
    w3 = fc1_w.reshape(16, 6, 6, 120).transpose(1, 0, 2, 3).reshape(6, 96, 120)
    w3p = np.zeros((6, 96, 128), np.float32); w3p[:, :, :120] = w3
    b3p = np.zeros((1, 128), np.float32);     b3p[0, :120] = fc1_b
    w4p = np.zeros((128, 128), np.float32);   w4p[:120, :84] = fc2_w
    b4p = np.zeros((1, 128), np.float32);     b4p[0, :84] = fc2_b
    w5p = np.zeros((128, 128), np.float32);   w5p[:84, :10] = fc3_w
    b5p = np.zeros((1, 128), np.float32);     b5p[0, :10] = fc3_b

    j = lambda a: jnp.asarray(a, dtype=jnp.float32)
    return {"m1": j(m1), "b1e": j(b1e), "a1": j(a1), "c1": j(c1),
            "m2": j(m2), "b2e": j(b2e), "a2": j(a2), "c2": j(c2),
            "w3": j(w3p), "b3": j(b3p), "w4": j(w4p), "b4": j(b4p),
            "w5": j(w5p), "b5": j(b5p)}


# ----------------------------------------------------------------------------
# Synthetic PyTorch-layout parameters + pure-JAX reference for verification
# ----------------------------------------------------------------------------
def init_params(key):
    ks = jax.random.split(key, 10)

    def init(k, fan_in, shape):
        bound = 1.0 / jnp.sqrt(jnp.float32(fan_in))
        return jax.random.uniform(k, shape, jnp.float32, -bound, bound)

    return {
        "conv1_w": init(ks[0], 1 * 3 * 3, (6, 1, 3, 3)),
        "conv1_b": init(ks[1], 1 * 3 * 3, (6,)),
        "conv2_w": init(ks[2], 6 * 3 * 3, (16, 6, 3, 3)),
        "conv2_b": init(ks[3], 6 * 3 * 3, (16,)),
        "fc1_w": init(ks[4], 16 * 6 * 6, (16 * 6 * 6, 120)),   # (in, out)
        "fc1_b": init(ks[5], 16 * 6 * 6, (120,)),
        "fc2_w": init(ks[6], 120, (120, 84)),
        "fc2_b": init(ks[7], 120, (84,)),
        "fc3_w": init(ks[8], 84, (84, 10)),
        "fc3_b": init(ks[9], 84, (10,)),
    }


def _reference_forward(params, x):
    def conv(h, w, b):
        out = jax.lax.conv_general_dilated(
            h, w, window_strides=(1, 1), padding="VALID",
            dimension_numbers=("NCHW", "OIHW", "NCHW"))
        return out + b.reshape(1, -1, 1, 1)

    def pool(h):
        return jax.lax.reduce_window(h, -jnp.inf, jax.lax.max,
                                     (1, 1, 2, 2), (1, 1, 2, 2), "VALID")

    h = pool(jax.nn.relu(conv(x, params["conv1_w"], params["conv1_b"])))
    h = pool(jax.nn.relu(conv(h, params["conv2_w"], params["conv2_b"])))
    h = h.reshape(h.shape[0], -1)                            # NCHW flatten
    h = jax.nn.relu(h @ params["fc1_w"] + params["fc1_b"])
    h = jax.nn.relu(h @ params["fc2_w"] + params["fc2_b"])
    return h @ params["fc3_w"] + params["fc3_b"]


if __name__ == "__main__":
    key = jax.random.PRNGKey(0)
    pkey, xkey = jax.random.split(key)
    params = init_params(pkey)
    kparams = prepare_kernel_params(params)                  # one-time host-side repack

    # Input must be 32x32 so the flattened features are 16*6*6 = 576.
    x = jax.random.normal(xkey, (2, 1, 32, 32), dtype=jnp.float32)

    out = jax.jit(net_forward)(kparams, x)
    out = jax.block_until_ready(out)
    assert out.shape == (2, 10), out.shape
    assert out.dtype == jnp.float32

    ref = jax.block_until_ready(jax.jit(_reference_forward)(params, x))
    max_err = float(jnp.max(jnp.abs(out - ref)))
    assert max_err < 2e-2, f"kernel/reference mismatch: max abs err {max_err}"

    print("KERNEL_OK")
</pallas_src>

<mosaic_0001>
module attributes {stable_mosaic.version = 11 : i64} {
  func.func @_net_kernel(%arg0: i32, %arg1: memref<2x32x32xf32, #tpu.memory_space<vmem>>, %arg2: memref<3x32x180xf32, #tpu.memory_space<vmem>>, %arg3: memref<1x180xf32, #tpu.memory_space<vmem>>, %arg4: memref<2x15x30xf32, #tpu.memory_space<vmem>>, %arg5: memref<2x180x90xf32, #tpu.memory_space<vmem>>, %arg6: memref<3x90x208xf32, #tpu.memory_space<vmem>>, %arg7: memref<1x208xf32, #tpu.memory_space<vmem>>, %arg8: memref<2x6x13xf32, #tpu.memory_space<vmem>>, %arg9: memref<2x208x96xf32, #tpu.memory_space<vmem>>, %arg10: memref<6x96x128xf32, #tpu.memory_space<vmem>>, %arg11: memref<1x128xf32, #tpu.memory_space<vmem>>, %arg12: memref<128x128xf32, #tpu.memory_space<vmem>>, %arg13: memref<1x128xf32, #tpu.memory_space<vmem>>, %arg14: memref<128x128xf32, #tpu.memory_space<vmem>>, %arg15: memref<1x128xf32, #tpu.memory_space<vmem>>, %arg16: memref<2x128xf32, #tpu.memory_space<vmem>>) attributes {dimension_semantics = [#tpu.dimension_semantics<parallel>], iteration_bounds = array<i64: 1>, scalar_prefetch = 0 : i64, scratch_operands = 0 : i64, tpu.core_type = #tpu.core_type<tc>, window_params = [{transform_indices = @transform_0, window_bounds = array<i64: 2, 32, 32>}, {pipeline_mode = #tpu.pipeline_mode<synchronous>, transform_indices = @transform_1, window_bounds = array<i64: 3, 32, 180>}, {pipeline_mode = #tpu.pipeline_mode<synchronous>, transform_indices = @transform_2, window_bounds = array<i64: 1, 180>}, {pipeline_mode = #tpu.pipeline_mode<synchronous>, transform_indices = @transform_3, window_bounds = array<i64: 2, 15, 30>}, {pipeline_mode = #tpu.pipeline_mode<synchronous>, transform_indices = @transform_4, window_bounds = array<i64: 2, 180, 90>}, {pipeline_mode = #tpu.pipeline_mode<synchronous>, transform_indices = @transform_5, window_bounds = array<i64: 3, 90, 208>}, {pipeline_mode = #tpu.pipeline_mode<synchronous>, transform_indices = @transform_6, window_bounds = array<i64: 1, 208>}, {pipeline_mode = #tpu.pipeline_mode<synchronous>, transform_indices = @transform_7, window_bounds = array<i64: 2, 6, 13>}, {pipeline_mode = #tpu.pipeline_mode<synchronous>, transform_indices = @transform_8, window_bounds = array<i64: 2, 208, 96>}, {pipeline_mode = #tpu.pipeline_mode<synchronous>, transform_indices = @transform_9, window_bounds = array<i64: 6, 96, 128>}, {pipeline_mode = #tpu.pipeline_mode<synchronous>, transform_indices = @transform_10, window_bounds = array<i64: 1, 128>}, {pipeline_mode = #tpu.pipeline_mode<synchronous>, transform_indices = @transform_11, window_bounds = array<i64: 128, 128>}, {pipeline_mode = #tpu.pipeline_mode<synchronous>, transform_indices = @transform_12, window_bounds = array<i64: 1, 128>}, {pipeline_mode = #tpu.pipeline_mode<synchronous>, transform_indices = @transform_13, window_bounds = array<i64: 128, 128>}, {pipeline_mode = #tpu.pipeline_mode<synchronous>, transform_indices = @transform_14, window_bounds = array<i64: 1, 128>}, {transform_indices = @transform_15, window_bounds = array<i64: 2, 128>}]} {
    %c0 = arith.constant 0 : index
    %c0_0 = arith.constant 0 : index
    %c0_1 = arith.constant 0 : index
    %0 = vector.load %arg2[%c0, %c0_0, %c0_1] : memref<3x32x180xf32, #tpu.memory_space<vmem>>, vector<1x32x180xf32>
    %1 = vector.shape_cast %0 : vector<1x32x180xf32> to vector<32x180xf32>
    %c1 = arith.constant 1 : index
    %c0_2 = arith.constant 0 : index
    %c0_3 = arith.constant 0 : index
    %2 = vector.load %arg2[%c1, %c0_2, %c0_3] : memref<3x32x180xf32, #tpu.memory_space<vmem>>, vector<1x32x180xf32>
    %3 = vector.shape_cast %2 : vector<1x32x180xf32> to vector<32x180xf32>
    %c2 = arith.constant 2 : index
    %c0_4 = arith.constant 0 : index
    %c0_5 = arith.constant 0 : index
    %4 = vector.load %arg2[%c2, %c0_4, %c0_5] : memref<3x32x180xf32, #tpu.memory_space<vmem>>, vector<1x32x180xf32>
    %5 = vector.shape_cast %4 : vector<1x32x180xf32> to vector<32x180xf32>
    %c0_6 = arith.constant 0 : index
    %c0_7 = arith.constant 0 : index
    %c0_8 = arith.constant 0 : index
    %6 = vector.load %arg4[%c0_6, %c0_7, %c0_8] : memref<2x15x30xf32, #tpu.memory_space<vmem>>, vector<1x15x30xf32>
    %7 = vector.shape_cast %6 : vector<1x15x30xf32> to vector<15x30xf32>
    %c1_9 = arith.constant 1 : index
    %c0_10 = arith.constant 0 : index
    %c0_11 = arith.constant 0 : index
    %8 = vector.load %arg4[%c1_9, %c0_10, %c0_11] : memref<2x15x30xf32, #tpu.memory_space<vmem>>, vector<1x15x30xf32>
    %9 = vector.shape_cast %8 : vector<1x15x30xf32> to vector<15x30xf32>
    %c0_12 = arith.constant 0 : index
    %c0_13 = arith.constant 0 : index
    %c0_14 = arith.constant 0 : index
    %10 = vector.load %arg5[%c0_12, %c0_13, %c0_14] : memref<2x180x90xf32, #tpu.memory_space<vmem>>, vector<1x180x90xf32>
    %11 = vector.shape_cast %10 : vector<1x180x90xf32> to vector<180x90xf32>
    %c1_15 = arith.constant 1 : index
    %c0_16 = arith.constant 0 : index
    %c0_17 = arith.constant 0 : index
    %12 = vector.load %arg5[%c1_15, %c0_16, %c0_17] : memref<2x180x90xf32, #tpu.memory_space<vmem>>, vector<1x180x90xf32>
    %13 = vector.shape_cast %12 : vector<1x180x90xf32> to vector<180x90xf32>
    %c0_18 = arith.constant 0 : index
    %c0_19 = arith.constant 0 : index
    %c0_20 = arith.constant 0 : index
    %14 = vector.load %arg6[%c0_18, %c0_19, %c0_20] : memref<3x90x208xf32, #tpu.memory_space<vmem>>, vector<1x90x208xf32>
    %15 = vector.shape_cast %14 : vector<1x90x208xf32> to vector<90x208xf32>
    %c1_21 = arith.constant 1 : index
    %c0_22 = arith.constant 0 : index
    %c0_23 = arith.constant 0 : index
    %16 = vector.load %arg6[%c1_21, %c0_22, %c0_23] : memref<3x90x208xf32, #tpu.memory_space<vmem>>, vector<1x90x208xf32>
    %17 = vector.shape_cast %16 : vector<1x90x208xf32> to vector<90x208xf32>
    %c2_24 = arith.constant 2 : index
    %c0_25 = arith.constant 0 : index
    %c0_26 = arith.constant 0 : index
    %18 = vector.load %arg6[%c2_24, %c0_25, %c0_26] : memref<3x90x208xf32, #tpu.memory_space<vmem>>, vector<1x90x208xf32>
    %19 = vector.shape_cast %18 : vector<1x90x208xf32> to vector<90x208xf32>
    %c0_27 = arith.constant 0 : index
    %c0_28 = arith.constant 0 : index
    %c0_29 = arith.constant 0 : index
    %20 = vector.load %arg8[%c0_27, %c0_28, %c0_29] : memref<2x6x13xf32, #tpu.memory_space<vmem>>, vector<1x6x13xf32>
    %21 = vector.shape_cast %20 : vector<1x6x13xf32> to vector<6x13xf32>
    %c1_30 = arith.constant 1 : index
    %c0_31 = arith.constant 0 : index
    %c0_32 = arith.constant 0 : index
    %22 = vector.load %arg8[%c1_30, %c0_31, %c0_32] : memref<2x6x13xf32, #tpu.memory_space<vmem>>, vector<1x6x13xf32>
    %23 = vector.shape_cast %22 : vector<1x6x13xf32> to vector<6x13xf32>
    %c0_33 = arith.constant 0 : index
    %c0_34 = arith.constant 0 : index
    %c0_35 = arith.constant 0 : index
    %24 = vector.load %arg9[%c0_33, %c0_34, %c0_35] : memref<2x208x96xf32, #tpu.memory_space<vmem>>, vector<1x208x96xf32>
    %25 = vector.shape_cast %24 : vector<1x208x96xf32> to vector<208x96xf32>
    %c1_36 = arith.constant 1 : index
    %c0_37 = arith.constant 0 : index
    %c0_38 = arith.constant 0 : index
    %26 = vector.load %arg9[%c1_36, %c0_37, %c0_38] : memref<2x208x96xf32, #tpu.memory_space<vmem>>, vector<1x208x96xf32>
    %27 = vector.shape_cast %26 : vector<1x208x96xf32> to vector<208x96xf32>
    %c0_39 = arith.constant 0 : index
    %c0_40 = arith.constant 0 : index
    %c0_41 = arith.constant 0 : index
    %28 = vector.load %arg10[%c0_39, %c0_40, %c0_41] : memref<6x96x128xf32, #tpu.memory_space<vmem>>, vector<1x96x128xf32>
    %29 = vector.shape_cast %28 : vector<1x96x128xf32> to vector<96x128xf32>
    %c1_42 = arith.constant 1 : index
    %c0_43 = arith.constant 0 : index
    %c0_44 = arith.constant 0 : index
    %30 = vector.load %arg10[%c1_42, %c0_43, %c0_44] : memref<6x96x128xf32, #tpu.memory_space<vmem>>, vector<1x96x128xf32>
    %31 = vector.shape_cast %30 : vector<1x96x128xf32> to vector<96x128xf32>
    %c2_45 = arith.constant 2 : index
    %c0_46 = arith.constant 0 : index
    %c0_47 = arith.constant 0 : index
    %32 = vector.load %arg10[%c2_45, %c0_46, %c0_47] : memref<6x96x128xf32, #tpu.memory_space<vmem>>, vector<1x96x128xf32>
    %33 = vector.shape_cast %32 : vector<1x96x128xf32> to vector<96x128xf32>
    %c3 = arith.constant 3 : index
    %c0_48 = arith.constant 0 : index
    %c0_49 = arith.constant 0 : index
    %34 = vector.load %arg10[%c3, %c0_48, %c0_49] : memref<6x96x128xf32, #tpu.memory_space<vmem>>, vector<1x96x128xf32>
    %35 = vector.shape_cast %34 : vector<1x96x128xf32> to vector<96x128xf32>
    %c4 = arith.constant 4 : index
    %c0_50 = arith.constant 0 : index
    %c0_51 = arith.constant 0 : index
    %36 = vector.load %arg10[%c4, %c0_50, %c0_51] : memref<6x96x128xf32, #tpu.memory_space<vmem>>, vector<1x96x128xf32>
    %37 = vector.shape_cast %36 : vector<1x96x128xf32> to vector<96x128xf32>
    %c5 = arith.constant 5 : index
    %c0_52 = arith.constant 0 : index
    %c0_53 = arith.constant 0 : index
    %38 = vector.load %arg10[%c5, %c0_52, %c0_53] : memref<6x96x128xf32, #tpu.memory_space<vmem>>, vector<1x96x128xf32>
    %39 = vector.shape_cast %38 : vector<1x96x128xf32> to vector<96x128xf32>
    %c0_54 = arith.constant 0 : index
    %c0_55 = arith.constant 0 : index
    %40 = vector.load %arg3[%c0_54, %c0_55] : memref<1x180xf32, #tpu.memory_space<vmem>>, vector<1x180xf32>
    %c0_56 = arith.constant 0 : index
    %c0_57 = arith.constant 0 : index
    %41 = vector.load %arg7[%c0_56, %c0_57] : memref<1x208xf32, #tpu.memory_space<vmem>>, vector<1x208xf32>
    %c0_58 = arith.constant 0 : index
    %c0_59 = arith.constant 0 : index
    %c0_60 = arith.constant 0 : index
    %42 = vector.load %arg1[%c0_58, %c0_59, %c0_60] : memref<2x32x32xf32, #tpu.memory_space<vmem>>, vector<1x32x32xf32>
    %43 = vector.shape_cast %42 : vector<1x32x32xf32> to vector<32x32xf32>
    %44 = vector.extract_strided_slice %43 {offsets = [0, 0], sizes = [30, 32], strides = [1, 1]} : vector<32x32xf32> to vector<30x32xf32>
    %cst = arith.constant dense<0.000000e+00> : vector<30x180xf32>
    %45 = tpu.matmul %44, %1, %cst {dimension_numbers = #tpu.dot_dimension_numbers<[1], [0], [0], [1], [0, 0, 1, 1], [], []>} : vector<30x32xf32>, vector<32x180xf32>, vector<30x180xf32> -> vector<30x180xf32>
    %46 = vector.extract_strided_slice %43 {offsets = [1, 0], sizes = [30, 32], strides = [1, 1]} : vector<32x32xf32> to vector<30x32xf32>
    %cst_61 = arith.constant dense<0.000000e+00> : vector<30x180xf32>
    %47 = tpu.matmul %46, %3, %cst_61 {dimension_numbers = #tpu.dot_dimension_numbers<[1], [0], [0], [1], [0, 0, 1, 1], [], []>} : vector<30x32xf32>, vector<32x180xf32>, vector<30x180xf32> -> vector<30x180xf32>
    %48 = arith.addf %45, %47 : vector<30x180xf32>
    %49 = vector.extract_strided_slice %43 {offsets = [2, 0], sizes = [30, 32], strides = [1, 1]} : vector<32x32xf32> to vector<30x32xf32>
    %cst_62 = arith.constant dense<0.000000e+00> : vector<30x180xf32>
    %50 = tpu.matmul %49, %5, %cst_62 {dimension_numbers = #tpu.dot_dimension_numbers<[1], [0], [0], [1], [0, 0, 1, 1], [], []>} : vector<30x32xf32>, vector<32x180xf32>, vector<30x180xf32> -> vector<30x180xf32>
    %51 = arith.addf %48, %50 : vector<30x180xf32>
    %52 = vector.broadcast %40 : vector<1x180xf32> to vector<30x180xf32>
    %53 = arith.addf %51, %52 : vector<30x180xf32>
    %cst_63 = arith.constant 0.000000e+00 : f32
    %54 = vector.broadcast %cst_63 : f32 to vector<30x180xf32>
    %55 = arith.maximumf %53, %54 : vector<30x180xf32>
    %cst_64 = arith.constant dense<0.000000e+00> : vector<15x180xf32>
    %56 = tpu.matmul %7, %55, %cst_64 {dimension_numbers = #tpu.dot_dimension_numbers<[1], [0], [0], [1], [0, 0, 1, 1], [], []>} : vector<15x30xf32>, vector<30x180xf32>, vector<15x180xf32> -> vector<15x180xf32>
    %cst_65 = arith.constant dense<0.000000e+00> : vector<15x180xf32>
    %57 = tpu.matmul %9, %55, %cst_65 {dimension_numbers = #tpu.dot_dimension_numbers<[1], [0], [0], [1], [0, 0, 1, 1], [], []>} : vector<15x30xf32>, vector<30x180xf32>, vector<15x180xf32> -> vector<15x180xf32>
    %58 = arith.maximumf %56, %57 : vector<15x180xf32>
    %cst_66 = arith.constant dense<0.000000e+00> : vector<15x90xf32>
    %59 = tpu.matmul %58, %11, %cst_66 {dimension_numbers = #tpu.dot_dimension_numbers<[1], [0], [0], [1], [0, 0, 1, 1], [], []>} : vector<15x180xf32>, vector<180x90xf32>, vector<15x90xf32> -> vector<15x90xf32>
    %cst_67 = arith.constant dense<0.000000e+00> : vector<15x90xf32>
    %60 = tpu.matmul %58, %13, %cst_67 {dimension_numbers = #tpu.dot_dimension_numbers<[1], [0], [0], [1], [0, 0, 1, 1], [], []>} : vector<15x180xf32>, vector<180x90xf32>, vector<15x90xf32> -> vector<15x90xf32>
    %61 = arith.maximumf %59, %60 : vector<15x90xf32>
    %62 = vector.extract_strided_slice %61 {offsets = [0, 0], sizes = [13, 90], strides = [1, 1]} : vector<15x90xf32> to vector<13x90xf32>
    %cst_68 = arith.constant dense<0.000000e+00> : vector<13x208xf32>
    %63 = tpu.matmul %62, %15, %cst_68 {dimension_numbers = #tpu.dot_dimension_numbers<[1], [0], [0], [1], [0, 0, 1, 1], [], []>} : vector<13x90xf32>, vector<90x208xf32>, vector<13x208xf32> -> vector<13x208xf32>
    %64 = vector.extract_strided_slice %61 {offsets = [1, 0], sizes = [13, 90], strides = [1, 1]} : vector<15x90xf32> to vector<13x90xf32>
    %cst_69 = arith.constant dense<0.000000e+00> : vector<13x208xf32>
    %65 = tpu.matmul %64, %17, %cst_69 {dimension_numbers = #tpu.dot_dimension_numbers<[1], [0], [0], [1], [0, 0, 1, 1], [], []>} : vector<13x90xf32>, vector<90x208xf32>, vector<13x208xf32> -> vector<13x208xf32>
    %66 = arith.addf %63, %65 : vector<13x208xf32>
    %67 = vector.extract_strided_slice %61 {offsets = [2, 0], sizes = [13, 90], strides = [1, 1]} : vector<15x90xf32> to vector<13x90xf32>
    %cst_70 = arith.constant dense<0.000000e+00> : vector<13x208xf32>
    %68 = tpu.matmul %67, %19, %cst_70 {dimension_numbers = #tpu.dot_dimension_numbers<[1], [0], [0], [1], [0, 0, 1, 1], [], []>} : vector<13x90xf32>, vector<90x208xf32>, vector<13x208xf32> -> vector<13x208xf32>
    %69 = arith.addf %66, %68 : vector<13x208xf32>
    %70 = vector.broadcast %41 : vector<1x208xf32> to vector<13x208xf32>
    %71 = arith.addf %69, %70 : vector<13x208xf32>
    %cst_71 = arith.constant 0.000000e+00 : f32
    %72 = vector.broadcast %cst_71 : f32 to vector<13x208xf32>
    %73 = arith.maximumf %71, %72 : vector<13x208xf32>
    %cst_72 = arith.constant dense<0.000000e+00> : vector<6x208xf32>
    %74 = tpu.matmul %21, %73, %cst_72 {dimension_numbers = #tpu.dot_dimension_numbers<[1], [0], [0], [1], [0, 0, 1, 1], [], []>} : vector<6x13xf32>, vector<13x208xf32>, vector<6x208xf32> -> vector<6x208xf32>
    %cst_73 = arith.constant dense<0.000000e+00> : vector<6x208xf32>
    %75 = tpu.matmul %23, %73, %cst_73 {dimension_numbers = #tpu.dot_dimension_numbers<[1], [0], [0], [1], [0, 0, 1, 1], [], []>} : vector<6x13xf32>, vector<13x208xf32>, vector<6x208xf32> -> vector<6x208xf32>
    %76 = arith.maximumf %74, %75 : vector<6x208xf32>
    %cst_74 = arith.constant dense<0.000000e+00> : vector<6x96xf32>
    %77 = tpu.matmul %76, %25, %cst_74 {dimension_numbers = #tpu.dot_dimension_numbers<[1], [0], [0], [1], [0, 0, 1, 1], [], []>} : vector<6x208xf32>, vector<208x96xf32>, vector<6x96xf32> -> vector<6x96xf32>
    %cst_75 = arith.constant dense<0.000000e+00> : vector<6x96xf32>
    %78 = tpu.matmul %76, %27, %cst_75 {dimension_numbers = #tpu.dot_dimension_numbers<[1], [0], [0], [1], [0, 0, 1, 1], [], []>} : vector<6x208xf32>, vector<208x96xf32>, vector<6x96xf32> -> vector<6x96xf32>
    %79 = arith.maximumf %77, %78 : vector<6x96xf32>
    %80 = vector.extract_strided_slice %79 {offsets = [0, 0], sizes = [1, 96], strides = [1, 1]} : vector<6x96xf32> to vector<1x96xf32>
    %cst_76 = arith.constant dense<0.000000e+00> : vector<1x128xf32>
    %81 = tpu.matmul %80, %29, %cst_76 {dimension_numbers = #tpu.dot_dimension_numbers<[1], [0], [0], [1], [0, 0, 1, 1], [], []>} : vector<1x96xf32>, vector<96x128xf32>, vector<1x128xf32> -> vector<1x128xf32>
    %82 = vector.extract_strided_slice %79 {offsets = [1, 0], sizes = [1, 96], strides = [1, 1]} : vector<6x96xf32> to vector<1x96xf32>
    %cst_77 = arith.constant dense<0.000000e+00> : vector<1x128xf32>
    %83 = tpu.matmul %82, %31, %cst_77 {dimension_numbers = #tpu.dot_dimension_numbers<[1], [0], [0], [1], [0, 0, 1, 1], [], []>} : vector<1x96xf32>, vector<96x128xf32>, vector<1x128xf32> -> vector<1x128xf32>
    %84 = arith.addf %81, %83 : vector<1x128xf32>
    %85 = vector.extract_strided_slice %79 {offsets = [2, 0], sizes = [1, 96], strides = [1, 1]} : vector<6x96xf32> to vector<1x96xf32>
    %cst_78 = arith.constant dense<0.000000e+00> : vector<1x128xf32>
    %86 = tpu.matmul %85, %33, %cst_78 {dimension_numbers = #tpu.dot_dimension_numbers<[1], [0], [0], [1], [0, 0, 1, 1], [], []>} : vector<1x96xf32>, vector<96x128xf32>, vector<1x128xf32> -> vector<1x128xf32>
    %87 = arith.addf %84, %86 : vector<1x128xf32>
    %88 = vector.extract_strided_slice %79 {offsets = [3, 0], sizes = [1, 96], strides = [1, 1]} : vector<6x96xf32> to vector<1x96xf32>
    %cst_79 = arith.constant dense<0.000000e+00> : vector<1x128xf32>
    %89 = tpu.matmul %88, %35, %cst_79 {dimension_numbers = #tpu.dot_dimension_numbers<[1], [0], [0], [1], [0, 0, 1, 1], [], []>} : vector<1x96xf32>, vector<96x128xf32>, vector<1x128xf32> -> vector<1x128xf32>
    %90 = arith.addf %87, %89 : vector<1x128xf32>
    %91 = vector.extract_strided_slice %79 {offsets = [4, 0], sizes = [1, 96], strides = [1, 1]} : vector<6x96xf32> to vector<1x96xf32>
    %cst_80 = arith.constant dense<0.000000e+00> : vector<1x128xf32>
    %92 = tpu.matmul %91, %37, %cst_80 {dimension_numbers = #tpu.dot_dimension_numbers<[1], [0], [0], [1], [0, 0, 1, 1], [], []>} : vector<1x96xf32>, vector<96x128xf32>, vector<1x128xf32> -> vector<1x128xf32>
    %93 = arith.addf %90, %92 : vector<1x128xf32>
    %94 = vector.extract_strided_slice %79 {offsets = [5, 0], sizes = [1, 96], strides = [1, 1]} : vector<6x96xf32> to vector<1x96xf32>
    %cst_81 = arith.constant dense<0.000000e+00> : vector<1x128xf32>
    %95 = tpu.matmul %94, %39, %cst_81 {dimension_numbers = #tpu.dot_dimension_numbers<[1], [0], [0], [1], [0, 0, 1, 1], [], []>} : vector<1x96xf32>, vector<96x128xf32>, vector<1x128xf32> -> vector<1x128xf32>
    %96 = arith.addf %93, %95 : vector<1x128xf32>
    %c0_82 = arith.constant 0 : index
    %c0_83 = arith.constant 0 : index
    %97 = vector.load %arg16[%c0_82, %c0_83] : memref<2x128xf32, #tpu.memory_space<vmem>>, vector<1x128xf32>
    tpu.vector_store %arg16[%c0_82, %c0_83], %96 {strides = array<i32>} : memref<2x128xf32, #tpu.memory_space<vmem>>, vector<1x128xf32>,
    %c1_84 = arith.constant 1 : index
    %c0_85 = arith.constant 0 : index
    %c0_86 = arith.constant 0 : index
    %98 = vector.load %arg1[%c1_84, %c0_85, %c0_86] : memref<2x32x32xf32, #tpu.memory_space<vmem>>, vector<1x32x32xf32>
    %99 = vector.shape_cast %98 : vector<1x32x32xf32> to vector<32x32xf32>
    %100 = vector.extract_strided_slice %99 {offsets = [0, 0], sizes = [30, 32], strides = [1, 1]} : vector<32x32xf32> to vector<30x32xf32>
    %cst_87 = arith.constant dense<0.000000e+00> : vector<30x180xf32>
    %101 = tpu.matmul %100, %1, %cst_87 {dimension_numbers = #tpu.dot_dimension_numbers<[1], [0], [0], [1], [0, 0, 1, 1], [], []>} : vector<30x32xf32>, vector<32x180xf32>, vector<30x180xf32> -> vector<30x180xf32>
    %102 = vector.extract_strided_slice %99 {offsets = [1, 0], sizes = [30, 32], strides = [1, 1]} : vector<32x32xf32> to vector<30x32xf32>
    %cst_88 = arith.constant dense<0.000000e+00> : vector<30x180xf32>
    %103 = tpu.matmul %102, %3, %cst_88 {dimension_numbers = #tpu.dot_dimension_numbers<[1], [0], [0], [1], [0, 0, 1, 1], [], []>} : vector<30x32xf32>, vector<32x180xf32>, vector<30x180xf32> -> vector<30x180xf32>
    %104 = arith.addf %101, %103 : vector<30x180xf32>
    %105 = vector.extract_strided_slice %99 {offsets = [2, 0], sizes = [30, 32], strides = [1, 1]} : vector<32x32xf32> to vector<30x32xf32>
    %cst_89 = arith.constant dense<0.000000e+00> : vector<30x180xf32>
    %106 = tpu.matmul %105, %5, %cst_89 {dimension_numbers = #tpu.dot_dimension_numbers<[1], [0], [0], [1], [0, 0, 1, 1], [], []>} : vector<30x32xf32>, vector<32x180xf32>, vector<30x180xf32> -> vector<30x180xf32>
    %107 = arith.addf %104, %106 : vector<30x180xf32>
    %108 = vector.broadcast %40 : vector<1x180xf32> to vector<30x180xf32>
    %109 = arith.addf %107, %108 : vector<30x180xf32>
    %cst_90 = arith.constant 0.000000e+00 : f32
    %110 = vector.broadcast %cst_90 : f32 to vector<30x180xf32>
    %111 = arith.maximumf %109, %110 : vector<30x180xf32>
    %cst_91 = arith.constant dense<0.000000e+00> : vector<15x180xf32>
    %112 = tpu.matmul %7, %111, %cst_91 {dimension_numbers = #tpu.dot_dimension_numbers<[1], [0], [0], [1], [0, 0, 1, 1], [], []>} : vector<15x30xf32>, vector<30x180xf32>, vector<15x180xf32> -> vector<15x180xf32>
    %cst_92 = arith.constant dense<0.000000e+00> : vector<15x180xf32>
    %113 = tpu.matmul %9, %111, %cst_92 {dimension_numbers = #tpu.dot_dimension_numbers<[1], [0], [0], [1], [0, 0, 1, 1], [], []>} : vector<15x30xf32>, vector<30x180xf32>, vector<15x180xf32> -> vector<15x180xf32>
    %114 = arith.maximumf %112, %113 : vector<15x180xf32>
    %cst_93 = arith.constant dense<0.000000e+00> : vector<15x90xf32>
    %115 = tpu.matmul %114, %11, %cst_93 {dimension_numbers = #tpu.dot_dimension_numbers<[1], [0], [0], [1], [0, 0, 1, 1], [], []>} : vector<15x180xf32>, vector<180x90xf32>, vector<15x90xf32> -> vector<15x90xf32>
    %cst_94 = arith.constant dense<0.000000e+00> : vector<15x90xf32>
    %116 = tpu.matmul %114, %13, %cst_94 {dimension_numbers = #tpu.dot_dimension_numbers<[1], [0], [0], [1], [0, 0, 1, 1], [], []>} : vector<15x180xf32>, vector<180x90xf32>, vector<15x90xf32> -> vector<15x90xf32>
    %117 = arith.maximumf %115, %116 : vector<15x90xf32>
    %118 = vector.extract_strided_slice %117 {offsets = [0, 0], sizes = [13, 90], strides = [1, 1]} : vector<15x90xf32> to vector<13x90xf32>
    %cst_95 = arith.constant dense<0.000000e+00> : vector<13x208xf32>
    %119 = tpu.matmul %118, %15, %cst_95 {dimension_numbers = #tpu.dot_dimension_numbers<[1], [0], [0], [1], [0, 0, 1, 1], [], []>} : vector<13x90xf32>, vector<90x208xf32>, vector<13x208xf32> -> vector<13x208xf32>
    %120 = vector.extract_strided_slice %117 {offsets = [1, 0], sizes = [13, 90], strides = [1, 1]} : vector<15x90xf32> to vector<13x90xf32>
    %cst_96 = arith.constant dense<0.000000e+00> : vector<13x208xf32>
    %121 = tpu.matmul %120, %17, %cst_96 {dimension_numbers = #tpu.dot_dimension_numbers<[1], [0], [0], [1], [0, 0, 1, 1], [], []>} : vector<13x90xf32>, vector<90x208xf32>, vector<13x208xf32> -> vector<13x208xf32>
    %122 = arith.addf %119, %121 : vector<13x208xf32>
    %123 = vector.extract_strided_slice %117 {offsets = [2, 0], sizes = [13, 90], strides = [1, 1]} : vector<15x90xf32> to vector<13x90xf32>
    %cst_97 = arith.constant dense<0.000000e+00> : vector<13x208xf32>
    %124 = tpu.matmul %123, %19, %cst_97 {dimension_numbers = #tpu.dot_dimension_numbers<[1], [0], [0], [1], [0, 0, 1, 1], [], []>} : vector<13x90xf32>, vector<90x208xf32>, vector<13x208xf32> -> vector<13x208xf32>
    %125 = arith.addf %122, %124 : vector<13x208xf32>
    %126 = vector.broadcast %41 : vector<1x208xf32> to vector<13x208xf32>
    %127 = arith.addf %125, %126 : vector<13x208xf32>
    %cst_98 = arith.constant 0.000000e+00 : f32
    %128 = vector.broadcast %cst_98 : f32 to vector<13x208xf32>
    %129 = arith.maximumf %127, %128 : vector<13x208xf32>
    %cst_99 = arith.constant dense<0.000000e+00> : vector<6x208xf32>
    %130 = tpu.matmul %21, %129, %cst_99 {dimension_numbers = #tpu.dot_dimension_numbers<[1], [0], [0], [1], [0, 0, 1, 1], [], []>} : vector<6x13xf32>, vector<13x208xf32>, vector<6x208xf32> -> vector<6x208xf32>
    %cst_100 = arith.constant dense<0.000000e+00> : vector<6x208xf32>
    %131 = tpu.matmul %23, %129, %cst_100 {dimension_numbers = #tpu.dot_dimension_numbers<[1], [0], [0], [1], [0, 0, 1, 1], [], []>} : vector<6x13xf32>, vector<13x208xf32>, vector<6x208xf32> -> vector<6x208xf32>
    %132 = arith.maximumf %130, %131 : vector<6x208xf32>
    %cst_101 = arith.constant dense<0.000000e+00> : vector<6x96xf32>
    %133 = tpu.matmul %132, %25, %cst_101 {dimension_numbers = #tpu.dot_dimension_numbers<[1], [0], [0], [1], [0, 0, 1, 1], [], []>} : vector<6x208xf32>, vector<208x96xf32>, vector<6x96xf32> -> vector<6x96xf32>
    %cst_102 = arith.constant dense<0.000000e+00> : vector<6x96xf32>
    %134 = tpu.matmul %132, %27, %cst_102 {dimension_numbers = #tpu.dot_dimension_numbers<[1], [0], [0], [1], [0, 0, 1, 1], [], []>} : vector<6x208xf32>, vector<208x96xf32>, vector<6x96xf32> -> vector<6x96xf32>
    %135 = arith.maximumf %133, %134 : vector<6x96xf32>
    %136 = vector.extract_strided_slice %135 {offsets = [0, 0], sizes = [1, 96], strides = [1, 1]} : vector<6x96xf32> to vector<1x96xf32>
    %cst_103 = arith.constant dense<0.000000e+00> : vector<1x128xf32>
    %137 = tpu.matmul %136, %29, %cst_103 {dimension_numbers = #tpu.dot_dimension_numbers<[1], [0], [0], [1], [0, 0, 1, 1], [], []>} : vector<1x96xf32>, vector<96x128xf32>, vector<1x128xf32> -> vector<1x128xf32>
    %138 = vector.extract_strided_slice %135 {offsets = [1, 0], sizes = [1, 96], strides = [1, 1]} : vector<6x96xf32> to vector<1x96xf32>
    %cst_104 = arith.constant dense<0.000000e+00> : vector<1x128xf32>
    %139 = tpu.matmul %138, %31, %cst_104 {dimension_numbers = #tpu.dot_dimension_numbers<[1], [0], [0], [1], [0, 0, 1, 1], [], []>} : vector<1x96xf32>, vector<96x128xf32>, vector<1x128xf32> -> vector<1x128xf32>
    %140 = arith.addf %137, %139 : vector<1x128xf32>
    %141 = vector.extract_strided_slice %135 {offsets = [2, 0], sizes = [1, 96], strides = [1, 1]} : vector<6x96xf32> to vector<1x96xf32>
    %cst_105 = arith.constant dense<0.000000e+00> : vector<1x128xf32>
    %142 = tpu.matmul %141, %33, %cst_105 {dimension_numbers = #tpu.dot_dimension_numbers<[1], [0], [0], [1], [0, 0, 1, 1], [], []>} : vector<1x96xf32>, vector<96x128xf32>, vector<1x128xf32> -> vector<1x128xf32>
    %143 = arith.addf %140, %142 : vector<1x128xf32>
    %144 = vector.extract_strided_slice %135 {offsets = [3, 0], sizes = [1, 96], strides = [1, 1]} : vector<6x96xf32> to vector<1x96xf32>
    %cst_106 = arith.constant dense<0.000000e+00> : vector<1x128xf32>
    %145 = tpu.matmul %144, %35, %cst_106 {dimension_numbers = #tpu.dot_dimension_numbers<[1], [0], [0], [1], [0, 0, 1, 1], [], []>} : vector<1x96xf32>, vector<96x128xf32>, vector<1x128xf32> -> vector<1x128xf32>
    %146 = arith.addf %143, %145 : vector<1x128xf32>
    %147 = vector.extract_strided_slice %135 {offsets = [4, 0], sizes = [1, 96], strides = [1, 1]} : vector<6x96xf32> to vector<1x96xf32>
    %cst_107 = arith.constant dense<0.000000e+00> : vector<1x128xf32>
    %148 = tpu.matmul %147, %37, %cst_107 {dimension_numbers = #tpu.dot_dimension_numbers<[1], [0], [0], [1], [0, 0, 1, 1], [], []>} : vector<1x96xf32>, vector<96x128xf32>, vector<1x128xf32> -> vector<1x128xf32>
    %149 = arith.addf %146, %148 : vector<1x128xf32>
    %150 = vector.extract_strided_slice %135 {offsets = [5, 0], sizes = [1, 96], strides = [1, 1]} : vector<6x96xf32> to vector<1x96xf32>
    %cst_108 = arith.constant dense<0.000000e+00> : vector<1x128xf32>
    %151 = tpu.matmul %150, %39, %cst_108 {dimension_numbers = #tpu.dot_dimension_numbers<[1], [0], [0], [1], [0, 0, 1, 1], [], []>} : vector<1x96xf32>, vector<96x128xf32>, vector<1x128xf32> -> vector<1x128xf32>
    %152 = arith.addf %149, %151 : vector<1x128xf32>
    %c1_109 = arith.constant 1 : index
    %c0_110 = arith.constant 0 : index
    %153 = vector.load %arg16[%c1_109, %c0_110] : memref<2x128xf32, #tpu.memory_space<vmem>>, vector<1x128xf32>
    tpu.vector_store %arg16[%c1_109, %c0_110], %152 {strides = array<i32>} : memref<2x128xf32, #tpu.memory_space<vmem>>, vector<1x128xf32>,
    %c0_111 = arith.constant 0 : index
    %c0_112 = arith.constant 0 : index
    %154 = vector.load %arg16[%c0_111, %c0_112] : memref<2x128xf32, #tpu.memory_space<vmem>>, vector<2x128xf32>
    %c0_113 = arith.constant 0 : index
    %c0_114 = arith.constant 0 : index
    %155 = vector.load %arg11[%c0_113, %c0_114] : memref<1x128xf32, #tpu.memory_space<vmem>>, vector<1x128xf32>
    %156 = vector.broadcast %155 : vector<1x128xf32> to vector<2x128xf32>
    %157 = arith.addf %154, %156 : vector<2x128xf32>
    %cst_115 = arith.constant 0.000000e+00 : f32
    %158 = vector.broadcast %cst_115 : f32 to vector<2x128xf32>
    %159 = arith.maximumf %157, %158 : vector<2x128xf32>
    %c0_116 = arith.constant 0 : index
    %c0_117 = arith.constant 0 : index
    %160 = vector.load %arg12[%c0_116, %c0_117] : memref<128x128xf32, #tpu.memory_space<vmem>>, vector<128x128xf32>
    %cst_118 = arith.constant dense<0.000000e+00> : vector<2x128xf32>
    %161 = tpu.matmul %159, %160, %cst_118 {dimension_numbers = #tpu.dot_dimension_numbers<[1], [0], [0], [1], [0, 0, 1, 1], [], []>} : vector<2x128xf32>, vector<128x128xf32>, vector<2x128xf32> -> vector<2x128xf32>
    %c0_119 = arith.constant 0 : index
    %c0_120 = arith.constant 0 : index
    %162 = vector.load %arg13[%c0_119, %c0_120] : memref<1x128xf32, #tpu.memory_space<vmem>>, vector<1x128xf32>
    %163 = vector.broadcast %162 : vector<1x128xf32> to vector<2x128xf32>
    %164 = arith.addf %161, %163 : vector<2x128xf32>
    %cst_121 = arith.constant 0.000000e+00 : f32
    %165 = vector.broadcast %cst_121 : f32 to vector<2x128xf32>
    %166 = arith.maximumf %164, %165 : vector<2x128xf32>
    %c0_122 = arith.constant 0 : index
    %c0_123 = arith.constant 0 : index
    %167 = vector.load %arg14[%c0_122, %c0_123] : memref<128x128xf32, #tpu.memory_space<vmem>>, vector<128x128xf32>
    %cst_124 = arith.constant dense<0.000000e+00> : vector<2x128xf32>
    %168 = tpu.matmul %166, %167, %cst_124 {dimension_numbers = #tpu.dot_dimension_numbers<[1], [0], [0], [1], [0, 0, 1, 1], [], []>} : vector<2x128xf32>, vector<128x128xf32>, vector<2x128xf32> -> vector<2x128xf32>
    %c0_125 = arith.constant 0 : index
    %c0_126 = arith.constant 0 : index
    %169 = vector.load %arg15[%c0_125, %c0_126] : memref<1x128xf32, #tpu.memory_space<vmem>>, vector<1x128xf32>
    %170 = vector.broadcast %169 : vector<1x128xf32> to vector<2x128xf32>
    %171 = arith.addf %168, %170 : vector<2x128xf32>
    %c0_127 = arith.constant 0 : index
    %c0_128 = arith.constant 0 : index
    %172 = vector.load %arg16[%c0_127, %c0_128] : memref<2x128xf32, #tpu.memory_space<vmem>>, vector<2x128xf32>
    tpu.vector_store %arg16[%c0_127, %c0_128], %171 {strides = array<i32>} : memref<2x128xf32, #tpu.memory_space<vmem>>, vector<2x128xf32>,
    return
  }
  func.func @transform_0(%arg0: i32) -> (i32, i32, i32) {
    %c0_i32 = arith.constant 0 : i32
    %c0_i32_0 = arith.constant 0 : i32
    %c0_i32_1 = arith.constant 0 : i32
    return %arg0, %c0_i32, %c0_i32_0 : i32, i32, i32
  }
  func.func @transform_1(%arg0: i32) -> (i32, i32, i32) {
    %c0_i32 = arith.constant 0 : i32
    %c0_i32_0 = arith.constant 0 : i32
    %c0_i32_1 = arith.constant 0 : i32
    %c0_i32_2 = arith.constant 0 : i32
    return %c0_i32, %c0_i32_0, %c0_i32_1 : i32, i32, i32
  }
  func.func @transform_2(%arg0: i32) -> (i32, i32) {
    %c0_i32 = arith.constant 0 : i32
    %c0_i32_0 = arith.constant 0 : i32
    %c0_i32_1 = arith.constant 0 : i32
    return %c0_i32, %c0_i32_0 : i32, i32
  }
  func.func @transform_3(%arg0: i32) -> (i32, i32, i32) {
    %c0_i32 = arith.constant 0 : i32
    %c0_i32_0 = arith.constant 0 : i32
    %c0_i32_1 = arith.constant 0 : i32
    %c0_i32_2 = arith.constant 0 : i32
    return %c0_i32, %c0_i32_0, %c0_i32_1 : i32, i32, i32
  }
  func.func @transform_4(%arg0: i32) -> (i32, i32, i32) {
    %c0_i32 = arith.constant 0 : i32
    %c0_i32_0 = arith.constant 0 : i32
    %c0_i32_1 = arith.constant 0 : i32
    %c0_i32_2 = arith.constant 0 : i32
    return %c0_i32, %c0_i32_0, %c0_i32_1 : i32, i32, i32
  }
  func.func @transform_5(%arg0: i32) -> (i32, i32, i32) {
    %c0_i32 = arith.constant 0 : i32
    %c0_i32_0 = arith.constant 0 : i32
    %c0_i32_1 = arith.constant 0 : i32
    %c0_i32_2 = arith.constant 0 : i32
    return %c0_i32, %c0_i32_0, %c0_i32_1 : i32, i32, i32
  }
  func.func @transform_6(%arg0: i32) -> (i32, i32) {
    %c0_i32 = arith.constant 0 : i32
    %c0_i32_0 = arith.constant 0 : i32
    %c0_i32_1 = arith.constant 0 : i32
    return %c0_i32, %c0_i32_0 : i32, i32
  }
  func.func @transform_7(%arg0: i32) -> (i32, i32, i32) {
    %c0_i32 = arith.constant 0 : i32
    %c0_i32_0 = arith.constant 0 : i32
    %c0_i32_1 = arith.constant 0 : i32
    %c0_i32_2 = arith.constant 0 : i32
    return %c0_i32, %c0_i32_0, %c0_i32_1 : i32, i32, i32
  }
  func.func @transform_8(%arg0: i32) -> (i32, i32, i32) {
    %c0_i32 = arith.constant 0 : i32
    %c0_i32_0 = arith.constant 0 : i32
    %c0_i32_1 = arith.constant 0 : i32
    %c0_i32_2 = arith.constant 0 : i32
    return %c0_i32, %c0_i32_0, %c0_i32_1 : i32, i32, i32
  }
  func.func @transform_9(%arg0: i32) -> (i32, i32, i32) {
    %c0_i32 = arith.constant 0 : i32
    %c0_i32_0 = arith.constant 0 : i32
    %c0_i32_1 = arith.constant 0 : i32
    %c0_i32_2 = arith.constant 0 : i32
    return %c0_i32, %c0_i32_0, %c0_i32_1 : i32, i32, i32
  }
  func.func @transform_10(%arg0: i32) -> (i32, i32) {
    %c0_i32 = arith.constant 0 : i32
    %c0_i32_0 = arith.constant 0 : i32
    %c0_i32_1 = arith.constant 0 : i32
    return %c0_i32, %c0_i32_0 : i32, i32
  }
  func.func @transform_11(%arg0: i32) -> (i32, i32) {
    %c0_i32 = arith.constant 0 : i32
    %c0_i32_0 = arith.constant 0 : i32
    %c0_i32_1 = arith.constant 0 : i32
    return %c0_i32, %c0_i32_0 : i32, i32
  }
  func.func @transform_12(%arg0: i32) -> (i32, i32) {
    %c0_i32 = arith.constant 0 : i32
    %c0_i32_0 = arith.constant 0 : i32
    %c0_i32_1 = arith.constant 0 : i32
    return %c0_i32, %c0_i32_0 : i32, i32
  }
  func.func @transform_13(%arg0: i32) -> (i32, i32) {
    %c0_i32 = arith.constant 0 : i32
    %c0_i32_0 = arith.constant 0 : i32
    %c0_i32_1 = arith.constant 0 : i32
    return %c0_i32, %c0_i32_0 : i32, i32
  }
  func.func @transform_14(%arg0: i32) -> (i32, i32) {
    %c0_i32 = arith.constant 0 : i32
    %c0_i32_0 = arith.constant 0 : i32
    %c0_i32_1 = arith.constant 0 : i32
    return %c0_i32, %c0_i32_0 : i32, i32
  }
  func.func @transform_15(%arg0: i32) -> (i32, i32) {
    %c0_i32 = arith.constant 0 : i32
    %c0_i32_0 = arith.constant 0 : i32
    return %arg0, %c0_i32 : i32, i32
  }
}

</mosaic_0001>

<llo_original>
// kernel: net_forward.1
$region0: #{net_forward.1}
  #allocation0 [shape = 'u32[]', space=smem, size = 0x4, offset = 0x4, fixed_abs, tag = 'smem constant byte address 0x4 - core index']
  #allocation1 [shape = 'u32[144,128]{1,0:T(1,128)}', space=vmem, size = 0x12000, scoped, tag = 'internal scratch']
  %s0 = inlined_call_operand.vmem [shape: f32[2,32,32], index: 0, kind: input, shape index: {}]
  %s1 = inlined_call_operand.hbm [shape: f32[3,32,180], index: 1, kind: input, shape index: {}]
  %s2 = inlined_call_operand.vmem [shape: f32[1,180], index: 2, kind: input, shape index: {}]
  %s3 = inlined_call_operand.vmem [shape: f32[2,15,30], index: 3, kind: input, shape index: {}]
  %s4 = inlined_call_operand.vmem [shape: f32[2,180,90], index: 4, kind: input, shape index: {}]
  %s5 = inlined_call_operand.vmem [shape: f32[3,90,208], index: 5, kind: input, shape index: {}]
  %s6 = inlined_call_operand.vmem [shape: f32[1,208], index: 6, kind: input, shape index: {}]
  %s7 = inlined_call_operand.vmem [shape: f32[2,6,13], index: 7, kind: input, shape index: {}]
  %s8 = inlined_call_operand.vmem [shape: f32[2,208,96], index: 8, kind: input, shape index: {}]
  %s9 = inlined_call_operand.vmem [shape: f32[6,96,128], index: 9, kind: input, shape index: {}]
  %s10 = inlined_call_operand.vmem [shape: f32[1,128], index: 10, kind: input, shape index: {}]
  %s11 = inlined_call_operand.hbm [shape: f32[128,128], index: 11, kind: input, shape index: {}]
  %s12 = inlined_call_operand.vmem [shape: f32[1,128], index: 12, kind: input, shape index: {}]
  %s13 = inlined_call_operand.hbm [shape: f32[128,128], index: 13, kind: input, shape index: {}]
  %s14 = inlined_call_operand.vmem [shape: f32[1,128], index: 14, kind: input, shape index: {}]
  %s15 = inlined_call_operand.hbm [shape: f32[2,128], index: 15, kind: output, shape index: {}]
  %s16 = sld [smem:[#allocation0]]
  $region82: #{net_forward.1} parent=0
    _
  %s18 = ssub.s32 1, %s16
  %s19 = scalar_select 0, %s18, %s16
  $region1: #{net_forward.1} parent=0
    #allocation2 [shape = 'u8[98304]{0}', space=vmem, size = 0x18000, scoped, tag = 'input window, operand 1, single buffered']
    #allocation3 [shape = 's32[1]{0}', space=sflag, size = 0x4, scoped, tag = 'scoped memory for net_forward.1']
    #allocation4 [shape = 's32[1]{0}', space=sflag, size = 0x4, scoped, tag = 'scoped memory for net_forward.1']
    #allocation5 [shape = 'u8[65536]{0}', space=vmem, size = 0x10000, scoped, tag = 'input window, operand 11, single buffered']
    #allocation6 [shape = 's32[1]{0}', space=sflag, size = 0x4, scoped, tag = 'scoped memory for net_forward.1']
    #allocation7 [shape = 'u8[65536]{0}', space=vmem, size = 0x10000, scoped, tag = 'input window, operand 13, single buffered']
    #allocation8 [shape = 'u8[1024]{0}', space=vmem, size = 0x400, scoped, tag = 'output window, operand 0, single buffered']
    %20 = vsyncpa [#allocation3], 0
    %21 = vsyncpa [#allocation6], 0
    %22 = vsyncpa [#allocation4], 0
    // Predicated region
    $region2: #{net_forward.1} parent=1 // pred_check
      _
    $region3: #{net_forward.1} parent=1 // pred_check_branch
      %24 = sbr.rel (0) target = $region5
    $region4: #{net_forward.1} parent=1 // pred_region
      _
    $region5: #{net_forward.1} parent=1 // pred_fallthru
      _
    // Predicated region
    $region6: #{net_forward.1} parent=1 // pred_check
      _
    $region7: #{net_forward.1} parent=1 // pred_check_branch
      %26 = sbr.rel (0) target = $region9
    $region8: #{net_forward.1} parent=1 // pred_region
      %s28 = ssub.s32 3072, 3072
      %29 = vsyncadd [#allocation3], %s28
      %s30 = sshll.u32 [#allocation2], 4
      %s31 = int_to_ptr.vmem [resolvable:$true] %s30
      %36 = dma.hbm_to_vmem [thread:$0]  %s1, 3072, %s31, [#allocation3], 256, 256, 16
    $region9: #{net_forward.1} parent=1 // pred_fallthru
      _
    // Predicated region
    $region10: #{net_forward.1} parent=1 // pred_check
      _
    $region11: #{net_forward.1} parent=1 // pred_check_branch
      %38 = sbr.rel (0) target = $region13
    $region12: #{net_forward.1} parent=1 // pred_region
      _
    $region13: #{net_forward.1} parent=1 // pred_fallthru
      _
    // Predicated region
    $region14: #{net_forward.1} parent=1 // pred_check
      _
    $region15: #{net_forward.1} parent=1 // pred_check_branch
      %40 = sbr.rel (0) target = $region17
    $region16: #{net_forward.1} parent=1 // pred_region
      _
    $region17: #{net_forward.1} parent=1 // pred_fallthru
      _
    // Predicated region
    $region18: #{net_forward.1} parent=1 // pred_check
      _
    $region19: #{net_forward.1} parent=1 // pred_check_branch
      %42 = sbr.rel (0) target = $region21
    $region20: #{net_forward.1} parent=1 // pred_region
      _
    $region21: #{net_forward.1} parent=1 // pred_fallthru
      _
    // Predicated region
    $region22: #{net_forward.1} parent=1 // pred_check
      _
    $region23: #{net_forward.1} parent=1 // pred_check_branch
      %44 = sbr.rel (0) target = $region25
    $region24: #{net_forward.1} parent=1 // pred_region
      _
    $region25: #{net_forward.1} parent=1 // pred_fallthru
      _
    // Predicated region
    $region26: #{net_forward.1} parent=1 // pred_check
      _
    $region27: #{net_forward.1} parent=1 // pred_check_branch
      %46 = sbr.rel (0) target = $region29
    $region28: #{net_forward.1} parent=1 // pred_region
      _
    $region29: #{net_forward.1} parent=1 // pred_fallthru
      _
    // Predicated region
    $region30: #{net_forward.1} parent=1 // pred_check
      _
    $region31: #{net_forward.1} parent=1 // pred_check_branch
      %48 = sbr.rel (0) target = $region33
    $region32: #{net_forward.1} parent=1 // pred_region
      _
    $region33: #{net_forward.1} parent=1 // pred_fallthru
      _
    // Predicated region
    $region34: #{net_forward.1} parent=1 // pred_check
      _
    $region35: #{net_forward.1} parent=1 // pred_check_branch
      %50 = sbr.rel (0) target = $region37
    $region36: #{net_forward.1} parent=1 // pred_region
      _
    $region37: #{net_forward.1} parent=1 // pred_fallthru
      _
    // Predicated region
    $region38: #{net_forward.1} parent=1 // pred_check
      _
    $region39: #{net_forward.1} parent=1 // pred_check_branch
      %52 = sbr.rel (0) target = $region41
    $region40: #{net_forward.1} parent=1 // pred_region
      _
    $region41: #{net_forward.1} parent=1 // pred_fallthru
      _
    // Predicated region
    $region42: #{net_forward.1} parent=1 // pred_check
      _
    $region43: #{net_forward.1} parent=1 // pred_check_branch
      %54 = sbr.rel (0) target = $region45
    $region44: #{net_forward.1} parent=1 // pred_region
      _
    $region45: #{net_forward.1} parent=1 // pred_fallthru
      _
    // Predicated region
    $region46: #{net_forward.1} parent=1 // pred_check
      _
    $region47: #{net_forward.1} parent=1 // pred_check_branch
      %56 = sbr.rel (0) target = $region49
    $region48: #{net_forward.1} parent=1 // pred_region
      %s58 = ssub.s32 2048, 2048
      %59 = vsyncadd [#allocation6], %s58
      %s60 = sshll.u32 [#allocation5], 4
      %s61 = int_to_ptr.vmem [resolvable:$true] %s60
      %66 = dma.hbm_to_vmem [thread:$0]  %s11, 2048, %s61, [#allocation6], 128, 128, 8
    $region49: #{net_forward.1} parent=1 // pred_fallthru
      _
    // Predicated region
    $region50: #{net_forward.1} parent=1 // pred_check
      _
    $region51: #{net_forward.1} parent=1 // pred_check_branch
      %68 = sbr.rel (0) target = $region53
    $region52: #{net_forward.1} parent=1 // pred_region
      _
    $region53: #{net_forward.1} parent=1 // pred_fallthru
      _
    // Predicated region
    $region54: #{net_forward.1} parent=1 // pred_check
      _
    $region55: #{net_forward.1} parent=1 // pred_check_branch
      %70 = sbr.rel (0) target = $region57
    $region56: #{net_forward.1} parent=1 // pred_region
      %s72 = ssub.s32 2048, 2048
      %73 = vsyncadd [#allocation6], %s72
      %s74 = sshll.u32 [#allocation7], 4
      %s75 = int_to_ptr.vmem [resolvable:$true] %s74
      %80 = dma.hbm_to_vmem [thread:$0]  %s13, 2048, %s75, [#allocation6], 128, 128, 8
    $region57: #{net_forward.1} parent=1 // pred_fallthru
      _
    // Predicated region
    $region58: #{net_forward.1} parent=1 // pred_check
      _
    $region59: #{net_forward.1} parent=1 // pred_check_branch
      %82 = sbr.rel (0) target = $region61
    $region60: #{net_forward.1} parent=1 // pred_region
      _
    $region61: #{net_forward.1} parent=1 // pred_fallthru
      _
    // Predicated region
    $region62: #{net_forward.1} parent=1 // pred_check
      _
    $region63: #{net_forward.1} parent=1 // pred_check_branch
      %84 = sbr.rel (0) target = $region65
    $region64: #{net_forward.1} parent=1 // pred_region
      %85 = dma.done [#allocation3], 3072
    $region65: #{net_forward.1} parent=1 // pred_fallthru
      _
    // Predicated region
    $region66: #{net_forward.1} parent=1 // pred_check
      _
    $region67: #{net_forward.1} parent=1 // pred_check_branch
      %87 = sbr.rel (0) target = $region69
    $region68: #{net_forward.1} parent=1 // pred_region
      %88 = dma.done [#allocation6], 2048
    $region69: #{net_forward.1} parent=1 // pred_fallthru
      _
    // Predicated region
    $region70: #{net_forward.1} parent=1 // pred_check
      _
    $region71: #{net_forward.1} parent=1 // pred_check_branch
      %90 = sbr.rel (0) target = $region73
    $region72: #{net_forward.1} parent=1 // pred_region
      %91 = dma.done [#allocation6], 2048
    $region73: #{net_forward.1} parent=1 // pred_fallthru
      _
    %v92 = vld [vmem:[#allocation2] sm:$0xff]
    %v93 = vld [vmem:[#allocation2 + $0x8] sm:$0xff]
    %v94 = vld [vmem:[#allocation2 + $0x10] sm:$0xff]
    %v95 = vld [vmem:[#allocation2 + $0x18] sm:$0xff]
    %v96 = vld [vmem:[#allocation2 + $0x20] sm:$0xff]
    %v97 = vld [vmem:[#allocation2 + $0x28] sm:$0xff]
    %v98 = vld [vmem:[#allocation2 + $0x30] sm:$0xff]
    %v99 = vld [vmem:[#allocation2 + $0x38] sm:$0xff]
    %s100 = scalar_lea.vmem [#allocation2], 64
    %v101 = vld [vmem:[%s100] sm:$0xff]
    %v102 = vld [vmem:[%s100 + $0x8] sm:$0xff]
    %v103 = vld [vmem:[%s100 + $0x10] sm:$0xff]
    %v104 = vld [vmem:[%s100 + $0x18] sm:$0xff]
    %v105 = vld [vmem:[%s100 + $0x20] sm:$0xff]
    %v106 = vld [vmem:[%s100 + $0x28] sm:$0xff]
    %v107 = vld [vmem:[%s100 + $0x30] sm:$0xff]
    %v108 = vld [vmem:[%s100 + $0x38] sm:$0xff]
    %s109 = scalar_lea.vmem [#allocation2], 128
    %v110 = vld [vmem:[%s109] sm:$0xff]
    %v111 = vld [vmem:[%s109 + $0x8] sm:$0xff]
    %v112 = vld [vmem:[%s109 + $0x10] sm:$0xff]
    %v113 = vld [vmem:[%s109 + $0x18] sm:$0xff]
    %v114 = vld [vmem:[%s109 + $0x20] sm:$0xff]
    %v115 = vld [vmem:[%s109 + $0x28] sm:$0xff]
    %v116 = vld [vmem:[%s109 + $0x30] sm:$0xff]
    %v117 = vld [vmem:[%s109 + $0x38] sm:$0xff]
    %v118 = vld [vmem:[%s3] sm:$0xff]
    %v119 = vld [vmem:[%s3 + $0x8] sm:$0x7f]
    %s120 = scalar_lea.vmem %s3, 16
    %v121 = vld [vmem:[%s120] sm:$0xff]
    %v122 = vld [vmem:[%s120 + $0x8] sm:$0x7f]
    %v123 = vld [vmem:[%s4] sm:$0xff]
    %v124 = vld [vmem:[%s4 + $0x8] sm:$0xff]
    %v125 = vld [vmem:[%s4 + $0x10] sm:$0xff]
    %v126 = vld [vmem:[%s4 + $0x18] sm:$0xff]
    %v127 = vld [vmem:[%s4 + $0x20] sm:$0xff]
    %v128 = vld [vmem:[%s4 + $0x28] sm:$0xff]
    %v129 = vld [vmem:[%s4 + $0x30] sm:$0xff]
    %v130 = vld [vmem:[%s4 + $0x38] sm:$0xff]
    %v131 = vld [vmem:[%s4 + $0x40] sm:$0xff]
    %v132 = vld [vmem:[%s4 + $0x48] sm:$0xff]
    %v133 = vld [vmem:[%s4 + $0x50] sm:$0xff]
    %v134 = vld [vmem:[%s4 + $0x58] sm:$0xff]
    %v135 = vld [vmem:[%s4 + $0x60] sm:$0xff]
    %v136 = vld [vmem:[%s4 + $0x68] sm:$0xff]
    %v137 = vld [vmem:[%s4 + $0x70] sm:$0xff]
    %v138 = vld [vmem:[%s4 + $0x78] sm:$0xff]
    %v139 = vld [vmem:[%s4 + $0x80] sm:$0xff]
    %v140 = vld [vmem:[%s4 + $0x88] sm:$0xff]
    %v141 = vld [vmem:[%s4 + $0x90] sm:$0xff]
    %v142 = vld [vmem:[%s4 + $0x98] sm:$0xff]
    %v143 = vld [vmem:[%s4 + $0xa0] sm:$0xff]
    %v144 = vld [vmem:[%s4 + $0xa8] sm:$0xff]
    %v145 = vld [vmem:[%s4 + $0xb0] sm:$0xf]
    %s146 = scalar_lea.vmem %s4, 184
    %v147 = vld [vmem:[%s146] sm:$0xff]
    %v148 = vld [vmem:[%s146 + $0x8] sm:$0xff]
    %v149 = vld [vmem:[%s146 + $0x10] sm:$0xff]
    %v150 = vld [vmem:[%s146 + $0x18] sm:$0xff]
    %v151 = vld [vmem:[%s146 + $0x20] sm:$0xff]
    %v152 = vld [vmem:[%s146 + $0x28] sm:$0xff]
    %v153 = vld [vmem:[%s146 + $0x30] sm:$0xff]
    %v154 = vld [vmem:[%s146 + $0x38] sm:$0xff]
    %v155 = vld [vmem:[%s146 + $0x40] sm:$0xff]
    %v156 = vld [vmem:[%s146 + $0x48] sm:$0xff]
    %v157 = vld [vmem:[%s146 + $0x50] sm:$0xff]
    %v158 = vld [vmem:[%s146 + $0x58] sm:$0xff]
    %v159 = vld [vmem:[%s146 + $0x60] sm:$0xff]
    %v160 = vld [vmem:[%s146 + $0x68] sm:$0xff]
    %v161 = vld [vmem:[%s146 + $0x70] sm:$0xff]
    %v162 = vld [vmem:[%s146 + $0x78] sm:$0xff]
    %v163 = vld [vmem:[%s146 + $0x80] sm:$0xff]
    %v164 = vld [vmem:[%s146 + $0x88] sm:$0xff]
    %v165 = vld [vmem:[%s146 + $0x90] sm:$0xff]
    %v166 = vld [vmem:[%s146 + $0x98] sm:$0xff]
    %v167 = vld [vmem:[%s146 + $0xa0] sm:$0xff]
    %v168 = vld [vmem:[%s146 + $0xa8] sm:$0xff]
    %v169 = vld [vmem:[%s146 + $0xb0] sm:$0xf]
    %v170 = vld [vmem:[%s5] sm:$0xff]
    %v171 = vld [vmem:[%s5 + $0x8] sm:$0xff]
    %v172 = vld [vmem:[%s5 + $0x10] sm:$0xff]
    %v173 = vld [vmem:[%s5 + $0x18] sm:$0xff]
    %v174 = vld [vmem:[%s5 + $0x20] sm:$0xff]
    %v175 = vld [vmem:[%s5 + $0x28] sm:$0xff]
    %v176 = vld [vmem:[%s5 + $0x30] sm:$0xff]
    %v177 = vld [vmem:[%s5 + $0x38] sm:$0xff]
    %v178 = vld [vmem:[%s5 + $0x40] sm:$0xff]
    %v179 = vld [vmem:[%s5 + $0x48] sm:$0xff]
    %v180 = vld [vmem:[%s5 + $0x50] sm:$0xff]
    %v181 = vld [vmem:[%s5 + $0x58] sm:$0xff]
    %v182 = vld [vmem:[%s5 + $0x60] sm:$0xff]
    %v183 = vld [vmem:[%s5 + $0x68] sm:$0xff]
    %v184 = vld [vmem:[%s5 + $0x70] sm:$0xff]
    %v185 = vld [vmem:[%s5 + $0x78] sm:$0xff]
    %v186 = vld [vmem:[%s5 + $0x80] sm:$0xff]
    %v187 = vld [vmem:[%s5 + $0x88] sm:$0xff]
    %v188 = vld [vmem:[%s5 + $0x90] sm:$0xff]
    %v189 = vld [vmem:[%s5 + $0x98] sm:$0xff]
    %v190 = vld [vmem:[%s5 + $0xa0] sm:$0xff]
    %v191 = vld [vmem:[%s5 + $0xa8] sm:$0xff]
    %v192 = vld [vmem:[%s5 + $0xb0] sm:$0x3]
    %v193 = vld [vmem:[%s5 + $0xb8] sm:$0x3]
    %s194 = scalar_lea.vmem %s5, 192
    %v195 = vld [vmem:[%s194] sm:$0xff]
    %v196 = vld [vmem:[%s194 + $0x8] sm:$0xff]
    %v197 = vld [vmem:[%s194 + $0x10] sm:$0xff]
    %v198 = vld [vmem:[%s194 + $0x18] sm:$0xff]
    %v199 = vld [vmem:[%s194 + $0x20] sm:$0xff]
    %v200 = vld [vmem:[%s194 + $0x28] sm:$0xff]
    %v201 = vld [vmem:[%s194 + $0x30] sm:$0xff]
    %v202 = vld [vmem:[%s194 + $0x38] sm:$0xff]
    %v203 = vld [vmem:[%s194 + $0x40] sm:$0xff]
    %v204 = vld [vmem:[%s194 + $0x48] sm:$0xff]
    %v205 = vld [vmem:[%s194 + $0x50] sm:$0xff]
    %v206 = vld [vmem:[%s194 + $0x58] sm:$0xff]
    %v207 = vld [vmem:[%s194 + $0x60] sm:$0xff]
    %v208 = vld [vmem:[%s194 + $0x68] sm:$0xff]
    %v209 = vld [vmem:[%s194 + $0x70] sm:$0xff]
    %v210 = vld [vmem:[%s194 + $0x78] sm:$0xff]
    %v211 = vld [vmem:[%s194 + $0x80] sm:$0xff]
    %v212 = vld [vmem:[%s194 + $0x88] sm:$0xff]
    %v213 = vld [vmem:[%s194 + $0x90] sm:$0xff]
    %v214 = vld [vmem:[%s194 + $0x98] sm:$0xff]
    %v215 = vld [vmem:[%s194 + $0xa0] sm:$0xff]
    %v216 = vld [vmem:[%s194 + $0xa8] sm:$0xff]
    %v217 = vld [vmem:[%s194 + $0xb0] sm:$0x3]
    %v218 = vld [vmem:[%s194 + $0xb8] sm:$0x3]
    %s219 = scalar_lea.vmem %s5, 384
    %v220 = vld [vmem:[%s219] sm:$0xff]
    %v221 = vld [vmem:[%s219 + $0x8] sm:$0xff]
    %v222 = vld [vmem:[%s219 + $0x10] sm:$0xff]
    %v223 = vld [vmem:[%s219 + $0x18] sm:$0xff]
    %v224 = vld [vmem:[%s219 + $0x20] sm:$0xff]
    %v225 = vld [vmem:[%s219 + $0x28] sm:$0xff]
    %v226 = vld [vmem:[%s219 + $0x30] sm:$0xff]
    %v227 = vld [vmem:[%s219 + $0x38] sm:$0xff]
    %v228 = vld [vmem:[%s219 + $0x40] sm:$0xff]
    %v229 = vld [vmem:[%s219 + $0x48] sm:$0xff]
    %v230 = vld [vmem:[%s219 + $0x50] sm:$0xff]
    %v231 = vld [vmem:[%s219 + $0x58] sm:$0xff]
    %v232 = vld [vmem:[%s219 + $0x60] sm:$0xff]
    %v233 = vld [vmem:[%s219 + $0x68] sm:$0xff]
    %v234 = vld [vmem:[%s219 + $0x70] sm:$0xff]
    %v235 = vld [vmem:[%s219 + $0x78] sm:$0xff]
    %v236 = vld [vmem:[%s219 + $0x80] sm:$0xff]
    %v237 = vld [vmem:[%s219 + $0x88] sm:$0xff]
    %v238 = vld [vmem:[%s219 + $0x90] sm:$0xff]
    %v239 = vld [vmem:[%s219 + $0x98] sm:$0xff]
    %v240 = vld [vmem:[%s219 + $0xa0] sm:$0xff]
    %v241 = vld [vmem:[%s219 + $0xa8] sm:$0xff]
    %v242 = vld [vmem:[%s219 + $0xb0] sm:$0x3]
    %v243 = vld [vmem:[%s219 + $0xb8] sm:$0x3]
    %v244 = vld [vmem:[%s7] sm:$0x3f]
    %s245 = scalar_lea.vmem %s7, 8
    %v246 = vld [vmem:[%s245] sm:$0x3f]
    %v247 = vld [vmem:[%s8] sm:$0xff]
    %v248 = vld [vmem:[%s8 + $0x8] sm:$0xff]
    %v249 = vld [vmem:[%s8 + $0x10] sm:$0xff]
    %v250 = vld [vmem:[%s8 + $0x18] sm:$0xff]
    %v251 = vld [vmem:[%s8 + $0x20] sm:$0xff]
    %v252 = vld [vmem:[%s8 + $0x28] sm:$0xff]
    %v253 = vld [vmem:[%s8 + $0x30] sm:$0xff]
    %v254 = vld [vmem:[%s8 + $0x38] sm:$0xff]
    %v255 = vld [vmem:[%s8 + $0x40] sm:$0xff]
    %v256 = vld [vmem:[%s8 + $0x48] sm:$0xff]
    %v257 = vld [vmem:[%s8 + $0x50] sm:$0xff]
    %v258 = vld [vmem:[%s8 + $0x58] sm:$0xff]
    %v259 = vld [vmem:[%s8 + $0x60] sm:$0xff]
    %v260 = vld [vmem:[%s8 + $0x68] sm:$0xff]
    %v261 = vld [vmem:[%s8 + $0x70] sm:$0xff]
    %v262 = vld [vmem:[%s8 + $0x78] sm:$0xff]
    %v263 = vld [vmem:[%s8 + $0x80] sm:$0xff]
    %v264 = vld [vmem:[%s8 + $0x88] sm:$0xff]
    %v265 = vld [vmem:[%s8 + $0x90] sm:$0xff]
    %v266 = vld [vmem:[%s8 + $0x98] sm:$0xff]
    %v267 = vld [vmem:[%s8 + $0xa0] sm:$0xff]
    %v268 = vld [vmem:[%s8 + $0xa8] sm:$0xff]
    %v269 = vld [vmem:[%s8 + $0xb0] sm:$0xff]
    %v270 = vld [vmem:[%s8 + $0xb8] sm:$0xff]
    %v271 = vld [vmem:[%s8 + $0xc0] sm:$0xff]
    %v272 = vld [vmem:[%s8 + $0xc8] sm:$0xff]
    %s273 = scalar_lea.vmem %s8, 208
    %v274 = vld [vmem:[%s273] sm:$0xff]
    %v275 = vld [vmem:[%s273 + $0x8] sm:$0xff]
    %v276 = vld [vmem:[%s273 + $0x10] sm:$0xff]
    %v277 = vld [vmem:[%s273 + $0x18] sm:$0xff]
    %v278 = vld [vmem:[%s273 + $0x20] sm:$0xff]
    %v279 = vld [vmem:[%s273 + $0x28] sm:$0xff]
    %v280 = vld [vmem:[%s273 + $0x30] sm:$0xff]
    %v281 = vld [vmem:[%s273 + $0x38] sm:$0xff]
    %v282 = vld [vmem:[%s273 + $0x40] sm:$0xff]
    %v283 = vld [vmem:[%s273 + $0x48] sm:$0xff]
    %v284 = vld [vmem:[%s273 + $0x50] sm:$0xff]
    %v285 = vld [vmem:[%s273 + $0x58] sm:$0xff]
    %v286 = vld [vmem:[%s273 + $0x60] sm:$0xff]
    %v287 = vld [vmem:[%s273 + $0x68] sm:$0xff]
    %v288 = vld [vmem:[%s273 + $0x70] sm:$0xff]
    %v289 = vld [vmem:[%s273 + $0x78] sm:$0xff]
    %v290 = vld [vmem:[%s273 + $0x80] sm:$0xff]
    %v291 = vld [vmem:[%s273 + $0x88] sm:$0xff]
    %v292 = vld [vmem:[%s273 + $0x90] sm:$0xff]
    %v293 = vld [vmem:[%s273 + $0x98] sm:$0xff]
    %v294 = vld [vmem:[%s273 + $0xa0] sm:$0xff]
    %v295 = vld [vmem:[%s273 + $0xa8] sm:$0xff]
    %v296 = vld [vmem:[%s273 + $0xb0] sm:$0xff]
    %v297 = vld [vmem:[%s273 + $0xb8] sm:$0xff]
    %v298 = vld [vmem:[%s273 + $0xc0] sm:$0xff]
    %v299 = vld [vmem:[%s273 + $0xc8] sm:$0xff]
    %v300 = vld [vmem:[%s9] sm:$0xff]
    %v301 = vld [vmem:[%s9 + $0x8] sm:$0xff]
    %v302 = vld [vmem:[%s9 + $0x10] sm:$0xff]
    %v303 = vld [vmem:[%s9 + $0x18] sm:$0xff]
    %v304 = vld [vmem:[%s9 + $0x20] sm:$0xff]
    %v305 = vld [vmem:[%s9 + $0x28] sm:$0xff]
    %v306 = vld [vmem:[%s9 + $0x30] sm:$0xff]
    %v307 = vld [vmem:[%s9 + $0x38] sm:$0xff]
    %v308 = vld [vmem:[%s9 + $0x40] sm:$0xff]
    %v309 = vld [vmem:[%s9 + $0x48] sm:$0xff]
    %v310 = vld [vmem:[%s9 + $0x50] sm:$0xff]
    %v311 = vld [vmem:[%s9 + $0x58] sm:$0xff]
    %s312 = scalar_lea.vmem %s9, 96
    %v313 = vld [vmem:[%s312] sm:$0xff]
    %v314 = vld [vmem:[%s312 + $0x8] sm:$0xff]
    %v315 = vld [vmem:[%s312 + $0x10] sm:$0xff]
    %v316 = vld [vmem:[%s312 + $0x18] sm:$0xff]
    %v317 = vld [vmem:[%s312 + $0x20] sm:$0xff]
    %v318 = vld [vmem:[%s312 + $0x28] sm:$0xff]
    %v319 = vld [vmem:[%s312 + $0x30] sm:$0xff]
    %v320 = vld [vmem:[%s312 + $0x38] sm:$0xff]
    %v321 = vld [vmem:[%s312 + $0x40] sm:$0xff]
    %v322 = vld [vmem:[%s312 + $0x48] sm:$0xff]
    %v323 = vld [vmem:[%s312 + $0x50] sm:$0xff]
    %v324 = vld [vmem:[%s312 + $0x58] sm:$0xff]
    %s325 = scalar_lea.vmem %s9, 192
    %v326 = vld [vmem:[%s325] sm:$0xff]
    %v327 = vld [vmem:[%s325 + $0x8] sm:$0xff]
    %v328 = vld [vmem:[%s325 + $0x10] sm:$0xff]
    %v329 = vld [vmem:[%s325 + $0x18] sm:$0xff]
    %v330 = vld [vmem:[%s325 + $0x20] sm:$0xff]
    %v331 = vld [vmem:[%s325 + $0x28] sm:$0xff]
    %v332 = vld [vmem:[%s325 + $0x30] sm:$0xff]
    %v333 = vld [vmem:[%s325 + $0x38] sm:$0xff]
    %v334 = vld [vmem:[%s325 + $0x40] sm:$0xff]
    %v335 = vld [vmem:[%s325 + $0x48] sm:$0xff]
    %v336 = vld [vmem:[%s325 + $0x50] sm:$0xff]
    %v337 = vld [vmem:[%s325 + $0x58] sm:$0xff]
    %s338 = scalar_lea.vmem %s9, 288
    %v339 = vld [vmem:[%s338] sm:$0xff]
    %v340 = vld [vmem:[%s338 + $0x8] sm:$0xff]
    %v341 = vld [vmem:[%s338 + $0x10] sm:$0xff]
    %v342 = vld [vmem:[%s338 + $0x18] sm:$0xff]
    %v343 = vld [vmem:[%s338 + $0x20] sm:$0xff]
    %v344 = vld [vmem:[%s338 + $0x28] sm:$0xff]
    %v345 = vld [vmem:[%s338 + $0x30] sm:$0xff]
    %v346 = vld [vmem:[%s338 + $0x38] sm:$0xff]
    %v347 = vld [vmem:[%s338 + $0x40] sm:$0xff]
    %v348 = vld [vmem:[%s338 + $0x48] sm:$0xff]
    %v349 = vld [vmem:[%s338 + $0x50] sm:$0xff]
    %v350 = vld [vmem:[%s338 + $0x58] sm:$0xff]
    %s351 = scalar_lea.vmem %s9, 384
    %v352 = vld [vmem:[%s351] sm:$0xff]
    %v353 = vld [vmem:[%s351 + $0x8] sm:$0xff]
    %v354 = vld [vmem:[%s351 + $0x10] sm:$0xff]
    %v355 = vld [vmem:[%s351 + $0x18] sm:$0xff]
    %v356 = vld [vmem:[%s351 + $0x20] sm:$0xff]
    %v357 = vld [vmem:[%s351 + $0x28] sm:$0xff]
    %v358 = vld [vmem:[%s351 + $0x30] sm:$0xff]
    %v359 = vld [vmem:[%s351 + $0x38] sm:$0xff]
    %v360 = vld [vmem:[%s351 + $0x40] sm:$0xff]
    %v361 = vld [vmem:[%s351 + $0x48] sm:$0xff]
    %v362 = vld [vmem:[%s351 + $0x50] sm:$0xff]
    %v363 = vld [vmem:[%s351 + $0x58] sm:$0xff]
    %s364 = scalar_lea.vmem %s9, 480
    %v365 = vld [vmem:[%s364] sm:$0xff]
    %v366 = vld [vmem:[%s364 + $0x8] sm:$0xff]
    %v367 = vld [vmem:[%s364 + $0x10] sm:$0xff]
    %v368 = vld [vmem:[%s364 + $0x18] sm:$0xff]
    %v369 = vld [vmem:[%s364 + $0x20] sm:$0xff]
    %v370 = vld [vmem:[%s364 + $0x28] sm:$0xff]
    %v371 = vld [vmem:[%s364 + $0x30] sm:$0xff]
    %v372 = vld [vmem:[%s364 + $0x38] sm:$0xff]
    %v373 = vld [vmem:[%s364 + $0x40] sm:$0xff]
    %v374 = vld [vmem:[%s364 + $0x48] sm:$0xff]
    %v375 = vld [vmem:[%s364 + $0x50] sm:$0xff]
    %v376 = vld [vmem:[%s364 + $0x58] sm:$0xff]
    %v377 = vld [vmem:[%s2] sm:$0x3]
    %v378 = vld [vmem:[%s6] sm:$0x3]
    %v379 = vld [vmem:[%s0] sm:$0xff]
    %v380 = vld [vmem:[%s0 + $0x8] sm:$0xff]
    %v381 = vld [vmem:[%s0 + $0x10] sm:$0xff]
    %v382 = vld [vmem:[%s0 + $0x18] sm:$0xff]
    %vm387 = vcmask 1046528
    %v388 = vrot.slane %v379, 1
    %v389 = vrot.slane %v380, 1
    %v390 = vsel %vm387, %v388, %v389
    %v391 = vrot.slane %v381, 1
    %v392 = vsel %vm387, %v389, %v391
    %v393 = vrot.slane %v382, 1
    %v394 = vsel %vm387, %v391, %v393
    %vm395 = vcmask 261120
    %v396 = vsel %vm395, %v390, 0
    %v398 = vsel %vm395, %v392, 0
    %v400 = vsel %vm395, %v394, 0
    %v402 = vsel %vm395, %v393, 0
    %404 = vmatprep.subr.mxu0 %v102
    %405 = vmatpush1.msra.mxu0 %v101
    %406 = vmatprep.subr.mxu0 %v104
    %407 = vmatpush1.msra.mxu0 %v103
    %408 = vmatprep.subr.mxu0 %v106
    %409 = vmatpush1.msra.mxu0 %v105
    %410 = vmatprep.subr.mxu0 %v108
    %411 = vmatpush1.msra.mxu0 %v107
    %412 = vmatprep.subr.mxu0 0.0
    %413 = vmatpush1.msra.mxu0 0.0
    %414 = vmatprep.subr.mxu0 0.0
    %415 = vmatpush1.msra.mxu0 0.0
    %416 = vmatprep.subr.mxu0 0.0
    %417 = vmatpush1.msra.mxu0 0.0
    %418 = vmatprep.subr.mxu0 0.0
    %419 = vmatpush1.msra.mxu0 0.0
    %420 = vmatprep.subr.mxu0 0.0
    %421 = vmatpush1.msra.mxu0 0.0
    %422 = vmatprep.subr.mxu0 0.0
    %423 = vmatpush1.msra.mxu0 0.0
    %424 = vmatprep.subr.mxu0 0.0
    %425 = vmatpush1.msra.mxu0 0.0
    %426 = vmatprep.subr.mxu0 0.0
    %427 = vmatpush1.msra.mxu0 0.0
    %428 = vmatprep.subr.mxu0 0.0
    %429 = vmatpush1.msra.mxu0 0.0
    %430 = vmatprep.subr.mxu0 0.0
    %431 = vmatpush1.msra.mxu0 0.0
    %432 = vmatprep.subr.mxu0 0.0
    %433 = vmatpush1.msra.mxu0 0.0
    %434 = vmatprep.subr.mxu0 0.0
    %435 = vmatpush1.msra.mxu0 0.0
    %436 = vmatprep.subr.mxu0 0.0
    %437 = vmatpush1.msra.mxu0 0.0
    %438 = vmatprep.subr.mxu0 0.0
    %439 = vmatpush1.msra.mxu0 0.0
    %440 = vmatprep.subr.mxu0 0.0
    %441 = vmatpush1.msra.mxu0 0.0
    %442 = vmatprep.subr.mxu0 0.0
    %443 = vmatpush1.msra.mxu0 0.0
    %444 = vmatprep.subr.mxu0 0.0
    %445 = vmatpush1.msra.mxu0 0.0
    %446 = vmatprep.subr.mxu0 0.0
    %447 = vmatpush1.msra.mxu0 0.0
    %448 = vmatprep.subr.mxu0 0.0
    %449 = vmatpush1.msra.mxu0 0.0
    %450 = vmatprep.subr.mxu0 0.0
    %451 = vmatpush1.msra.mxu0 0.0
    %452 = vmatprep.subr.mxu0 0.0
    %453 = vmatpush1.msra.mxu0 0.0
    %454 = vmatprep.subr.mxu0 0.0
    %455 = vmatpush1.msra.mxu0 0.0
    %456 = vmatprep.subr.mxu0 0.0
    %457 = vmatpush1.msra.mxu0 0.0
    %458 = vmatprep.subr.mxu0 0.0
    %459 = vmatpush1.msra.mxu0 0.0
    %460 = vmatprep.subr.mxu0 0.0
    %461 = vmatpush1.msra.mxu0 0.0
    %462 = vmatprep.subr.mxu0 0.0
    %463 = vmatpush1.msra.mxu0 0.0
    %464 = vmatprep.subr.mxu0 0.0
    %465 = vmatpush1.msra.mxu0 0.0
    %466 = vmatprep.subr.mxu0 0.0
    %467 = vmatpush1.msra.mxu0 0.0
    %468 = vmatprep.mubr.f32.mxu0 0.0
    %469 = vmatmul.mubr.f32.gmra.mrb[0].mxu0 %v396
    %v470 = vpop.f32.mrb[0].mxu0
    %v471 = vadd.f32 0.0, %v470
    %v472 = vpop.f32.mrb[0].mxu0
    %v473 = vadd.f32 0.0, %v472
    %474 = vmatprep.mubr.f32.mxu0 0.0
    %475 = vmatmul.mubr.f32.gmra.mrb[0].mxu0 %v398
    %v476 = vpop.f32.mrb[0].mxu0
    %v477 = vadd.f32 0.0, %v476
    %v478 = vpop.f32.mrb[0].mxu0
    %v479 = vadd.f32 0.0, %v478
    %480 = vmatprep.mubr.f32.mxu0 0.0
    %481 = vmatmul.mubr.f32.gmra.mrb[0].mxu0 %v400
    %v482 = vpop.f32.mrb[0].mxu0
    %v483 = vadd.f32 0.0, %v482
    %v484 = vpop.f32.mrb[0].mxu0
    %v485 = vadd.f32 0.0, %v484
    %486 = vmatprep.mubr.f32.mxu0 0.0
    %487 = vmatmul.mubr.f32.gmra.mrb[0].mxu0 %v402
    %v488 = vpop.f32.mrb[0].mxu0
    %v489 = vadd.f32 0.0, %v488
    %v490 = vpop.f32.mrb[0].mxu0
    %v491 = vadd.f32 0.0, %v490
    %492 = vdwg.mxu0
    %v493 = vsel %vm395, %v379, 0
    %v495 = vsel %vm395, %v380, 0
    %v497 = vsel %vm395, %v381, 0
    %v499 = vsel %vm395, %v382, 0
    %501 = vmatprep.subr.mxu0 %v93
    %502 = vmatpush1.msra.mxu0 %v92
    %503 = vmatprep.subr.mxu0 %v95
    %504 = vmatpush1.msra.mxu0 %v94
    %505 = vmatprep.subr.mxu0 %v97
    %506 = vmatpush1.msra.mxu0 %v96
    %507 = vmatprep.subr.mxu0 %v99
    %508 = vmatpush1.msra.mxu0 %v98
    %509 = vmatprep.subr.mxu0 0.0
    %510 = vmatpush1.msra.mxu0 0.0
    %511 = vmatprep.subr.mxu0 0.0
    %512 = vmatpush1.msra.mxu0 0.0
    %513 = vmatprep.subr.mxu0 0.0
    %514 = vmatpush1.msra.mxu0 0.0
    %515 = vmatprep.subr.mxu0 0.0
    %516 = vmatpush1.msra.mxu0 0.0
    %517 = vmatprep.subr.mxu0 0.0
    %518 = vmatpush1.msra.mxu0 0.0
    %519 = vmatprep.subr.mxu0 0.0
    %520 = vmatpush1.msra.mxu0 0.0
    %521 = vmatprep.subr.mxu0 0.0
    %522 = vmatpush1.msra.mxu0 0.0
    %523 = vmatprep.subr.mxu0 0.0
    %524 = vmatpush1.msra.mxu0 0.0
    %525 = vmatprep.subr.mxu0 0.0
    %526 = vmatpush1.msra.mxu0 0.0
    %527 = vmatprep.subr.mxu0 0.0
    %528 = vmatpush1.msra.mxu0 0.0
    %529 = vmatprep.subr.mxu0 0.0
    %530 = vmatpush1.msra.mxu0 0.0
    %531 = vmatprep.subr.mxu0 0.0
    %532 = vmatpush1.msra.mxu0 0.0
    %533 = vmatprep.subr.mxu0 0.0
    %534 = vmatpush1.msra.mxu0 0.0
    %535 = vmatprep.subr.mxu0 0.0
    %536 = vmatpush1.msra.mxu0 0.0
    %537 = vmatprep.subr.mxu0 0.0
    %538 = vmatpush1.msra.mxu0 0.0
    %539 = vmatprep.subr.mxu0 0.0
    %540 = vmatpush1.msra.mxu0 0.0
    %541 = vmatprep.subr.mxu0 0.0
    %542 = vmatpush1.msra.mxu0 0.0
    %543 = vmatprep.subr.mxu0 0.0
    %544 = vmatpush1.msra.mxu0 0.0
    %545 = vmatprep.subr.mxu0 0.0
    %546 = vmatpush1.msra.mxu0 0.0
    %547 = vmatprep.subr.mxu0 0.0
    %548 = vmatpush1.msra.mxu0 0.0
    %549 = vmatprep.subr.mxu0 0.0
    %550 = vmatpush1.msra.mxu0 0.0
    %551 = vmatprep.subr.mxu0 0.0
    %552 = vmatpush1.msra.mxu0 0.0
    %553 = vmatprep.subr.mxu0 0.0
    %554 = vmatpush1.msra.mxu0 0.0
    %555 = vmatprep.subr.mxu0 0.0
    %556 = vmatpush1.msra.mxu0 0.0
    %557 = vmatprep.subr.mxu0 0.0
    %558 = vmatpush1.msra.mxu0 0.0
    %559 = vmatprep.subr.mxu0 0.0
    %560 = vmatpush1.msra.mxu0 0.0
    %561 = vmatprep.subr.mxu0 0.0
    %562 = vmatpush1.msra.mxu0 0.0
    %563 = vmatprep.subr.mxu0 0.0
    %564 = vmatpush1.msra.mxu0 0.0
    %565 = vmatprep.mubr.f32.mxu0 0.0
    %566 = vmatmul.mubr.f32.gmra.mrb[0].mxu0 %v493
    %v567 = vpop.f32.mrb[0].mxu0
    %v568 = vadd.f32 %v471, %v567
    %v569 = vpop.f32.mrb[0].mxu0
    %v570 = vadd.f32 %v473, %v569
    %571 = vmatprep.mubr.f32.mxu0 0.0
    %572 = vmatmul.mubr.f32.gmra.mrb[0].mxu0 %v495
    %v573 = vpop.f32.mrb[0].mxu0
    %v574 = vadd.f32 %v477, %v573
    %v575 = vpop.f32.mrb[0].mxu0
    %v576 = vadd.f32 %v479, %v575
    %577 = vmatprep.mubr.f32.mxu0 0.0
    %578 = vmatmul.mubr.f32.gmra.mrb[0].mxu0 %v497
    %v579 = vpop.f32.mrb[0].mxu0
    %v580 = vadd.f32 %v483, %v579
    %v581 = vpop.f32.mrb[0].mxu0
    %v582 = vadd.f32 %v485, %v581
    %583 = vmatprep.mubr.f32.mxu0 0.0
    %584 = vmatmul.mubr.f32.gmra.mrb[0].mxu0 %v499
    %v585 = vpop.f32.mrb[0].mxu0
    %v586 = vadd.f32 %v489, %v585
    %v587 = vpop.f32.mrb[0].mxu0
    %v588 = vadd.f32 %v491, %v587
    %589 = vdwg.mxu0
    %vm590 = vcmask 1045504
    %v591 = vrot.slane %v379, 2
    %v592 = vrot.slane %v380, 2
    %v593 = vsel %vm590, %v591, %v592
    %v594 = vrot.slane %v381, 2
    %v595 = vsel %vm590, %v592, %v594
    %v596 = vrot.slane %v382, 2
    %v597 = vsel %vm590, %v594, %v596
    %v598 = vsel %vm395, %v593, 0
    %v600 = vsel %vm395, %v595, 0
    %v602 = vsel %vm395, %v597, 0
    %v604 = vsel %vm395, %v596, 0
    %606 = vmatprep.subr.mxu0 %v111
    %607 = vmatpush1.msra.mxu0 %v110
    %608 = vmatprep.subr.mxu0 %v113
    %609 = vmatpush1.msra.mxu0 %v112
    %610 = vmatprep.subr.mxu0 %v115
    %611 = vmatpush1.msra.mxu0 %v114
    %612 = vmatprep.subr.mxu0 %v117
    %613 = vmatpush1.msra.mxu0 %v116
    %614 = vmatprep.subr.mxu0 0.0
    %615 = vmatpush1.msra.mxu0 0.0
    %616 = vmatprep.subr.mxu0 0.0
    %617 = vmatpush1.msra.mxu0 0.0
    %618 = vmatprep.subr.mxu0 0.0
    %619 = vmatpush1.msra.mxu0 0.0
    %620 = vmatprep.subr.mxu0 0.0
    %621 = vmatpush1.msra.mxu0 0.0
    %622 = vmatprep.subr.mxu0 0.0
    %623 = vmatpush1.msra.mxu0 0.0
    %624 = vmatprep.subr.mxu0 0.0
    %625 = vmatpush1.msra.mxu0 0.0
    %626 = vmatprep.subr.mxu0 0.0
    %627 = vmatpush1.msra.mxu0 0.0
    %628 = vmatprep.subr.mxu0 0.0
    %629 = vmatpush1.msra.mxu0 0.0
    %630 = vmatprep.subr.mxu0 0.0
    %631 = vmatpush1.msra.mxu0 0.0
    %632 = vmatprep.subr.mxu0 0.0
    %633 = vmatpush1.msra.mxu0 0.0
    %634 = vmatprep.subr.mxu0 0.0
    %635 = vmatpush1.msra.mxu0 0.0
    %636 = vmatprep.subr.mxu0 0.0
    %637 = vmatpush1.msra.mxu0 0.0
    %638 = vmatprep.subr.mxu0 0.0
    %639 = vmatpush1.msra.mxu0 0.0
    %640 = vmatprep.subr.mxu0 0.0
    %641 = vmatpush1.msra.mxu0 0.0
    %642 = vmatprep.subr.mxu0 0.0
    %643 = vmatpush1.msra.mxu0 0.0
    %644 = vmatprep.subr.mxu0 0.0
    %645 = vmatpush1.msra.mxu0 0.0
    %646 = vmatprep.subr.mxu0 0.0
    %647 = vmatpush1.msra.mxu0 0.0
    %648 = vmatprep.subr.mxu0 0.0
    %649 = vmatpush1.msra.mxu0 0.0
    %650 = vmatprep.subr.mxu0 0.0
    %651 = vmatpush1.msra.mxu0 0.0
    %652 = vmatprep.subr.mxu0 0.0
    %653 = vmatpush1.msra.mxu0 0.0
    %654 = vmatprep.subr.mxu0 0.0
    %655 = vmatpush1.msra.mxu0 0.0
    %656 = vmatprep.subr.mxu0 0.0
    %657 = vmatpush1.msra.mxu0 0.0
    %658 = vmatprep.subr.mxu0 0.0
    %659 = vmatpush1.msra.mxu0 0.0
    %660 = vmatprep.subr.mxu0 0.0
    %661 = vmatpush1.msra.mxu0 0.0
    %662 = vmatprep.subr.mxu0 0.0
    %663 = vmatpush1.msra.mxu0 0.0
    %664 = vmatprep.subr.mxu0 0.0
    %665 = vmatpush1.msra.mxu0 0.0
    %666 = vmatprep.subr.mxu0 0.0
    %667 = vmatpush1.msra.mxu0 0.0
    %668 = vmatprep.subr.mxu0 0.0
    %669 = vmatpush1.msra.mxu0 0.0
    %670 = vmatprep.mubr.f32.mxu0 0.0
    %671 = vmatmul.mubr.f32.gmra.mrb[0].mxu0 %v598
    %v672 = vpop.f32.mrb[0].mxu0
    %v673 = vadd.f32 0.0, %v672
    %v674 = vpop.f32.mrb[0].mxu0
    %v675 = vadd.f32 0.0, %v674
    %676 = vmatprep.mubr.f32.mxu0 0.0
    %677 = vmatmul.mubr.f32.gmra.mrb[0].mxu0 %v600
    %v678 = vpop.f32.mrb[0].mxu0
    %v679 = vadd.f32 0.0, %v678
    %v680 = vpop.f32.mrb[0].mxu0
    %v681 = vadd.f32 0.0, %v680
    %682 = vmatprep.mubr.f32.mxu0 0.0
    %683 = vmatmul.mubr.f32.gmra.mrb[0].mxu0 %v602
    %v684 = vpop.f32.mrb[0].mxu0
    %v685 = vadd.f32 0.0, %v684
    %v686 = vpop.f32.mrb[0].mxu0
    %v687 = vadd.f32 0.0, %v686
    %688 = vmatprep.mubr.f32.mxu0 0.0
    %689 = vmatmul.mubr.f32.gmra.mrb[0].mxu0 %v604
    %v690 = vpop.f32.mrb[0].mxu0
    %v691 = vadd.f32 0.0, %v690
    %v692 = vpop.f32.mrb[0].mxu0
    %v693 = vadd.f32 0.0, %v692
    %694 = vdwg.mxu0
    %v695 = vadd.f32 %v568, %v673
    %v696 = vadd.f32 %v570, %v675
    %v697 = vadd.f32 %v574, %v679
    %v698 = vadd.f32 %v576, %v681
    %v699 = vadd.f32 %v580, %v685
    %v700 = vadd.f32 %v582, %v687
    %v701 = vadd.f32 %v586, %v691
    %v702 = vadd.f32 %v588, %v693
    %v704 = vlaneseq
    %v705 = vshrl.u32 %v704, 7
    %v706 = vsub.s32 0, %v705
    %v707 = vrot.slane %v377, %v706
    %v708 = vlaneseq
    %v709 = vshrl.u32 %v708, 7
    %v710 = vsub.s32 1, %v709
    %v711 = vrot.slane %v377, %v710
    %v714 = vadd.f32 %v695, %v707
    %v715 = vadd.f32 %v696, %v711
    %v716 = vadd.f32 %v697, %v707
    %v717 = vadd.f32 %v698, %v711
    %v718 = vadd.f32 %v699, %v707
    %v719 = vadd.f32 %v700, %v711
    %v720 = vadd.f32 %v701, %v707
    %v721 = vadd.f32 %v702, %v711
    %v722 = vmax.f32 %v714, 0.0
    %v723 = vmax.f32 %v715, 0.0
    %v724 = vmax.f32 %v716, 0.0
    %v725 = vmax.f32 %v717, 0.0
    %v726 = vmax.f32 %v718, 0.0
    %v727 = vmax.f32 %v719, 0.0
    %v728 = vmax.f32 %v720, 0.0
    %v729 = vmax.f32 %v721, 0.0
    %vm730 = vcmask 244736
    %v732 = vsel %vm730, %v118, 0
    %v735 = vsel %vm730, %v119, 0
    %v738 = vsel %vm590, %v728, 0
    %v741 = vsel %vm590, %v729, 0
    %743 = vmatprep.subr.mxu0 %v723
    %744 = vmatpush1.msra.mxu0 %v722
    %745 = vmatprep.subr.mxu0 %v725
    %746 = vmatpush1.msra.mxu0 %v724
    %747 = vmatprep.subr.mxu0 %v727
    %748 = vmatpush1.msra.mxu0 %v726
    %749 = vmatprep.subr.mxu0 %v741
    %750 = vmatpush1.msra.mxu0 %v738
    %751 = vmatprep.subr.mxu0 0.0
    %752 = vmatpush1.msra.mxu0 0.0
    %753 = vmatprep.subr.mxu0 0.0
    %754 = vmatpush1.msra.mxu0 0.0
    %755 = vmatprep.subr.mxu0 0.0
    %756 = vmatpush1.msra.mxu0 0.0
    %757 = vmatprep.subr.mxu0 0.0
    %758 = vmatpush1.msra.mxu0 0.0
    %759 = vmatprep.subr.mxu0 0.0
    %760 = vmatpush1.msra.mxu0 0.0
    %761 = vmatprep.subr.mxu0 0.0
    %762 = vmatpush1.msra.mxu0 0.0
    %763 = vmatprep.subr.mxu0 0.0
    %764 = vmatpush1.msra.mxu0 0.0
    %765 = vmatprep.subr.mxu0 0.0
    %766 = vmatpush1.msra.mxu0 0.0
    %767 = vmatprep.subr.mxu0 0.0
    %768 = vmatpush1.msra.mxu0 0.0
    %769 = vmatprep.subr.mxu0 0.0
    %770 = vmatpush1.msra.mxu0 0.0
    %771 = vmatprep.subr.mxu0 0.0
    %772 = vmatpush1.msra.mxu0 0.0
    %773 = vmatprep.subr.mxu0 0.0
    %774 = vmatpush1.msra.mxu0 0.0
    %775 = vmatprep.subr.mxu0 0.0
    %776 = vmatpush1.msra.mxu0 0.0
    %777 = vmatprep.subr.mxu0 0.0
    %778 = vmatpush1.msra.mxu0 0.0
    %779 = vmatprep.subr.mxu0 0.0
    %780 = vmatpush1.msra.mxu0 0.0
    %781 = vmatprep.subr.mxu0 0.0
    %782 = vmatpush1.msra.mxu0 0.0
    %783 = vmatprep.subr.mxu0 0.0
    %784 = vmatpush1.msra.mxu0 0.0
    %785 = vmatprep.subr.mxu0 0.0
    %786 = vmatpush1.msra.mxu0 0.0
    %787 = vmatprep.subr.mxu0 0.0
    %788 = vmatpush1.msra.mxu0 0.0
    %789 = vmatprep.subr.mxu0 0.0
    %790 = vmatpush1.msra.mxu0 0.0
    %791 = vmatprep.subr.mxu0 0.0
    %792 = vmatpush1.msra.mxu0 0.0
    %793 = vmatprep.subr.mxu0 0.0
    %794 = vmatpush1.msra.mxu0 0.0
    %795 = vmatprep.subr.mxu0 0.0
    %796 = vmatpush1.msra.mxu0 0.0
    %797 = vmatprep.subr.mxu0 0.0
    %798 = vmatpush1.msra.mxu0 0.0
    %799 = vmatprep.subr.mxu0 0.0
    %800 = vmatpush1.msra.mxu0 0.0
    %801 = vmatprep.subr.mxu0 0.0
    %802 = vmatpush1.msra.mxu0 0.0
    %803 = vmatprep.subr.mxu0 0.0
    %804 = vmatpush1.msra.mxu0 0.0
    %805 = vmatprep.subr.mxu0 0.0
    %806 = vmatpush1.msra.mxu0 0.0
    %807 = vmatprep.mubr.f32.mxu0 0.0
    %808 = vmatmul.mubr.f32.gmra.mrb[0].mxu0 %v732
    %v809 = vpop.f32.mrb[0].mxu0
    %v810 = vadd.f32 0.0, %v809
    %v811 = vpop.f32.mrb[0].mxu0
    %v812 = vadd.f32 0.0, %v811
    %813 = vmatprep.mubr.f32.mxu0 0.0
    %814 = vmatmul.mubr.f32.gmra.mrb[0].mxu0 %v735
    %v815 = vpop.f32.mrb[0].mxu0
    %v816 = vadd.f32 0.0, %v815
    %v817 = vpop.f32.mrb[0].mxu0
    %v818 = vadd.f32 0.0, %v817
    %819 = vdwg.mxu0
    %v821 = vsel %vm730, %v121, 0
    %v824 = vsel %vm730, %v122, 0
    %826 = vmatprep.subr.mxu0 %v723
    %827 = vmatpush1.msra.mxu0 %v722
    %828 = vmatprep.subr.mxu0 %v725
    %829 = vmatpush1.msra.mxu0 %v724
    %830 = vmatprep.subr.mxu0 %v727
    %831 = vmatpush1.msra.mxu0 %v726
    %832 = vmatprep.subr.mxu0 %v741
    %833 = vmatpush1.msra.mxu0 %v738
    %834 = vmatprep.subr.mxu0 0.0
    %835 = vmatpush1.msra.mxu0 0.0
    %836 = vmatprep.subr.mxu0 0.0
    %837 = vmatpush1.msra.mxu0 0.0
    %838 = vmatprep.subr.mxu0 0.0
    %839 = vmatpush1.msra.mxu0 0.0
    %840 = vmatprep.subr.mxu0 0.0
    %841 = vmatpush1.msra.mxu0 0.0
    %842 = vmatprep.subr.mxu0 0.0
    %843 = vmatpush1.msra.mxu0 0.0
    %844 = vmatprep.subr.mxu0 0.0
    %845 = vmatpush1.msra.mxu0 0.0
    %846 = vmatprep.subr.mxu0 0.0
    %847 = vmatpush1.msra.mxu0 0.0
    %848 = vmatprep.subr.mxu0 0.0
    %849 = vmatpush1.msra.mxu0 0.0
    %850 = vmatprep.subr.mxu0 0.0
    %851 = vmatpush1.msra.mxu0 0.0
    %852 = vmatprep.subr.mxu0 0.0
    %853 = vmatpush1.msra.mxu0 0.0
    %854 = vmatprep.subr.mxu0 0.0
    %855 = vmatpush1.msra.mxu0 0.0
    %856 = vmatprep.subr.mxu0 0.0
    %857 = vmatpush1.msra.mxu0 0.0
    %858 = vmatprep.subr.mxu0 0.0
    %859 = vmatpush1.msra.mxu0 0.0
    %860 = vmatprep.subr.mxu0 0.0
    %861 = vmatpush1.msra.mxu0 0.0
    %862 = vmatprep.subr.mxu0 0.0
    %863 = vmatpush1.msra.mxu0 0.0
    %864 = vmatprep.subr.mxu0 0.0
    %865 = vmatpush1.msra.mxu0 0.0
    %866 = vmatprep.subr.mxu0 0.0
    %867 = vmatpush1.msra.mxu0 0.0
    %868 = vmatprep.subr.mxu0 0.0
    %869 = vmatpush1.msra.mxu0 0.0
    %870 = vmatprep.subr.mxu0 0.0
    %871 = vmatpush1.msra.mxu0 0.0
    %872 = vmatprep.subr.mxu0 0.0
    %873 = vmatpush1.msra.mxu0 0.0
    %874 = vmatprep.subr.mxu0 0.0
    %875 = vmatpush1.msra.mxu0 0.0
    %876 = vmatprep.subr.mxu0 0.0
    %877 = vmatpush1.msra.mxu0 0.0
    %878 = vmatprep.subr.mxu0 0.0
    %879 = vmatpush1.msra.mxu0 0.0
    %880 = vmatprep.subr.mxu0 0.0
    %881 = vmatpush1.msra.mxu0 0.0
    %882 = vmatprep.subr.mxu0 0.0
    %883 = vmatpush1.msra.mxu0 0.0
    %884 = vmatprep.subr.mxu0 0.0
    %885 = vmatpush1.msra.mxu0 0.0
    %886 = vmatprep.subr.mxu0 0.0
    %887 = vmatpush1.msra.mxu0 0.0
    %888 = vmatprep.subr.mxu0 0.0
    %889 = vmatpush1.msra.mxu0 0.0
    %890 = vmatprep.mubr.f32.mxu0 0.0
    %891 = vmatmul.mubr.f32.gmra.mrb[0].mxu0 %v821
    %v892 = vpop.f32.mrb[0].mxu0
    %v893 = vadd.f32 0.0, %v892
    %v894 = vpop.f32.mrb[0].mxu0
    %v895 = vadd.f32 0.0, %v894
    %896 = vmatprep.mubr.f32.mxu0 0.0
    %897 = vmatmul.mubr.f32.gmra.mrb[0].mxu0 %v824
    %v898 = vpop.f32.mrb[0].mxu0
    %v899 = vadd.f32 0.0, %v898
    %v900 = vpop.f32.mrb[0].mxu0
    %v901 = vadd.f32 0.0, %v900
    %902 = vdwg.mxu0
    %v903 = vmax.f32 %v810, %v893
    %v904 = vmax.f32 %v812, %v895
    %v905 = vmax.f32 %v816, %v899
    %v906 = vmax.f32 %v818, %v901
    %vm907 = vcmask 424960
    %v909 = vsel %vm907, %v904, 0
    %v912 = vsel %vm907, %v906, 0
    %vm914 = vcmask 1043456
    %v916 = vsel %vm914, %v145, 0
    %918 = vmatprep.subr.mxu0 0.0
    %919 = vmatpush1.msra.mxu0 %v123
    %920 = vmatprep.subr.mxu0 0.0
    %921 = vmatpush1.msra.mxu0 %v124
    %922 = vmatprep.subr.mxu0 0.0
    %923 = vmatpush1.msra.mxu0 %v125
    %924 = vmatprep.subr.mxu0 0.0
    %925 = vmatpush1.msra.mxu0 %v126
    %926 = vmatprep.subr.mxu0 0.0
    %927 = vmatpush1.msra.mxu0 %v127
    %928 = vmatprep.subr.mxu0 0.0
    %929 = vmatpush1.msra.mxu0 %v128
    %930 = vmatprep.subr.mxu0 0.0
    %931 = vmatpush1.msra.mxu0 %v129
    %932 = vmatprep.subr.mxu0 0.0
    %933 = vmatpush1.msra.mxu0 %v130
    %934 = vmatprep.subr.mxu0 0.0
    %935 = vmatpush1.msra.mxu0 %v131
    %936 = vmatprep.subr.mxu0 0.0
    %937 = vmatpush1.msra.mxu0 %v132
    %938 = vmatprep.subr.mxu0 0.0
    %939 = vmatpush1.msra.mxu0 %v133
    %940 = vmatprep.subr.mxu0 0.0
    %941 = vmatpush1.msra.mxu0 %v134
    %942 = vmatprep.subr.mxu0 0.0
    %943 = vmatpush1.msra.mxu0 %v135
    %944 = vmatprep.subr.mxu0 0.0
    %945 = vmatpush1.msra.mxu0 %v136
    %946 = vmatprep.subr.mxu0 0.0
    %947 = vmatpush1.msra.mxu0 %v137
    %948 = vmatprep.subr.mxu0 0.0
    %949 = vmatpush1.msra.mxu0 %v138
    %950 = vmatprep.subr.mxu0 0.0
    %951 = vmatpush1.msra.mxu0 %v139
    %952 = vmatprep.subr.mxu0 0.0
    %953 = vmatpush1.msra.mxu0 %v140
    %954 = vmatprep.subr.mxu0 0.0
    %955 = vmatpush1.msra.mxu0 %v141
    %956 = vmatprep.subr.mxu0 0.0
    %957 = vmatpush1.msra.mxu0 %v142
    %958 = vmatprep.subr.mxu0 0.0
    %959 = vmatpush1.msra.mxu0 %v143
    %960 = vmatprep.subr.mxu0 0.0
    %961 = vmatpush1.msra.mxu0 %v144
    %962 = vmatprep.subr.mxu0 0.0
    %963 = vmatpush1.msra.mxu0 %v916
    %964 = vmatprep.subr.mxu0 0.0
    %965 = vmatpush1.msra.mxu0 0.0
    %966 = vmatprep.subr.mxu0 0.0
    %967 = vmatpush1.msra.mxu0 0.0
    %968 = vmatprep.subr.mxu0 0.0
    %969 = vmatpush1.msra.mxu0 0.0
    %970 = vmatprep.subr.mxu0 0.0
    %971 = vmatpush1.msra.mxu0 0.0
    %972 = vmatprep.subr.mxu0 0.0
    %973 = vmatpush1.msra.mxu0 0.0
    %974 = vmatprep.subr.mxu0 0.0
    %975 = vmatpush1.msra.mxu0 0.0
    %976 = vmatprep.subr.mxu0 0.0
    %977 = vmatpush1.msra.mxu0 0.0
    %978 = vmatprep.subr.mxu0 0.0
    %979 = vmatpush1.msra.mxu0 0.0
    %980 = vmatprep.subr.mxu0 0.0
    %981 = vmatpush1.msra.mxu0 0.0
    %982 = vmatprep.mubr.f32.mxu0 %v909
    %983 = vmatmul.mubr.f32.gmra.mrb[0].mxu0 %v903
    %v984 = vpop.f32.mrb[0].mxu0
    %v985 = vadd.f32 0.0, %v984
    %v986 = vpop.f32.mrb[0].mxu0
    %987 = vmatprep.mubr.f32.mxu0 %v912
    %988 = vmatmul.mubr.f32.gmra.mrb[0].mxu0 %v905
    %v989 = vpop.f32.mrb[0].mxu0
    %v990 = vadd.f32 0.0, %v989
    %v991 = vpop.f32.mrb[0].mxu0
    %992 = vdwg.mxu0
    %v994 = vsel %vm914, %v169, 0
    %996 = vmatprep.subr.mxu0 0.0
    %997 = vmatpush1.msra.mxu0 %v147
    %998 = vmatprep.subr.mxu0 0.0
    %999 = vmatpush1.msra.mxu0 %v148
    %1000 = vmatprep.subr.mxu0 0.0
    %1001 = vmatpush1.msra.mxu0 %v149
    %1002 = vmatprep.subr.mxu0 0.0
    %1003 = vmatpush1.msra.mxu0 %v150
    %1004 = vmatprep.subr.mxu0 0.0
    %1005 = vmatpush1.msra.mxu0 %v151
    %1006 = vmatprep.subr.mxu0 0.0
    %1007 = vmatpush1.msra.mxu0 %v152
    %1008 = vmatprep.subr.mxu0 0.0
    %1009 = vmatpush1.msra.mxu0 %v153
    %1010 = vmatprep.subr.mxu0 0.0
    %1011 = vmatpush1.msra.mxu0 %v154
    %1012 = vmatprep.subr.mxu0 0.0
    %1013 = vmatpush1.msra.mxu0 %v155
    %1014 = vmatprep.subr.mxu0 0.0
    %1015 = vmatpush1.msra.mxu0 %v156
    %1016 = vmatprep.subr.mxu0 0.0
    %1017 = vmatpush1.msra.mxu0 %v157
    %1018 = vmatprep.subr.mxu0 0.0
    %1019 = vmatpush1.msra.mxu0 %v158
    %1020 = vmatprep.subr.mxu0 0.0
    %1021 = vmatpush1.msra.mxu0 %v159
    %1022 = vmatprep.subr.mxu0 0.0
    %1023 = vmatpush1.msra.mxu0 %v160
    %1024 = vmatprep.subr.mxu0 0.0
    %1025 = vmatpush1.msra.mxu0 %v161
    %1026 = vmatprep.subr.mxu0 0.0
    %1027 = vmatpush1.msra.mxu0 %v162
    %1028 = vmatprep.subr.mxu0 0.0
    %1029 = vmatpush1.msra.mxu0 %v163
    %1030 = vmatprep.subr.mxu0 0.0
    %1031 = vmatpush1.msra.mxu0 %v164
    %1032 = vmatprep.subr.mxu0 0.0
    %1033 = vmatpush1.msra.mxu0 %v165
    %1034 = vmatprep.subr.mxu0 0.0
    %1035 = vmatpush1.msra.mxu0 %v166
    %1036 = vmatprep.subr.mxu0 0.0
    %1037 = vmatpush1.msra.mxu0 %v167
    %1038 = vmatprep.subr.mxu0 0.0
    %1039 = vmatpush1.msra.mxu0 %v168
    %1040 = vmatprep.subr.mxu0 0.0
    %1041 = vmatpush1.msra.mxu0 %v994
    %1042 = vmatprep.subr.mxu0 0.0
    %1043 = vmatpush1.msra.mxu0 0.0
    %1044 = vmatprep.subr.mxu0 0.0
    %1045 = vmatpush1.msra.mxu0 0.0
    %1046 = vmatprep.subr.mxu0 0.0
    %1047 = vmatpush1.msra.mxu0 0.0
    %1048 = vmatprep.subr.mxu0 0.0
    %1049 = vmatpush1.msra.mxu0 0.0
    %1050 = vmatprep.subr.mxu0 0.0
    %1051 = vmatpush1.msra.mxu0 0.0
    %1052 = vmatprep.subr.mxu0 0.0
    %1053 = vmatpush1.msra.mxu0 0.0
    %1054 = vmatprep.subr.mxu0 0.0
    %1055 = vmatpush1.msra.mxu0 0.0
    %1056 = vmatprep.subr.mxu0 0.0
    %1057 = vmatpush1.msra.mxu0 0.0
    %1058 = vmatprep.subr.mxu0 0.0
    %1059 = vmatpush1.msra.mxu0 0.0
    %1060 = vmatprep.mubr.f32.mxu0 %v909
    %1061 = vmatmul.mubr.f32.gmra.mrb[0].mxu0 %v903
    %v1062 = vpop.f32.mrb[0].mxu0
    %v1063 = vadd.f32 0.0, %v1062
    %v1064 = vpop.f32.mrb[0].mxu0
    %1065 = vmatprep.mubr.f32.mxu0 %v912
    %1066 = vmatmul.mubr.f32.gmra.mrb[0].mxu0 %v905
    %v1067 = vpop.f32.mrb[0].mxu0
    %v1068 = vadd.f32 0.0, %v1067
    %v1069 = vpop.f32.mrb[0].mxu0
    %1070 = vdwg.mxu0
    %v1071 = vmax.f32 %v985, %v1063
    %v1072 = vmax.f32 %v990, %v1068
    %v1075 = vrot.slane %v1071, 1
    %v1076 = vrot.slane %v1072, 1
    %v1077 = vsel %vm387, %v1075, %v1076
    %vm1078 = vcmask 736256
    %v1079 = vsel %vm1078, %v1077, 0
    %v1081 = vsel %vm1078, %v1076, 0
    %vm1083 = vcmask 1041408
    %v1085 = vsel %vm1083, %v217, 0
    %v1088 = vsel %vm1083, %v218, 0
    %1090 = vmatprep.subr.mxu0 %v196
    %1091 = vmatpush1.msra.mxu0 %v195
    %1092 = vmatprep.subr.mxu0 %v198
    %1093 = vmatpush1.msra.mxu0 %v197
    %1094 = vmatprep.subr.mxu0 %v200
    %1095 = vmatpush1.msra.mxu0 %v199
    %1096 = vmatprep.subr.mxu0 %v202
    %1097 = vmatpush1.msra.mxu0 %v201
    %1098 = vmatprep.subr.mxu0 %v204
    %1099 = vmatpush1.msra.mxu0 %v203
    %1100 = vmatprep.subr.mxu0 %v206
    %1101 = vmatpush1.msra.mxu0 %v205
    %1102 = vmatprep.subr.mxu0 %v208
    %1103 = vmatpush1.msra.mxu0 %v207
    %1104 = vmatprep.subr.mxu0 %v210
    %1105 = vmatpush1.msra.mxu0 %v209
    %1106 = vmatprep.subr.mxu0 %v212
    %1107 = vmatpush1.msra.mxu0 %v211
    %1108 = vmatprep.subr.mxu0 %v214
    %1109 = vmatpush1.msra.mxu0 %v213
    %1110 = vmatprep.subr.mxu0 %v216
    %1111 = vmatpush1.msra.mxu0 %v215
    %1112 = vmatprep.subr.mxu0 %v1088
    %1113 = vmatpush1.msra.mxu0 %v1085
    %1114 = vmatprep.subr.mxu0 0.0
    %1115 = vmatpush1.msra.mxu0 0.0
    %1116 = vmatprep.subr.mxu0 0.0
    %1117 = vmatpush1.msra.mxu0 0.0
    %1118 = vmatprep.subr.mxu0 0.0
    %1119 = vmatpush1.msra.mxu0 0.0
    %1120 = vmatprep.subr.mxu0 0.0
    %1121 = vmatpush1.msra.mxu0 0.0
    %1122 = vmatprep.subr.mxu0 0.0
    %1123 = vmatpush1.msra.mxu0 0.0
    %1124 = vmatprep.subr.mxu0 0.0
    %1125 = vmatpush1.msra.mxu0 0.0
    %1126 = vmatprep.subr.mxu0 0.0
    %1127 = vmatpush1.msra.mxu0 0.0
    %1128 = vmatprep.subr.mxu0 0.0
    %1129 = vmatpush1.msra.mxu0 0.0
    %1130 = vmatprep.subr.mxu0 0.0
    %1131 = vmatpush1.msra.mxu0 0.0
    %1132 = vmatprep.subr.mxu0 0.0
    %1133 = vmatpush1.msra.mxu0 0.0
    %1134 = vmatprep.subr.mxu0 0.0
    %1135 = vmatpush1.msra.mxu0 0.0
    %1136 = vmatprep.subr.mxu0 0.0
    %1137 = vmatpush1.msra.mxu0 0.0
    %1138 = vmatprep.subr.mxu0 0.0
    %1139 = vmatpush1.msra.mxu0 0.0
    %1140 = vmatprep.subr.mxu0 0.0
    %1141 = vmatpush1.msra.mxu0 0.0
    %1142 = vmatprep.subr.mxu0 0.0
    %1143 = vmatpush1.msra.mxu0 0.0
    %1144 = vmatprep.subr.mxu0 0.0
    %1145 = vmatpush1.msra.mxu0 0.0
    %1146 = vmatprep.subr.mxu0 0.0
    %1147 = vmatpush1.msra.mxu0 0.0
    %1148 = vmatprep.subr.mxu0 0.0
    %1149 = vmatpush1.msra.mxu0 0.0
    %1150 = vmatprep.subr.mxu0 0.0
    %1151 = vmatpush1.msra.mxu0 0.0
    %1152 = vmatprep.subr.mxu0 0.0
    %1153 = vmatpush1.msra.mxu0 0.0
    %1154 = vmatprep.mubr.f32.mxu0 0.0
    %1155 = vmatmul.mubr.f32.gmra.mrb[0].mxu0 %v1079
    %v1156 = vpop.f32.mrb[0].mxu0
    %v1157 = vadd.f32 0.0, %v1156
    %v1158 = vpop.f32.mrb[0].mxu0
    %v1159 = vadd.f32 0.0, %v1158
    %1160 = vmatprep.mubr.f32.mxu0 0.0
    %1161 = vmatmul.mubr.f32.gmra.mrb[0].mxu0 %v1081
    %v1162 = vpop.f32.mrb[0].mxu0
    %v1163 = vadd.f32 0.0, %v1162
    %v1164 = vpop.f32.mrb[0].mxu0
    %v1165 = vadd.f32 0.0, %v1164
    %1166 = vdwg.mxu0
    %v1167 = vsel %vm1078, %v1071, 0
    %v1169 = vsel %vm1078, %v1072, 0
    %v1172 = vsel %vm1083, %v192, 0
    %v1175 = vsel %vm1083, %v193, 0
    %1177 = vmatprep.subr.mxu0 %v171
    %1178 = vmatpush1.msra.mxu0 %v170
    %1179 = vmatprep.subr.mxu0 %v173
    %1180 = vmatpush1.msra.mxu0 %v172
    %1181 = vmatprep.subr.mxu0 %v175
    %1182 = vmatpush1.msra.mxu0 %v174
    %1183 = vmatprep.subr.mxu0 %v177
    %1184 = vmatpush1.msra.mxu0 %v176
    %1185 = vmatprep.subr.mxu0 %v179
    %1186 = vmatpush1.msra.mxu0 %v178
    %1187 = vmatprep.subr.mxu0 %v181
    %1188 = vmatpush1.msra.mxu0 %v180
    %1189 = vmatprep.subr.mxu0 %v183
    %1190 = vmatpush1.msra.mxu0 %v182
    %1191 = vmatprep.subr.mxu0 %v185
    %1192 = vmatpush1.msra.mxu0 %v184
    %1193 = vmatprep.subr.mxu0 %v187
    %1194 = vmatpush1.msra.mxu0 %v186
    %1195 = vmatprep.subr.mxu0 %v189
    %1196 = vmatpush1.msra.mxu0 %v188
    %1197 = vmatprep.subr.mxu0 %v191
    %1198 = vmatpush1.msra.mxu0 %v190
    %1199 = vmatprep.subr.mxu0 %v1175
    %1200 = vmatpush1.msra.mxu0 %v1172
    %1201 = vmatprep.subr.mxu0 0.0
    %1202 = vmatpush1.msra.mxu0 0.0
    %1203 = vmatprep.subr.mxu0 0.0
    %1204 = vmatpush1.msra.mxu0 0.0
    %1205 = vmatprep.subr.mxu0 0.0
    %1206 = vmatpush1.msra.mxu0 0.0
    %1207 = vmatprep.subr.mxu0 0.0
    %1208 = vmatpush1.msra.mxu0 0.0
    %1209 = vmatprep.subr.mxu0 0.0
    %1210 = vmatpush1.msra.mxu0 0.0
    %1211 = vmatprep.subr.mxu0 0.0
    %1212 = vmatpush1.msra.mxu0 0.0
    %1213 = vmatprep.subr.mxu0 0.0
    %1214 = vmatpush1.msra.mxu0 0.0
    %1215 = vmatprep.subr.mxu0 0.0
    %1216 = vmatpush1.msra.mxu0 0.0
    %1217 = vmatprep.subr.mxu0 0.0
    %1218 = vmatpush1.msra.mxu0 0.0
    %1219 = vmatprep.subr.mxu0 0.0
    %1220 = vmatpush1.msra.mxu0 0.0
    %1221 = vmatprep.subr.mxu0 0.0
    %1222 = vmatpush1.msra.mxu0 0.0
    %1223 = vmatprep.subr.mxu0 0.0
    %1224 = vmatpush1.msra.mxu0 0.0
    %1225 = vmatprep.subr.mxu0 0.0
    %1226 = vmatpush1.msra.mxu0 0.0
    %1227 = vmatprep.subr.mxu0 0.0
    %1228 = vmatpush1.msra.mxu0 0.0
    %1229 = vmatprep.subr.mxu0 0.0
    %1230 = vmatpush1.msra.mxu0 0.0
    %1231 = vmatprep.subr.mxu0 0.0
    %1232 = vmatpush1.msra.mxu0 0.0
    %1233 = vmatprep.subr.mxu0 0.0
    %1234 = vmatpush1.msra.mxu0 0.0
    %1235 = vmatprep.subr.mxu0 0.0
    %1236 = vmatpush1.msra.mxu0 0.0
    %1237 = vmatprep.subr.mxu0 0.0
    %1238 = vmatpush1.msra.mxu0 0.0
    %1239 = vmatprep.subr.mxu0 0.0
    %1240 = vmatpush1.msra.mxu0 0.0
    %1241 = vmatprep.mubr.f32.mxu0 0.0
    %1242 = vmatmul.mubr.f32.gmra.mrb[0].mxu0 %v1167
    %v1243 = vpop.f32.mrb[0].mxu0
    %v1244 = vadd.f32 %v1157, %v1243
    %v1245 = vpop.f32.mrb[0].mxu0
    %v1246 = vadd.f32 %v1159, %v1245
    %1247 = vmatprep.mubr.f32.mxu0 0.0
    %1248 = vmatmul.mubr.f32.gmra.mrb[0].mxu0 %v1169
    %v1249 = vpop.f32.mrb[0].mxu0
    %v1250 = vadd.f32 %v1163, %v1249
    %v1251 = vpop.f32.mrb[0].mxu0
    %v1252 = vadd.f32 %v1165, %v1251
    %1253 = vdwg.mxu0
    %v1254 = vrot.slane %v1071, 2
    %v1255 = vrot.slane %v1072, 2
    %v1256 = vsel %vm590, %v1254, %v1255
    %v1257 = vsel %vm1078, %v1256, 0
    %v1259 = vsel %vm1078, %v1255, 0
    %v1262 = vsel %vm1083, %v242, 0
    %v1265 = vsel %vm1083, %v243, 0
    %1267 = vmatprep.subr.mxu0 %v221
    %1268 = vmatpush1.msra.mxu0 %v220
    %1269 = vmatprep.subr.mxu0 %v223
    %1270 = vmatpush1.msra.mxu0 %v222
    %1271 = vmatprep.subr.mxu0 %v225
    %1272 = vmatpush1.msra.mxu0 %v224
    %1273 = vmatprep.subr.mxu0 %v227
    %1274 = vmatpush1.msra.mxu0 %v226
    %1275 = vmatprep.subr.mxu0 %v229
    %1276 = vmatpush1.msra.mxu0 %v228
    %1277 = vmatprep.subr.mxu0 %v231
    %1278 = vmatpush1.msra.mxu0 %v230
    %1279 = vmatprep.subr.mxu0 %v233
    %1280 = vmatpush1.msra.mxu0 %v232
    %1281 = vmatprep.subr.mxu0 %v235
    %1282 = vmatpush1.msra.mxu0 %v234
    %1283 = vmatprep.subr.mxu0 %v237
    %1284 = vmatpush1.msra.mxu0 %v236
    %1285 = vmatprep.subr.mxu0 %v239
    %1286 = vmatpush1.msra.mxu0 %v238
    %1287 = vmatprep.subr.mxu0 %v241
    %1288 = vmatpush1.msra.mxu0 %v240
    %1289 = vmatprep.subr.mxu0 %v1265
    %1290 = vmatpush1.msra.mxu0 %v1262
    %1291 = vmatprep.subr.mxu0 0.0
    %1292 = vmatpush1.msra.mxu0 0.0
    %1293 = vmatprep.subr.mxu0 0.0
    %1294 = vmatpush1.msra.mxu0 0.0
    %1295 = vmatprep.subr.mxu0 0.0
    %1296 = vmatpush1.msra.mxu0 0.0
    %1297 = vmatprep.subr.mxu0 0.0
    %1298 = vmatpush1.msra.mxu0 0.0
    %1299 = vmatprep.subr.mxu0 0.0
    %1300 = vmatpush1.msra.mxu0 0.0
    %1301 = vmatprep.subr.mxu0 0.0
    %1302 = vmatpush1.msra.mxu0 0.0
    %1303 = vmatprep.subr.mxu0 0.0
    %1304 = vmatpush1.msra.mxu0 0.0
    %1305 = vmatprep.subr.mxu0 0.0
    %1306 = vmatpush1.msra.mxu0 0.0
    %1307 = vmatprep.subr.mxu0 0.0
    %1308 = vmatpush1.msra.mxu0 0.0
    %1309 = vmatprep.subr.mxu0 0.0
    %1310 = vmatpush1.msra.mxu0 0.0
    %1311 = vmatprep.subr.mxu0 0.0
    %1312 = vmatpush1.msra.mxu0 0.0
    %1313 = vmatprep.subr.mxu0 0.0
    %1314 = vmatpush1.msra.mxu0 0.0
    %1315 = vmatprep.subr.mxu0 0.0
    %1316 = vmatpush1.msra.mxu0 0.0
    %1317 = vmatprep.subr.mxu0 0.0
    %1318 = vmatpush1.msra.mxu0 0.0
    %1319 = vmatprep.subr.mxu0 0.0
    %1320 = vmatpush1.msra.mxu0 0.0
    %1321 = vmatprep.subr.mxu0 0.0
    %1322 = vmatpush1.msra.mxu0 0.0
    %1323 = vmatprep.subr.mxu0 0.0
    %1324 = vmatpush1.msra.mxu0 0.0
    %1325 = vmatprep.subr.mxu0 0.0
    %1326 = vmatpush1.msra.mxu0 0.0
    %1327 = vmatprep.subr.mxu0 0.0
    %1328 = vmatpush1.msra.mxu0 0.0
    %1329 = vmatprep.subr.mxu0 0.0
    %1330 = vmatpush1.msra.mxu0 0.0
    %1331 = vmatprep.mubr.f32.mxu0 0.0
    %1332 = vmatmul.mubr.f32.gmra.mrb[0].mxu0 %v1257
    %v1333 = vpop.f32.mrb[0].mxu0
    %v1334 = vadd.f32 0.0, %v1333
    %v1335 = vpop.f32.mrb[0].mxu0
    %v1336 = vadd.f32 0.0, %v1335
    %1337 = vmatprep.mubr.f32.mxu0 0.0
    %1338 = vmatmul.mubr.f32.gmra.mrb[0].mxu0 %v1259
    %v1339 = vpop.f32.mrb[0].mxu0
    %v1340 = vadd.f32 0.0, %v1339
    %v1341 = vpop.f32.mrb[0].mxu0
    %v1342 = vadd.f32 0.0, %v1341
    %1343 = vdwg.mxu0
    %v1344 = vadd.f32 %v1244, %v1334
    %v1345 = vadd.f32 %v1246, %v1336
    %v1346 = vadd.f32 %v1250, %v1340
    %v1347 = vadd.f32 %v1252, %v1342
    %v1349 = vlaneseq
    %v1350 = vshrl.u32 %v1349, 7
    %v1351 = vsub.s32 0, %v1350
    %v1352 = vrot.slane %v378, %v1351
    %v1353 = vlaneseq
    %v1354 = vshrl.u32 %v1353, 7
    %v1355 = vsub.s32 1, %v1354
    %v1356 = vrot.slane %v378, %v1355
    %v1359 = vadd.f32 %v1344, %v1352
    %v1360 = vadd.f32 %v1345, %v1356
    %v1361 = vadd.f32 %v1346, %v1352
    %v1362 = vadd.f32 %v1347, %v1356
    %v1363 = vmax.f32 %v1359, 0.0
    %v1364 = vmax.f32 %v1360, 0.0
    %v1365 = vmax.f32 %v1361, 0.0
    %v1366 = vmax.f32 %v1362, 0.0
    %vm1367 = vcmask 105472
    %v1369 = vsel %vm1367, %v244, 0
    %vm1371 = vcmask 1044480
    %v1373 = vsel %vm1371, %v1365, 0
    %v1376 = vsel %vm1371, %v1366, 0
    %1378 = vmatprep.subr.mxu0 %v1364
    %1379 = vmatpush1.msra.mxu0 %v1363
    %1380 = vmatprep.subr.mxu0 %v1376
    %1381 = vmatpush1.msra.mxu0 %v1373
    %1382 = vmatprep.subr.mxu0 0.0
    %1383 = vmatpush1.msra.mxu0 0.0
    %1384 = vmatprep.subr.mxu0 0.0
    %1385 = vmatpush1.msra.mxu0 0.0
    %1386 = vmatprep.subr.mxu0 0.0
    %1387 = vmatpush1.msra.mxu0 0.0
    %1388 = vmatprep.subr.mxu0 0.0
    %1389 = vmatpush1.msra.mxu0 0.0
    %1390 = vmatprep.subr.mxu0 0.0
    %1391 = vmatpush1.msra.mxu0 0.0
    %1392 = vmatprep.subr.mxu0 0.0
    %1393 = vmatpush1.msra.mxu0 0.0
    %1394 = vmatprep.subr.mxu0 0.0
    %1395 = vmatpush1.msra.mxu0 0.0
    %1396 = vmatprep.subr.mxu0 0.0
    %1397 = vmatpush1.msra.mxu0 0.0
    %1398 = vmatprep.subr.mxu0 0.0
    %1399 = vmatpush1.msra.mxu0 0.0
    %1400 = vmatprep.subr.mxu0 0.0
    %1401 = vmatpush1.msra.mxu0 0.0
    %1402 = vmatprep.subr.mxu0 0.0
    %1403 = vmatpush1.msra.mxu0 0.0
    %1404 = vmatprep.subr.mxu0 0.0
    %1405 = vmatpush1.msra.mxu0 0.0
    %1406 = vmatprep.subr.mxu0 0.0
    %1407 = vmatpush1.msra.mxu0 0.0
    %1408 = vmatprep.subr.mxu0 0.0
    %1409 = vmatpush1.msra.mxu0 0.0
    %1410 = vmatprep.subr.mxu0 0.0
    %1411 = vmatpush1.msra.mxu0 0.0
    %1412 = vmatprep.subr.mxu0 0.0
    %1413 = vmatpush1.msra.mxu0 0.0
    %1414 = vmatprep.subr.mxu0 0.0
    %1415 = vmatpush1.msra.mxu0 0.0
    %1416 = vmatprep.subr.mxu0 0.0
    %1417 = vmatpush1.msra.mxu0 0.0
    %1418 = vmatprep.subr.mxu0 0.0
    %1419 = vmatpush1.msra.mxu0 0.0
    %1420 = vmatprep.subr.mxu0 0.0
    %1421 = vmatpush1.msra.mxu0 0.0
    %1422 = vmatprep.subr.mxu0 0.0
    %1423 = vmatpush1.msra.mxu0 0.0
    %1424 = vmatprep.subr.mxu0 0.0
    %1425 = vmatpush1.msra.mxu0 0.0
    %1426 = vmatprep.subr.mxu0 0.0
    %1427 = vmatpush1.msra.mxu0 0.0
    %1428 = vmatprep.subr.mxu0 0.0
    %1429 = vmatpush1.msra.mxu0 0.0
    %1430 = vmatprep.subr.mxu0 0.0
    %1431 = vmatpush1.msra.mxu0 0.0
    %1432 = vmatprep.subr.mxu0 0.0
    %1433 = vmatpush1.msra.mxu0 0.0
    %1434 = vmatprep.subr.mxu0 0.0
    %1435 = vmatpush1.msra.mxu0 0.0
    %1436 = vmatprep.subr.mxu0 0.0
    %1437 = vmatpush1.msra.mxu0 0.0
    %1438 = vmatprep.subr.mxu0 0.0
    %1439 = vmatpush1.msra.mxu0 0.0
    %1440 = vmatprep.subr.mxu0 0.0
    %1441 = vmatpush1.msra.mxu0 0.0
    %1442 = vmatprep.mubr.f32.mxu0 0.0
    %1443 = vmatmul.mubr.f32.gmra.mrb[0].mxu0 %v1369
    %v1444 = vpop.f32.mrb[0].mxu0
    %v1445 = vadd.f32 0.0, %v1444
    %v1446 = vpop.f32.mrb[0].mxu0
    %v1447 = vadd.f32 0.0, %v1446
    %1448 = vdwg.mxu0
    %v1450 = vsel %vm1367, %v246, 0
    %1452 = vmatprep.subr.mxu0 %v1364
    %1453 = vmatpush1.msra.mxu0 %v1363
    %1454 = vmatprep.subr.mxu0 %v1376
    %1455 = vmatpush1.msra.mxu0 %v1373
    %1456 = vmatprep.subr.mxu0 0.0
    %1457 = vmatpush1.msra.mxu0 0.0
    %1458 = vmatprep.subr.mxu0 0.0
    %1459 = vmatpush1.msra.mxu0 0.0
    %1460 = vmatprep.subr.mxu0 0.0
    %1461 = vmatpush1.msra.mxu0 0.0
    %1462 = vmatprep.subr.mxu0 0.0
    %1463 = vmatpush1.msra.mxu0 0.0
    %1464 = vmatprep.subr.mxu0 0.0
    %1465 = vmatpush1.msra.mxu0 0.0
    %1466 = vmatprep.subr.mxu0 0.0
    %1467 = vmatpush1.msra.mxu0 0.0
    %1468 = vmatprep.subr.mxu0 0.0
    %1469 = vmatpush1.msra.mxu0 0.0
    %1470 = vmatprep.subr.mxu0 0.0
    %1471 = vmatpush1.msra.mxu0 0.0
    %1472 = vmatprep.subr.mxu0 0.0
    %1473 = vmatpush1.msra.mxu0 0.0
    %1474 = vmatprep.subr.mxu0 0.0
    %1475 = vmatpush1.msra.mxu0 0.0
    %1476 = vmatprep.subr.mxu0 0.0
    %1477 = vmatpush1.msra.mxu0 0.0
    %1478 = vmatprep.subr.mxu0 0.0
    %1479 = vmatpush1.msra.mxu0 0.0
    %1480 = vmatprep.subr.mxu0 0.0
    %1481 = vmatpush1.msra.mxu0 0.0
    %1482 = vmatprep.subr.mxu0 0.0
    %1483 = vmatpush1.msra.mxu0 0.0
    %1484 = vmatprep.subr.mxu0 0.0
    %1485 = vmatpush1.msra.mxu0 0.0
    %1486 = vmatprep.subr.mxu0 0.0
    %1487 = vmatpush1.msra.mxu0 0.0
    %1488 = vmatprep.subr.mxu0 0.0
    %1489 = vmatpush1.msra.mxu0 0.0
    %1490 = vmatprep.subr.mxu0 0.0
    %1491 = vmatpush1.msra.mxu0 0.0
    %1492 = vmatprep.subr.mxu0 0.0
    %1493 = vmatpush1.msra.mxu0 0.0
    %1494 = vmatprep.subr.mxu0 0.0
    %1495 = vmatpush1.msra.mxu0 0.0
    %1496 = vmatprep.subr.mxu0 0.0
    %1497 = vmatpush1.msra.mxu0 0.0
    %1498 = vmatprep.subr.mxu0 0.0
    %1499 = vmatpush1.msra.mxu0 0.0
    %1500 = vmatprep.subr.mxu0 0.0
    %1501 = vmatpush1.msra.mxu0 0.0
    %1502 = vmatprep.subr.mxu0 0.0
    %1503 = vmatpush1.msra.mxu0 0.0
    %1504 = vmatprep.subr.mxu0 0.0
    %1505 = vmatpush1.msra.mxu0 0.0
    %1506 = vmatprep.subr.mxu0 0.0
    %1507 = vmatpush1.msra.mxu0 0.0
    %1508 = vmatprep.subr.mxu0 0.0
    %1509 = vmatpush1.msra.mxu0 0.0
    %1510 = vmatprep.subr.mxu0 0.0
    %1511 = vmatpush1.msra.mxu0 0.0
    %1512 = vmatprep.subr.mxu0 0.0
    %1513 = vmatpush1.msra.mxu0 0.0
    %1514 = vmatprep.subr.mxu0 0.0
    %1515 = vmatpush1.msra.mxu0 0.0
    %1516 = vmatprep.mubr.f32.mxu0 0.0
    %1517 = vmatmul.mubr.f32.gmra.mrb[0].mxu0 %v1450
    %v1518 = vpop.f32.mrb[0].mxu0
    %v1519 = vadd.f32 0.0, %v1518
    %v1520 = vpop.f32.mrb[0].mxu0
    %v1521 = vadd.f32 0.0, %v1520
    %1522 = vdwg.mxu0
    %v1523 = vmax.f32 %v1445, %v1519
    %v1524 = vmax.f32 %v1447, %v1521
    %vm1525 = vcmask 654336
    %v1527 = vsel %vm1525, %v1524, 0
    %1529 = vmatprep.subr.mxu0 0.0
    %1530 = vmatpush1.msra.mxu0 %v247
    %1531 = vmatprep.subr.mxu0 0.0
    %1532 = vmatpush1.msra.mxu0 %v248
    %1533 = vmatprep.subr.mxu0 0.0
    %1534 = vmatpush1.msra.mxu0 %v249
    %1535 = vmatprep.subr.mxu0 0.0
    %1536 = vmatpush1.msra.mxu0 %v250
    %1537 = vmatprep.subr.mxu0 0.0
    %1538 = vmatpush1.msra.mxu0 %v251
    %1539 = vmatprep.subr.mxu0 0.0
    %1540 = vmatpush1.msra.mxu0 %v252
    %1541 = vmatprep.subr.mxu0 0.0
    %1542 = vmatpush1.msra.mxu0 %v253
    %1543 = vmatprep.subr.mxu0 0.0
    %1544 = vmatpush1.msra.mxu0 %v254
    %1545 = vmatprep.subr.mxu0 0.0
    %1546 = vmatpush1.msra.mxu0 %v255
    %1547 = vmatprep.subr.mxu0 0.0
    %1548 = vmatpush1.msra.mxu0 %v256
    %1549 = vmatprep.subr.mxu0 0.0
    %1550 = vmatpush1.msra.mxu0 %v257
    %1551 = vmatprep.subr.mxu0 0.0
    %1552 = vmatpush1.msra.mxu0 %v258
    %1553 = vmatprep.subr.mxu0 0.0
    %1554 = vmatpush1.msra.mxu0 %v259
    %1555 = vmatprep.subr.mxu0 0.0
    %1556 = vmatpush1.msra.mxu0 %v260
    %1557 = vmatprep.subr.mxu0 0.0
    %1558 = vmatpush1.msra.mxu0 %v261
    %1559 = vmatprep.subr.mxu0 0.0
    %1560 = vmatpush1.msra.mxu0 %v262
    %1561 = vmatprep.subr.mxu0 0.0
    %1562 = vmatpush1.msra.mxu0 %v263
    %1563 = vmatprep.subr.mxu0 0.0
    %1564 = vmatpush1.msra.mxu0 %v264
    %1565 = vmatprep.subr.mxu0 0.0
    %1566 = vmatpush1.msra.mxu0 %v265
    %1567 = vmatprep.subr.mxu0 0.0
    %1568 = vmatpush1.msra.mxu0 %v266
    %1569 = vmatprep.subr.mxu0 0.0
    %1570 = vmatpush1.msra.mxu0 %v267
    %1571 = vmatprep.subr.mxu0 0.0
    %1572 = vmatpush1.msra.mxu0 %v268
    %1573 = vmatprep.subr.mxu0 0.0
    %1574 = vmatpush1.msra.mxu0 %v269
    %1575 = vmatprep.subr.mxu0 0.0
    %1576 = vmatpush1.msra.mxu0 %v270
    %1577 = vmatprep.subr.mxu0 0.0
    %1578 = vmatpush1.msra.mxu0 %v271
    %1579 = vmatprep.subr.mxu0 0.0
    %1580 = vmatpush1.msra.mxu0 %v272
    %1581 = vmatprep.subr.mxu0 0.0
    %1582 = vmatpush1.msra.mxu0 0.0
    %1583 = vmatprep.subr.mxu0 0.0
    %1584 = vmatpush1.msra.mxu0 0.0
    %1585 = vmatprep.subr.mxu0 0.0
    %1586 = vmatpush1.msra.mxu0 0.0
    %1587 = vmatprep.subr.mxu0 0.0
    %1588 = vmatpush1.msra.mxu0 0.0
    %1589 = vmatprep.subr.mxu0 0.0
    %1590 = vmatpush1.msra.mxu0 0.0
    %1591 = vmatprep.subr.mxu0 0.0
    %1592 = vmatpush1.msra.mxu0 0.0
    %1593 = vmatprep.mubr.f32.mxu0 %v1527
    %1594 = vmatmul.mubr.f32.gmra.mrb[0].mxu0 %v1523
    %v1595 = vpop.f32.mrb[0].mxu0
    %v1596 = vadd.f32 0.0, %v1595
    %v1597 = vpop.f32.mrb[0].mxu0
    %1598 = vdwg.mxu0
    %1599 = vmatprep.subr.mxu0 0.0
    %1600 = vmatpush1.msra.mxu0 %v274
    %1601 = vmatprep.subr.mxu0 0.0
    %1602 = vmatpush1.msra.mxu0 %v275
    %1603 = vmatprep.subr.mxu0 0.0
    %1604 = vmatpush1.msra.mxu0 %v276
    %1605 = vmatprep.subr.mxu0 0.0
    %1606 = vmatpush1.msra.mxu0 %v277
    %1607 = vmatprep.subr.mxu0 0.0
    %1608 = vmatpush1.msra.mxu0 %v278
    %1609 = vmatprep.subr.mxu0 0.0
    %1610 = vmatpush1.msra.mxu0 %v279
    %1611 = vmatprep.subr.mxu0 0.0
    %1612 = vmatpush1.msra.mxu0 %v280
    %1613 = vmatprep.subr.mxu0 0.0
    %1614 = vmatpush1.msra.mxu0 %v281
    %1615 = vmatprep.subr.mxu0 0.0
    %1616 = vmatpush1.msra.mxu0 %v282
    %1617 = vmatprep.subr.mxu0 0.0
    %1618 = vmatpush1.msra.mxu0 %v283
    %1619 = vmatprep.subr.mxu0 0.0
    %1620 = vmatpush1.msra.mxu0 %v284
    %1621 = vmatprep.subr.mxu0 0.0
    %1622 = vmatpush1.msra.mxu0 %v285
    %1623 = vmatprep.subr.mxu0 0.0
    %1624 = vmatpush1.msra.mxu0 %v286
    %1625 = vmatprep.subr.mxu0 0.0
    %1626 = vmatpush1.msra.mxu0 %v287
    %1627 = vmatprep.subr.mxu0 0.0
    %1628 = vmatpush1.msra.mxu0 %v288
    %1629 = vmatprep.subr.mxu0 0.0
    %1630 = vmatpush1.msra.mxu0 %v289
    %1631 = vmatprep.subr.mxu0 0.0
    %1632 = vmatpush1.msra.mxu0 %v290
    %1633 = vmatprep.subr.mxu0 0.0
    %1634 = vmatpush1.msra.mxu0 %v291
    %1635 = vmatprep.subr.mxu0 0.0
    %1636 = vmatpush1.msra.mxu0 %v292
    %1637 = vmatprep.subr.mxu0 0.0
    %1638 = vmatpush1.msra.mxu0 %v293
    %1639 = vmatprep.subr.mxu0 0.0
    %1640 = vmatpush1.msra.mxu0 %v294
    %1641 = vmatprep.subr.mxu0 0.0
    %1642 = vmatpush1.msra.mxu0 %v295
    %1643 = vmatprep.subr.mxu0 0.0
    %1644 = vmatpush1.msra.mxu0 %v296
    %1645 = vmatprep.subr.mxu0 0.0
    %1646 = vmatpush1.msra.mxu0 %v297
    %1647 = vmatprep.subr.mxu0 0.0
    %1648 = vmatpush1.msra.mxu0 %v298
    %1649 = vmatprep.subr.mxu0 0.0
    %1650 = vmatpush1.msra.mxu0 %v299
    %1651 = vmatprep.subr.mxu0 0.0
    %1652 = vmatpush1.msra.mxu0 0.0
    %1653 = vmatprep.subr.mxu0 0.0
    %1654 = vmatpush1.msra.mxu0 0.0
    %1655 = vmatprep.subr.mxu0 0.0
    %1656 = vmatpush1.msra.mxu0 0.0
    %1657 = vmatprep.subr.mxu0 0.0
    %1658 = vmatpush1.msra.mxu0 0.0
    %1659 = vmatprep.subr.mxu0 0.0
    %1660 = vmatpush1.msra.mxu0 0.0
    %1661 = vmatprep.subr.mxu0 0.0
    %1662 = vmatpush1.msra.mxu0 0.0
    %1663 = vmatprep.mubr.f32.mxu0 %v1527
    %1664 = vmatmul.mubr.f32.gmra.mrb[0].mxu0 %v1523
    %v1665 = vpop.f32.mrb[0].mxu0
    %v1666 = vadd.f32 0.0, %v1665
    %v1667 = vpop.f32.mrb[0].mxu0
    %1668 = vdwg.mxu0
    %v1669 = vmax.f32 %v1596, %v1666
    %v1671 = vrot.slane %v1669, 1
    %vm1672 = vcmask 785408
    %v1673 = vsel %vm1672, %v1671, 0
    %1675 = vmatprep.subr.mxu0 0.0
    %1676 = vmatpush1.msra.mxu0 %v313
    %1677 = vmatprep.subr.mxu0 0.0
    %1678 = vmatpush1.msra.mxu0 %v314
    %1679 = vmatprep.subr.mxu0 0.0
    %1680 = vmatpush1.msra.mxu0 %v315
    %1681 = vmatprep.subr.mxu0 0.0
    %1682 = vmatpush1.msra.mxu0 %v316
    %1683 = vmatprep.subr.mxu0 0.0
    %1684 = vmatpush1.msra.mxu0 %v317
    %1685 = vmatprep.subr.mxu0 0.0
    %1686 = vmatpush1.msra.mxu0 %v318
    %1687 = vmatprep.subr.mxu0 0.0
    %1688 = vmatpush1.msra.mxu0 %v319
    %1689 = vmatprep.subr.mxu0 0.0
    %1690 = vmatpush1.msra.mxu0 %v320
    %1691 = vmatprep.subr.mxu0 0.0
    %1692 = vmatpush1.msra.mxu0 %v321
    %1693 = vmatprep.subr.mxu0 0.0
    %1694 = vmatpush1.msra.mxu0 %v322
    %1695 = vmatprep.subr.mxu0 0.0
    %1696 = vmatpush1.msra.mxu0 %v323
    %1697 = vmatprep.subr.mxu0 0.0
    %1698 = vmatpush1.msra.mxu0 %v324
    %1699 = vmatprep.subr.mxu0 0.0
    %1700 = vmatpush1.msra.mxu0 0.0
    %1701 = vmatprep.subr.mxu0 0.0
    %1702 = vmatpush1.msra.mxu0 0.0
    %1703 = vmatprep.subr.mxu0 0.0
    %1704 = vmatpush1.msra.mxu0 0.0
    %1705 = vmatprep.subr.mxu0 0.0
    %1706 = vmatpush1.msra.mxu0 0.0
    %1707 = vmatprep.subr.mxu0 0.0
    %1708 = vmatpush1.msra.mxu0 0.0
    %1709 = vmatprep.subr.mxu0 0.0
    %1710 = vmatpush1.msra.mxu0 0.0
    %1711 = vmatprep.subr.mxu0 0.0
    %1712 = vmatpush1.msra.mxu0 0.0
    %1713 = vmatprep.subr.mxu0 0.0
    %1714 = vmatpush1.msra.mxu0 0.0
    %1715 = vmatprep.subr.mxu0 0.0
    %1716 = vmatpush1.msra.mxu0 0.0
    %1717 = vmatprep.subr.mxu0 0.0
    %1718 = vmatpush1.msra.mxu0 0.0
    %1719 = vmatprep.subr.mxu0 0.0
    %1720 = vmatpush1.msra.mxu0 0.0
    %1721 = vmatprep.subr.mxu0 0.0
    %1722 = vmatpush1.msra.mxu0 0.0
    %1723 = vmatprep.subr.mxu0 0.0
    %1724 = vmatpush1.msra.mxu0 0.0
    %1725 = vmatprep.subr.mxu0 0.0
    %1726 = vmatpush1.msra.mxu0 0.0
    %1727 = vmatprep.subr.mxu0 0.0
    %1728 = vmatpush1.msra.mxu0 0.0
    %1729 = vmatprep.subr.mxu0 0.0
    %1730 = vmatpush1.msra.mxu0 0.0
    %1731 = vmatprep.subr.mxu0 0.0
    %1732 = vmatpush1.msra.mxu0 0.0
    %1733 = vmatprep.subr.mxu0 0.0
    %1734 = vmatpush1.msra.mxu0 0.0
    %1735 = vmatprep.subr.mxu0 0.0
    %1736 = vmatpush1.msra.mxu0 0.0
    %1737 = vmatprep.subr.mxu0 0.0
    %1738 = vmatpush1.msra.mxu0 0.0
    %1739 = vmatprep.mubr.f32.mxu0 0.0
    %1740 = vmatmul.mubr.f32.gmra.mrb[0].mxu0 %v1673
    %v1741 = vpop.f32.mrb[0].mxu0
    %v1742 = vadd.f32 0.0, %v1741
    %v1743 = vpop.f32.mrb[0].mxu0
    %1744 = vdwg.mxu0
    %v1745 = vsel %vm1672, %v1669, 0
    %1747 = vmatprep.subr.mxu0 0.0
    %1748 = vmatpush1.msra.mxu0 %v300
    %1749 = vmatprep.subr.mxu0 0.0
    %1750 = vmatpush1.msra.mxu0 %v301
    %1751 = vmatprep.subr.mxu0 0.0
    %1752 = vmatpush1.msra.mxu0 %v302
    %1753 = vmatprep.subr.mxu0 0.0
    %1754 = vmatpush1.msra.mxu0 %v303
    %1755 = vmatprep.subr.mxu0 0.0
    %1756 = vmatpush1.msra.mxu0 %v304
    %1757 = vmatprep.subr.mxu0 0.0
    %1758 = vmatpush1.msra.mxu0 %v305
    %1759 = vmatprep.subr.mxu0 0.0
    %1760 = vmatpush1.msra.mxu0 %v306
    %1761 = vmatprep.subr.mxu0 0.0
    %1762 = vmatpush1.msra.mxu0 %v307
    %1763 = vmatprep.subr.mxu0 0.0
    %1764 = vmatpush1.msra.mxu0 %v308
    %1765 = vmatprep.subr.mxu0 0.0
    %1766 = vmatpush1.msra.mxu0 %v309
    %1767 = vmatprep.subr.mxu0 0.0
    %1768 = vmatpush1.msra.mxu0 %v310
    %1769 = vmatprep.subr.mxu0 0.0
    %1770 = vmatpush1.msra.mxu0 %v311
    %1771 = vmatprep.subr.mxu0 0.0
    %1772 = vmatpush1.msra.mxu0 0.0
    %1773 = vmatprep.subr.mxu0 0.0
    %1774 = vmatpush1.msra.mxu0 0.0
    %1775 = vmatprep.subr.mxu0 0.0
    %1776 = vmatpush1.msra.mxu0 0.0
    %1777 = vmatprep.subr.mxu0 0.0
    %1778 = vmatpush1.msra.mxu0 0.0
    %1779 = vmatprep.subr.mxu0 0.0
    %1780 = vmatpush1.msra.mxu0 0.0
    %1781 = vmatprep.subr.mxu0 0.0
    %1782 = vmatpush1.msra.mxu0 0.0
    %1783 = vmatprep.subr.mxu0 0.0
    %1784 = vmatpush1.msra.mxu0 0.0
    %1785 = vmatprep.subr.mxu0 0.0
    %1786 = vmatpush1.msra.mxu0 0.0
    %1787 = vmatprep.subr.mxu0 0.0
    %1788 = vmatpush1.msra.mxu0 0.0
    %1789 = vmatprep.subr.mxu0 0.0
    %1790 = vmatpush1.msra.mxu0 0.0
    %1791 = vmatprep.subr.mxu0 0.0
    %1792 = vmatpush1.msra.mxu0 0.0
    %1793 = vmatprep.subr.mxu0 0.0
    %1794 = vmatpush1.msra.mxu0 0.0
    %1795 = vmatprep.subr.mxu0 0.0
    %1796 = vmatpush1.msra.mxu0 0.0
    %1797 = vmatprep.subr.mxu0 0.0
    %1798 = vmatpush1.msra.mxu0 0.0
    %1799 = vmatprep.subr.mxu0 0.0
    %1800 = vmatpush1.msra.mxu0 0.0
    %1801 = vmatprep.subr.mxu0 0.0
    %1802 = vmatpush1.msra.mxu0 0.0
    %1803 = vmatprep.subr.mxu0 0.0
    %1804 = vmatpush1.msra.mxu0 0.0
    %1805 = vmatprep.subr.mxu0 0.0
    %1806 = vmatpush1.msra.mxu0 0.0
    %1807 = vmatprep.subr.mxu0 0.0
    %1808 = vmatpush1.msra.mxu0 0.0
    %1809 = vmatprep.subr.mxu0 0.0
    %1810 = vmatpush1.msra.mxu0 0.0
    %1811 = vmatprep.mubr.f32.mxu0 0.0
    %1812 = vmatmul.mubr.f32.gmra.mrb[0].mxu0 %v1745
    %v1813 = vpop.f32.mrb[0].mxu0
    %v1814 = vadd.f32 %v1742, %v1813
    %v1815 = vpop.f32.mrb[0].mxu0
    %1816 = vdwg.mxu0
    %v1817 = vrot.slane %v1669, 2
    %v1818 = vsel %vm1672, %v1817, 0
    %1820 = vmatprep.subr.mxu0 0.0
    %1821 = vmatpush1.msra.mxu0 %v326
    %1822 = vmatprep.subr.mxu0 0.0
    %1823 = vmatpush1.msra.mxu0 %v327
    %1824 = vmatprep.subr.mxu0 0.0
    %1825 = vmatpush1.msra.mxu0 %v328
    %1826 = vmatprep.subr.mxu0 0.0
    %1827 = vmatpush1.msra.mxu0 %v329
    %1828 = vmatprep.subr.mxu0 0.0
    %1829 = vmatpush1.msra.mxu0 %v330
    %1830 = vmatprep.subr.mxu0 0.0
    %1831 = vmatpush1.msra.mxu0 %v331
    %1832 = vmatprep.subr.mxu0 0.0
    %1833 = vmatpush1.msra.mxu0 %v332
    %1834 = vmatprep.subr.mxu0 0.0
    %1835 = vmatpush1.msra.mxu0 %v333
    %1836 = vmatprep.subr.mxu0 0.0
    %1837 = vmatpush1.msra.mxu0 %v334
    %1838 = vmatprep.subr.mxu0 0.0
    %1839 = vmatpush1.msra.mxu0 %v335
    %1840 = vmatprep.subr.mxu0 0.0
    %1841 = vmatpush1.msra.mxu0 %v336
    %1842 = vmatprep.subr.mxu0 0.0
    %1843 = vmatpush1.msra.mxu0 %v337
    %1844 = vmatprep.subr.mxu0 0.0
    %1845 = vmatpush1.msra.mxu0 0.0
    %1846 = vmatprep.subr.mxu0 0.0
    %1847 = vmatpush1.msra.mxu0 0.0
    %1848 = vmatprep.subr.mxu0 0.0
    %1849 = vmatpush1.msra.mxu0 0.0
    %1850 = vmatprep.subr.mxu0 0.0
    %1851 = vmatpush1.msra.mxu0 0.0
    %1852 = vmatprep.subr.mxu0 0.0
    %1853 = vmatpush1.msra.mxu0 0.0
    %1854 = vmatprep.subr.mxu0 0.0
    %1855 = vmatpush1.msra.mxu0 0.0
    %1856 = vmatprep.subr.mxu0 0.0
    %1857 = vmatpush1.msra.mxu0 0.0
    %1858 = vmatprep.subr.mxu0 0.0
    %1859 = vmatpush1.msra.mxu0 0.0
    %1860 = vmatprep.subr.mxu0 0.0
    %1861 = vmatpush1.msra.mxu0 0.0
    %1862 = vmatprep.subr.mxu0 0.0
    %1863 = vmatpush1.msra.mxu0 0.0
    %1864 = vmatprep.subr.mxu0 0.0
    %1865 = vmatpush1.msra.mxu0 0.0
    %1866 = vmatprep.subr.mxu0 0.0
    %1867 = vmatpush1.msra.mxu0 0.0
    %1868 = vmatprep.subr.mxu0 0.0
    %1869 = vmatpush1.msra.mxu0 0.0
    %1870 = vmatprep.subr.mxu0 0.0
    %1871 = vmatpush1.msra.mxu0 0.0
    %1872 = vmatprep.subr.mxu0 0.0
    %1873 = vmatpush1.msra.mxu0 0.0
    %1874 = vmatprep.subr.mxu0 0.0
    %1875 = vmatpush1.msra.mxu0 0.0
    %1876 = vmatprep.subr.mxu0 0.0
    %1877 = vmatpush1.msra.mxu0 0.0
    %1878 = vmatprep.subr.mxu0 0.0
    %1879 = vmatpush1.msra.mxu0 0.0
    %1880 = vmatprep.subr.mxu0 0.0
    %1881 = vmatpush1.msra.mxu0 0.0
    %1882 = vmatprep.subr.mxu0 0.0
    %1883 = vmatpush1.msra.mxu0 0.0
    %1884 = vmatprep.mubr.f32.mxu0 0.0
    %1885 = vmatmul.mubr.f32.gmra.mrb[0].mxu0 %v1818
    %v1886 = vpop.f32.mrb[0].mxu0
    %v1887 = vadd.f32 0.0, %v1886
    %v1888 = vpop.f32.mrb[0].mxu0
    %1889 = vdwg.mxu0
    %v1890 = vadd.f32 %v1814, %v1887
    %v1891 = vrot.slane %v1669, 3
    %v1892 = vsel %vm1672, %v1891, 0
    %1894 = vmatprep.subr.mxu0 0.0
    %1895 = vmatpush1.msra.mxu0 %v339
    %1896 = vmatprep.subr.mxu0 0.0
    %1897 = vmatpush1.msra.mxu0 %v340
    %1898 = vmatprep.subr.mxu0 0.0
    %1899 = vmatpush1.msra.mxu0 %v341
    %1900 = vmatprep.subr.mxu0 0.0
    %1901 = vmatpush1.msra.mxu0 %v342
    %1902 = vmatprep.subr.mxu0 0.0
    %1903 = vmatpush1.msra.mxu0 %v343
    %1904 = vmatprep.subr.mxu0 0.0
    %1905 = vmatpush1.msra.mxu0 %v344
    %1906 = vmatprep.subr.mxu0 0.0
    %1907 = vmatpush1.msra.mxu0 %v345
    %1908 = vmatprep.subr.mxu0 0.0
    %1909 = vmatpush1.msra.mxu0 %v346
    %1910 = vmatprep.subr.mxu0 0.0
    %1911 = vmatpush1.msra.mxu0 %v347
    %1912 = vmatprep.subr.mxu0 0.0
    %1913 = vmatpush1.msra.mxu0 %v348
    %1914 = vmatprep.subr.mxu0 0.0
    %1915 = vmatpush1.msra.mxu0 %v349
    %1916 = vmatprep.subr.mxu0 0.0
    %1917 = vmatpush1.msra.mxu0 %v350
    %1918 = vmatprep.subr.mxu0 0.0
    %1919 = vmatpush1.msra.mxu0 0.0
    %1920 = vmatprep.subr.mxu0 0.0
    %1921 = vmatpush1.msra.mxu0 0.0
    %1922 = vmatprep.subr.mxu0 0.0
    %1923 = vmatpush1.msra.mxu0 0.0
    %1924 = vmatprep.subr.mxu0 0.0
    %1925 = vmatpush1.msra.mxu0 0.0
    %1926 = vmatprep.subr.mxu0 0.0
    %1927 = vmatpush1.msra.mxu0 0.0
    %1928 = vmatprep.subr.mxu0 0.0
    %1929 = vmatpush1.msra.mxu0 0.0
    %1930 = vmatprep.subr.mxu0 0.0
    %1931 = vmatpush1.msra.mxu0 0.0
    %1932 = vmatprep.subr.mxu0 0.0
    %1933 = vmatpush1.msra.mxu0 0.0
    %1934 = vmatprep.subr.mxu0 0.0
    %1935 = vmatpush1.msra.mxu0 0.0
    %1936 = vmatprep.subr.mxu0 0.0
    %1937 = vmatpush1.msra.mxu0 0.0
    %1938 = vmatprep.subr.mxu0 0.0
    %1939 = vmatpush1.msra.mxu0 0.0
    %1940 = vmatprep.subr.mxu0 0.0
    %1941 = vmatpush1.msra.mxu0 0.0
    %1942 = vmatprep.subr.mxu0 0.0
    %1943 = vmatpush1.msra.mxu0 0.0
    %1944 = vmatprep.subr.mxu0 0.0
    %1945 = vmatpush1.msra.mxu0 0.0
    %1946 = vmatprep.subr.mxu0 0.0
    %1947 = vmatpush1.msra.mxu0 0.0
    %1948 = vmatprep.subr.mxu0 0.0
    %1949 = vmatpush1.msra.mxu0 0.0
    %1950 = vmatprep.subr.mxu0 0.0
    %1951 = vmatpush1.msra.mxu0 0.0
    %1952 = vmatprep.subr.mxu0 0.0
    %1953 = vmatpush1.msra.mxu0 0.0
    %1954 = vmatprep.subr.mxu0 0.0
    %1955 = vmatpush1.msra.mxu0 0.0
    %1956 = vmatprep.subr.mxu0 0.0
    %1957 = vmatpush1.msra.mxu0 0.0
    %1958 = vmatprep.mubr.f32.mxu0 0.0
    %1959 = vmatmul.mubr.f32.gmra.mrb[0].mxu0 %v1892
    %v1960 = vpop.f32.mrb[0].mxu0
    %v1961 = vadd.f32 0.0, %v1960
    %v1962 = vpop.f32.mrb[0].mxu0
    %1963 = vdwg.mxu0
    %v1964 = vadd.f32 %v1890, %v1961
    %v1965 = vrot.slane %v1669, 4
    %v1966 = vsel %vm1672, %v1965, 0
    %1968 = vmatprep.subr.mxu0 0.0
    %1969 = vmatpush1.msra.mxu0 %v352
    %1970 = vmatprep.subr.mxu0 0.0
    %1971 = vmatpush1.msra.mxu0 %v353
    %1972 = vmatprep.subr.mxu0 0.0
    %1973 = vmatpush1.msra.mxu0 %v354
    %1974 = vmatprep.subr.mxu0 0.0
    %1975 = vmatpush1.msra.mxu0 %v355
    %1976 = vmatprep.subr.mxu0 0.0
    %1977 = vmatpush1.msra.mxu0 %v356
    %1978 = vmatprep.subr.mxu0 0.0
    %1979 = vmatpush1.msra.mxu0 %v357
    %1980 = vmatprep.subr.mxu0 0.0
    %1981 = vmatpush1.msra.mxu0 %v358
    %1982 = vmatprep.subr.mxu0 0.0
    %1983 = vmatpush1.msra.mxu0 %v359
    %1984 = vmatprep.subr.mxu0 0.0
    %1985 = vmatpush1.msra.mxu0 %v360
    %1986 = vmatprep.subr.mxu0 0.0
    %1987 = vmatpush1.msra.mxu0 %v361
    %1988 = vmatprep.subr.mxu0 0.0
    %1989 = vmatpush1.msra.mxu0 %v362
    %1990 = vmatprep.subr.mxu0 0.0
    %1991 = vmatpush1.msra.mxu0 %v363
    %1992 = vmatprep.subr.mxu0 0.0
    %1993 = vmatpush1.msra.mxu0 0.0
    %1994 = vmatprep.subr.mxu0 0.0
    %1995 = vmatpush1.msra.mxu0 0.0
    %1996 = vmatprep.subr.mxu0 0.0
    %1997 = vmatpush1.msra.mxu0 0.0
    %1998 = vmatprep.subr.mxu0 0.0
    %1999 = vmatpush1.msra.mxu0 0.0
    %2000 = vmatprep.subr.mxu0 0.0
    %2001 = vmatpush1.msra.mxu0 0.0
    %2002 = vmatprep.subr.mxu0 0.0
    %2003 = vmatpush1.msra.mxu0 0.0
    %2004 = vmatprep.subr.mxu0 0.0
    %2005 = vmatpush1.msra.mxu0 0.0
    %2006 = vmatprep.subr.mxu0 0.0
    %2007 = vmatpush1.msra.mxu0 0.0
    %2008 = vmatprep.subr.mxu0 0.0
    %2009 = vmatpush1.msra.mxu0 0.0
    %2010 = vmatprep.subr.mxu0 0.0
    %2011 = vmatpush1.msra.mxu0 0.0
    %2012 = vmatprep.subr.mxu0 0.0
    %2013 = vmatpush1.msra.mxu0 0.0
    %2014 = vmatprep.subr.mxu0 0.0
    %2015 = vmatpush1.msra.mxu0 0.0
    %2016 = vmatprep.subr.mxu0 0.0
    %2017 = vmatpush1.msra.mxu0 0.0
    %2018 = vmatprep.subr.mxu0 0.0
    %2019 = vmatpush1.msra.mxu0 0.0
    %2020 = vmatprep.subr.mxu0 0.0
    %2021 = vmatpush1.msra.mxu0 0.0
    %2022 = vmatprep.subr.mxu0 0.0
    %2023 = vmatpush1.msra.mxu0 0.0
    %2024 = vmatprep.subr.mxu0 0.0
    %2025 = vmatpush1.msra.mxu0 0.0
    %2026 = vmatprep.subr.mxu0 0.0
    %2027 = vmatpush1.msra.mxu0 0.0
    %2028 = vmatprep.subr.mxu0 0.0
    %2029 = vmatpush1.msra.mxu0 0.0
    %2030 = vmatprep.subr.mxu0 0.0
    %2031 = vmatpush1.msra.mxu0 0.0
    %2032 = vmatprep.mubr.f32.mxu0 0.0
    %2033 = vmatmul.mubr.f32.gmra.mrb[0].mxu0 %v1966
    %v2034 = vpop.f32.mrb[0].mxu0
    %v2035 = vadd.f32 0.0, %v2034
    %v2036 = vpop.f32.mrb[0].mxu0
    %2037 = vdwg.mxu0
    %v2038 = vadd.f32 %v1964, %v2035
    %v2039 = vrot.slane %v1669, 5
    %v2040 = vsel %vm1672, %v2039, 0
    %2042 = vmatprep.subr.mxu0 0.0
    %2043 = vmatpush1.msra.mxu0 %v365
    %2044 = vmatprep.subr.mxu0 0.0
    %2045 = vmatpush1.msra.mxu0 %v366
    %2046 = vmatprep.subr.mxu0 0.0
    %2047 = vmatpush1.msra.mxu0 %v367
    %2048 = vmatprep.subr.mxu0 0.0
    %2049 = vmatpush1.msra.mxu0 %v368
    %2050 = vmatprep.subr.mxu0 0.0
    %2051 = vmatpush1.msra.mxu0 %v369
    %2052 = vmatprep.subr.mxu0 0.0
    %2053 = vmatpush1.msra.mxu0 %v370
    %2054 = vmatprep.subr.mxu0 0.0
    %2055 = vmatpush1.msra.mxu0 %v371
    %2056 = vmatprep.subr.mxu0 0.0
    %2057 = vmatpush1.msra.mxu0 %v372
    %2058 = vmatprep.subr.mxu0 0.0
    %2059 = vmatpush1.msra.mxu0 %v373
    %2060 = vmatprep.subr.mxu0 0.0
    %2061 = vmatpush1.msra.mxu0 %v374
    %2062 = vmatprep.subr.mxu0 0.0
    %2063 = vmatpush1.msra.mxu0 %v375
    %2064 = vmatprep.subr.mxu0 0.0
    %2065 = vmatpush1.msra.mxu0 %v376
    %2066 = vmatprep.subr.mxu0 0.0
    %2067 = vmatpush1.msra.mxu0 0.0
    %2068 = vmatprep.subr.mxu0 0.0
    %2069 = vmatpush1.msra.mxu0 0.0
    %2070 = vmatprep.subr.mxu0 0.0
    %2071 = vmatpush1.msra.mxu0 0.0
    %2072 = vmatprep.subr.mxu0 0.0
    %2073 = vmatpush1.msra.mxu0 0.0
    %2074 = vmatprep.subr.mxu0 0.0
    %2075 = vmatpush1.msra.mxu0 0.0
    %2076 = vmatprep.subr.mxu0 0.0
    %2077 = vmatpush1.msra.mxu0 0.0
    %2078 = vmatprep.subr.mxu0 0.0
    %2079 = vmatpush1.msra.mxu0 0.0
    %2080 = vmatprep.subr.mxu0 0.0
    %2081 = vmatpush1.msra.mxu0 0.0
    %2082 = vmatprep.subr.mxu0 0.0
    %2083 = vmatpush1.msra.mxu0 0.0
    %2084 = vmatprep.subr.mxu0 0.0
    %2085 = vmatpush1.msra.mxu0 0.0
    %2086 = vmatprep.subr.mxu0 0.0
    %2087 = vmatpush1.msra.mxu0 0.0
    %2088 = vmatprep.subr.mxu0 0.0
    %2089 = vmatpush1.msra.mxu0 0.0
    %2090 = vmatprep.subr.mxu0 0.0
    %2091 = vmatpush1.msra.mxu0 0.0
    %2092 = vmatprep.subr.mxu0 0.0
    %2093 = vmatpush1.msra.mxu0 0.0
    %2094 = vmatprep.subr.mxu0 0.0
    %2095 = vmatpush1.msra.mxu0 0.0
    %2096 = vmatprep.subr.mxu0 0.0
    %2097 = vmatpush1.msra.mxu0 0.0
    %2098 = vmatprep.subr.mxu0 0.0
    %2099 = vmatpush1.msra.mxu0 0.0
    %2100 = vmatprep.subr.mxu0 0.0
    %2101 = vmatpush1.msra.mxu0 0.0
    %2102 = vmatprep.subr.mxu0 0.0
    %2103 = vmatpush1.msra.mxu0 0.0
    %2104 = vmatprep.subr.mxu0 0.0
    %2105 = vmatpush1.msra.mxu0 0.0
    %2106 = vmatprep.mubr.f32.mxu0 0.0
    %2107 = vmatmul.mubr.f32.gmra.mrb[0].mxu0 %v2040
    %v2108 = vpop.f32.mrb[0].mxu0
    %v2109 = vadd.f32 0.0, %v2108
    %v2110 = vpop.f32.mrb[0].mxu0
    %2111 = vdwg.mxu0
    %v2112 = vadd.f32 %v2038, %v2109
    %2113 = vst [vmem:[#allocation8] sm:$0x1] %v2112
    %s2114 = scalar_lea.vmem %s0, 32
    %v2115 = vld [vmem:[%s2114] sm:$0xff]
    %v2116 = vld [vmem:[%s2114 + $0x8] sm:$0xff]
    %v2117 = vld [vmem:[%s2114 + $0x10] sm:$0xff]
    %v2118 = vld [vmem:[%s2114 + $0x18] sm:$0xff]
    %v2123 = vrot.slane %v2115, 1
    %v2124 = vrot.slane %v2116, 1
    %v2125 = vsel %vm387, %v2123, %v2124
    %v2126 = vrot.slane %v2117, 1
    %v2127 = vsel %vm387, %v2124, %v2126
    %v2128 = vrot.slane %v2118, 1
    %v2129 = vsel %vm387, %v2126, %v2128
    %v2130 = vsel %vm395, %v2125, 0
    %v2132 = vsel %vm395, %v2127, 0
    %v2134 = vsel %vm395, %v2129, 0
    %v2136 = vsel %vm395, %v2128, 0
    %2138 = vmatprep.subr.mxu0 %v102
    %2139 = vmatpush1.msra.mxu0 %v101
    %2140 = vmatprep.subr.mxu0 %v104
    %2141 = vmatpush1.msra.mxu0 %v103
    %2142 = vmatprep.subr.mxu0 %v106
    %2143 = vmatpush1.msra.mxu0 %v105
    %2144 = vmatprep.subr.mxu0 %v108
    %2145 = vmatpush1.msra.mxu0 %v107
    %2146 = vmatprep.subr.mxu0 0.0
    %2147 = vmatpush1.msra.mxu0 0.0
    %2148 = vmatprep.subr.mxu0 0.0
    %2149 = vmatpush1.msra.mxu0 0.0
    %2150 = vmatprep.subr.mxu0 0.0
    %2151 = vmatpush1.msra.mxu0 0.0
    %2152 = vmatprep.subr.mxu0 0.0
    %2153 = vmatpush1.msra.mxu0 0.0
    %2154 = vmatprep.subr.mxu0 0.0
    %2155 = vmatpush1.msra.mxu0 0.0
    %2156 = vmatprep.subr.mxu0 0.0
    %2157 = vmatpush1.msra.mxu0 0.0
    %2158 = vmatprep.subr.mxu0 0.0
    %2159 = vmatpush1.msra.mxu0 0.0
    %2160 = vmatprep.subr.mxu0 0.0
    %2161 = vmatpush1.msra.mxu0 0.0
    %2162 = vmatprep.subr.mxu0 0.0
    %2163 = vmatpush1.msra.mxu0 0.0
    %2164 = vmatprep.subr.mxu0 0.0
    %2165 = vmatpush1.msra.mxu0 0.0
    %2166 = vmatprep.subr.mxu0 0.0
    %2167 = vmatpush1.msra.mxu0 0.0
    %2168 = vmatprep.subr.mxu0 0.0
    %2169 = vmatpush1.msra.mxu0 0.0
    %2170 = vmatprep.subr.mxu0 0.0
    %2171 = vmatpush1.msra.mxu0 0.0
    %2172 = vmatprep.subr.mxu0 0.0
    %2173 = vmatpush1.msra.mxu0 0.0
    %2174 = vmatprep.subr.mxu0 0.0
    %2175 = vmatpush1.msra.mxu0 0.0
    %2176 = vmatprep.subr.mxu0 0.0
    %2177 = vmatpush1.msra.mxu0 0.0
    %2178 = vmatprep.subr.mxu0 0.0
    %2179 = vmatpush1.msra.mxu0 0.0
    %2180 = vmatprep.subr.mxu0 0.0
    %2181 = vmatpush1.msra.mxu0 0.0
    %2182 = vmatprep.subr.mxu0 0.0
    %2183 = vmatpush1.msra.mxu0 0.0
    %2184 = vmatprep.subr.mxu0 0.0
    %2185 = vmatpush1.msra.mxu0 0.0
    %2186 = vmatprep.subr.mxu0 0.0
    %2187 = vmatpush1.msra.mxu0 0.0
    %2188 = vmatprep.subr.mxu0 0.0
    %2189 = vmatpush1.msra.mxu0 0.0
    %2190 = vmatprep.subr.mxu0 0.0
    %2191 = vmatpush1.msra.mxu0 0.0
    %2192 = vmatprep.subr.mxu0 0.0
    %2193 = vmatpush1.msra.mxu0 0.0
    %2194 = vmatprep.subr.mxu0 0.0
    %2195 = vmatpush1.msra.mxu0 0.0
    %2196 = vmatprep.subr.mxu0 0.0
    %2197 = vmatpush1.msra.mxu0 0.0
    %2198 = vmatprep.subr.mxu0 0.0
    %2199 = vmatpush1.msra.mxu0 0.0
    %2200 = vmatprep.subr.mxu0 0.0
    %2201 = vmatpush1.msra.mxu0 0.0
    %2202 = vmatprep.mubr.f32.mxu0 0.0
    %2203 = vmatmul.mubr.f32.gmra.mrb[0].mxu0 %v2130
    %v2204 = vpop.f32.mrb[0].mxu0
    %v2205 = vadd.f32 0.0, %v2204
    %v2206 = vpop.f32.mrb[0].mxu0
    %v2207 = vadd.f32 0.0, %v2206
    %2208 = vmatprep.mubr.f32.mxu0 0.0
    %2209 = vmatmul.mubr.f32.gmra.mrb[0].mxu0 %v2132
    %v2210 = vpop.f32.mrb[0].mxu0
    %v2211 = vadd.f32 0.0, %v2210
    %v2212 = vpop.f32.mrb[0].mxu0
    %v2213 = vadd.f32 0.0, %v2212
    %2214 = vmatprep.mubr.f32.mxu0 0.0
    %2215 = vmatmul.mubr.f32.gmra.mrb[0].mxu0 %v2134
    %v2216 = vpop.f32.mrb[0].mxu0
    %v2217 = vadd.f32 0.0, %v2216
    %v2218 = vpop.f32.mrb[0].mxu0
    %v2219 = vadd.f32 0.0, %v2218
    %2220 = vmatprep.mubr.f32.mxu0 0.0
    %2221 = vmatmul.mubr.f32.gmra.mrb[0].mxu0 %v2136
    %v2222 = vpop.f32.mrb[0].mxu0
    %v2223 = vadd.f32 0.0, %v2222
    %v2224 = vpop.f32.mrb[0].mxu0
    %v2225 = vadd.f32 0.0, %v2224
    %2226 = vdwg.mxu0
    %v2227 = vsel %vm395, %v2115, 0
    %v2229 = vsel %vm395, %v2116, 0
    %v2231 = vsel %vm395, %v2117, 0
    %v2233 = vsel %vm395, %v2118, 0
    %2235 = vmatprep.subr.mxu0 %v93
    %2236 = vmatpush1.msra.mxu0 %v92
    %2237 = vmatprep.subr.mxu0 %v95
    %2238 = vmatpush1.msra.mxu0 %v94
    %2239 = vmatprep.subr.mxu0 %v97
    %2240 = vmatpush1.msra.mxu0 %v96
    %2241 = vmatprep.subr.mxu0 %v99
    %2242 = vmatpush1.msra.mxu0 %v98
    %2243 = vmatprep.subr.mxu0 0.0
    %2244 = vmatpush1.msra.mxu0 0.0
    %2245 = vmatprep.subr.mxu0 0.0
    %2246 = vmatpush1.msra.mxu0 0.0
    %2247 = vmatprep.subr.mxu0 0.0
    %2248 = vmatpush1.msra.mxu0 0.0
    %2249 = vmatprep.subr.mxu0 0.0
    %2250 = vmatpush1.msra.mxu0 0.0
    %2251 = vmatprep.subr.mxu0 0.0
    %2252 = vmatpush1.msra.mxu0 0.0
    %2253 = vmatprep.subr.mxu0 0.0
    %2254 = vmatpush1.msra.mxu0 0.0
    %2255 = vmatprep.subr.mxu0 0.0
    %2256 = vmatpush1.msra.mxu0 0.0
    %2257 = vmatprep.subr.mxu0 0.0
    %2258 = vmatpush1.msra.mxu0 0.0
    %2259 = vmatprep.subr.mxu0 0.0
    %2260 = vmatpush1.msra.mxu0 0.0
    %2261 = vmatprep.subr.mxu0 0.0
    %2262 = vmatpush1.msra.mxu0 0.0
    %2263 = vmatprep.subr.mxu0 0.0
    %2264 = vmatpush1.msra.mxu0 0.0
    %2265 = vmatprep.subr.mxu0 0.0
    %2266 = vmatpush1.msra.mxu0 0.0
    %2267 = vmatprep.subr.mxu0 0.0
    %2268 = vmatpush1.msra.mxu0 0.0
    %2269 = vmatprep.subr.mxu0 0.0
    %2270 = vmatpush1.msra.mxu0 0.0
    %2271 = vmatprep.subr.mxu0 0.0
    %2272 = vmatpush1.msra.mxu0 0.0
    %2273 = vmatprep.subr.mxu0 0.0
    %2274 = vmatpush1.msra.mxu0 0.0
    %2275 = vmatprep.subr.mxu0 0.0
    %2276 = vmatpush1.msra.mxu0 0.0
    %2277 = vmatprep.subr.mxu0 0.0
    %2278 = vmatpush1.msra.mxu0 0.0
    %2279 = vmatprep.subr.mxu0 0.0
    %2280 = vmatpush1.msra.mxu0 0.0
    %2281 = vmatprep.subr.mxu0 0.0
    %2282 = vmatpush1.msra.mxu0 0.0
    %2283 = vmatprep.subr.mxu0 0.0
    %2284 = vmatpush1.msra.mxu0 0.0
    %2285 = vmatprep.subr.mxu0 0.0
    %2286 = vmatpush1.msra.mxu0 0.0
    %2287 = vmatprep.subr.mxu0 0.0
    %2288 = vmatpush1.msra.mxu0 0.0
    %2289 = vmatprep.subr.mxu0 0.0
    %2290 = vmatpush1.msra.mxu0 0.0
    %2291 = vmatprep.subr.mxu0 0.0
    %2292 = vmatpush1.msra.mxu0 0.0
    %2293 = vmatprep.subr.mxu0 0.0
    %2294 = vmatpush1.msra.mxu0 0.0
    %2295 = vmatprep.subr.mxu0 0.0
    %2296 = vmatpush1.msra.mxu0 0.0
    %2297 = vmatprep.subr.mxu0 0.0
    %2298 = vmatpush1.msra.mxu0 0.0
    %2299 = vmatprep.mubr.f32.mxu0 0.0
    %2300 = vmatmul.mubr.f32.gmra.mrb[0].mxu0 %v2227
    %v2301 = vpop.f32.mrb[0].mxu0
    %v2302 = vadd.f32 %v2205, %v2301
    %v2303 = vpop.f32.mrb[0].mxu0
    %v2304 = vadd.f32 %v2207, %v2303
    %2305 = vmatprep.mubr.f32.mxu0 0.0
    %2306 = vmatmul.mubr.f32.gmra.mrb[0].mxu0 %v2229
    %v2307 = vpop.f32.mrb[0].mxu0
    %v2308 = vadd.f32 %v2211, %v2307
    %v2309 = vpop.f32.mrb[0].mxu0
    %v2310 = vadd.f32 %v2213, %v2309
    %2311 = vmatprep.mubr.f32.mxu0 0.0
    %2312 = vmatmul.mubr.f32.gmra.mrb[0].mxu0 %v2231
    %v2313 = vpop.f32.mrb[0].mxu0
    %v2314 = vadd.f32 %v2217, %v2313
    %v2315 = vpop.f32.mrb[0].mxu0
    %v2316 = vadd.f32 %v2219, %v2315
    %2317 = vmatprep.mubr.f32.mxu0 0.0
    %2318 = vmatmul.mubr.f32.gmra.mrb[0].mxu0 %v2233
    %v2319 = vpop.f32.mrb[0].mxu0
    %v2320 = vadd.f32 %v2223, %v2319
    %v2321 = vpop.f32.mrb[0].mxu0
    %v2322 = vadd.f32 %v2225, %v2321
    %2323 = vdwg.mxu0
    %v2324 = vrot.slane %v2115, 2
    %v2325 = vrot.slane %v2116, 2
    %v2326 = vsel %vm590, %v2324, %v2325
    %v2327 = vrot.slane %v2117, 2
    %v2328 = vsel %vm590, %v2325, %v2327
    %v2329 = vrot.slane %v2118, 2
    %v2330 = vsel %vm590, %v2327, %v2329
    %v2331 = vsel %vm395, %v2326, 0
    %v2333 = vsel %vm395, %v2328, 0
    %v2335 = vsel %vm395, %v2330, 0
    %v2337 = vsel %vm395, %v2329, 0
    %2339 = vmatprep.subr.mxu0 %v111
    %2340 = vmatpush1.msra.mxu0 %v110
    %2341 = vmatprep.subr.mxu0 %v113
    %2342 = vmatpush1.msra.mxu0 %v112
    %2343 = vmatprep.subr.mxu0 %v115
    %2344 = vmatpush1.msra.mxu0 %v114
    %2345 = vmatprep.subr.mxu0 %v117
    %2346 = vmatpush1.msra.mxu0 %v116
    %2347 = vmatprep.subr.mxu0 0.0
    %2348 = vmatpush1.msra.mxu0 0.0
    %2349 = vmatprep.subr.mxu0 0.0
    %2350 = vmatpush1.msra.mxu0 0.0
    %2351 = vmatprep.subr.mxu0 0.0
    %2352 = vmatpush1.msra.mxu0 0.0
    %2353 = vmatprep.subr.mxu0 0.0
    %2354 = vmatpush1.msra.mxu0 0.0
    %2355 = vmatprep.subr.mxu0 0.0
    %2356 = vmatpush1.msra.mxu0 0.0
    %2357 = vmatprep.subr.mxu0 0.0
    %2358 = vmatpush1.msra.mxu0 0.0
    %2359 = vmatprep.subr.mxu0 0.0
    %2360 = vmatpush1.msra.mxu0 0.0
    %2361 = vmatprep.subr.mxu0 0.0
    %2362 = vmatpush1.msra.mxu0 0.0
    %2363 = vmatprep.subr.mxu0 0.0
    %2364 = vmatpush1.msra.mxu0 0.0
    %2365 = vmatprep.subr.mxu0 0.0
    %2366 = vmatpush1.msra.mxu0 0.0
    %2367 = vmatprep.subr.mxu0 0.0
    %2368 = vmatpush1.msra.mxu0 0.0
    %2369 = vmatprep.subr.mxu0 0.0
    %2370 = vmatpush1.msra.mxu0 0.0
    %2371 = vmatprep.subr.mxu0 0.0
    %2372 = vmatpush1.msra.mxu0 0.0
    %2373 = vmatprep.subr.mxu0 0.0
    %2374 = vmatpush1.msra.mxu0 0.0
    %2375 = vmatprep.subr.mxu0 0.0
    %2376 = vmatpush1.msra.mxu0 0.0
    %2377 = vmatprep.subr.mxu0 0.0
    %2378 = vmatpush1.msra.mxu0 0.0
    %2379 = vmatprep.subr.mxu0 0.0
    %2380 = vmatpush1.msra.mxu0 0.0
    %2381 = vmatprep.subr.mxu0 0.0
    %2382 = vmatpush1.msra.mxu0 0.0
    %2383 = vmatprep.subr.mxu0 0.0
    %2384 = vmatpush1.msra.mxu0 0.0
    %2385 = vmatprep.subr.mxu0 0.0
    %2386 = vmatpush1.msra.mxu0 0.0
    %2387 = vmatprep.subr.mxu0 0.0
    %2388 = vmatpush1.msra.mxu0 0.0
    %2389 = vmatprep.subr.mxu0 0.0
    %2390 = vmatpush1.msra.mxu0 0.0
    %2391 = vmatprep.subr.mxu0 0.0
    %2392 = vmatpush1.msra.mxu0 0.0
    %2393 = vmatprep.subr.mxu0 0.0
    %2394 = vmatpush1.msra.mxu0 0.0
    %2395 = vmatprep.subr.mxu0 0.0
    %2396 = vmatpush1.msra.mxu0 0.0
    %2397 = vmatprep.subr.mxu0 0.0
    %2398 = vmatpush1.msra.mxu0 0.0
    %2399 = vmatprep.subr.mxu0 0.0
    %2400 = vmatpush1.msra.mxu0 0.0
    %2401 = vmatprep.subr.mxu0 0.0
    %2402 = vmatpush1.msra.mxu0 0.0
    %2403 = vmatprep.mubr.f32.mxu0 0.0
    %2404 = vmatmul.mubr.f32.gmra.mrb[0].mxu0 %v2331
    %v2405 = vpop.f32.mrb[0].mxu0
    %v2406 = vadd.f32 0.0, %v2405
    %v2407 = vpop.f32.mrb[0].mxu0
    %v2408 = vadd.f32 0.0, %v2407
    %2409 = vmatprep.mubr.f32.mxu0 0.0
    %2410 = vmatmul.mubr.f32.gmra.mrb[0].mxu0 %v2333
    %v2411 = vpop.f32.mrb[0].mxu0
    %v2412 = vadd.f32 0.0, %v2411
    %v2413 = vpop.f32.mrb[0].mxu0
    %v2414 = vadd.f32 0.0, %v2413
    %2415 = vmatprep.mubr.f32.mxu0 0.0
    %2416 = vmatmul.mubr.f32.gmra.mrb[0].mxu0 %v2335
    %v2417 = vpop.f32.mrb[0].mxu0
    %v2418 = vadd.f32 0.0, %v2417
    %v2419 = vpop.f32.mrb[0].mxu0
    %v2420 = vadd.f32 0.0, %v2419
    %2421 = vmatprep.mubr.f32.mxu0 0.0
    %2422 = vmatmul.mubr.f32.gmra.mrb[0].mxu0 %v2337
    %v2423 = vpop.f32.mrb[0].mxu0
    %v2424 = vadd.f32 0.0, %v2423
    %v2425 = vpop.f32.mrb[0].mxu0
    %v2426 = vadd.f32 0.0, %v2425
    %2427 = vdwg.mxu0
    %v2428 = vadd.f32 %v2302, %v2406
    %v2429 = vadd.f32 %v2304, %v2408
    %v2430 = vadd.f32 %v2308, %v2412
    %v2431 = vadd.f32 %v2310, %v2414
    %v2432 = vadd.f32 %v2314, %v2418
    %v2433 = vadd.f32 %v2316, %v2420
    %v2434 = vadd.f32 %v2320, %v2424
    %v2435 = vadd.f32 %v2322, %v2426
    %v2436 = vadd.f32 %v2428, %v707
    %v2437 = vadd.f32 %v2429, %v711
    %v2438 = vadd.f32 %v2430, %v707
    %v2439 = vadd.f32 %v2431, %v711
    %v2440 = vadd.f32 %v2432, %v707
    %v2441 = vadd.f32 %v2433, %v711
    %v2442 = vadd.f32 %v2434, %v707
    %v2443 = vadd.f32 %v2435, %v711
    %v2444 = vmax.f32 %v2436, 0.0
    %v2445 = vmax.f32 %v2437, 0.0
    %v2446 = vmax.f32 %v2438, 0.0
    %v2447 = vmax.f32 %v2439, 0.0
    %v2448 = vmax.f32 %v2440, 0.0
    %v2449 = vmax.f32 %v2441, 0.0
    %v2450 = vmax.f32 %v2442, 0.0
    %v2451 = vmax.f32 %v2443, 0.0
    %v2453 = vsel %vm590, %v2450, 0
    %v2456 = vsel %vm590, %v2451, 0
    %2458 = vmatprep.subr.mxu0 %v2445
    %2459 = vmatpush1.msra.mxu0 %v2444
    %2460 = vmatprep.subr.mxu0 %v2447
    %2461 = vmatpush1.msra.mxu0 %v2446
    %2462 = vmatprep.subr.mxu0 %v2449
    %2463 = vmatpush1.msra.mxu0 %v2448
    %2464 = vmatprep.subr.mxu0 %v2456
    %2465 = vmatpush1.msra.mxu0 %v2453
    %2466 = vmatprep.subr.mxu0 0.0
    %2467 = vmatpush1.msra.mxu0 0.0
    %2468 = vmatprep.subr.mxu0 0.0
    %2469 = vmatpush1.msra.mxu0 0.0
    %2470 = vmatprep.subr.mxu0 0.0
    %2471 = vmatpush1.msra.mxu0 0.0
    %2472 = vmatprep.subr.mxu0 0.0
    %2473 = vmatpush1.msra.mxu0 0.0
    %2474 = vmatprep.subr.mxu0 0.0
    %2475 = vmatpush1.msra.mxu0 0.0
    %2476 = vmatprep.subr.mxu0 0.0
    %2477 = vmatpush1.msra.mxu0 0.0
    %2478 = vmatprep.subr.mxu0 0.0
    %2479 = vmatpush1.msra.mxu0 0.0
    %2480 = vmatprep.subr.mxu0 0.0
    %2481 = vmatpush1.msra.mxu0 0.0
    %2482 = vmatprep.subr.mxu0 0.0
    %2483 = vmatpush1.msra.mxu0 0.0
    %2484 = vmatprep.subr.mxu0 0.0
    %2485 = vmatpush1.msra.mxu0 0.0
    %2486 = vmatprep.subr.mxu0 0.0
    %2487 = vmatpush1.msra.mxu0 0.0
    %2488 = vmatprep.subr.mxu0 0.0
    %2489 = vmatpush1.msra.mxu0 0.0
    %2490 = vmatprep.subr.mxu0 0.0
    %2491 = vmatpush1.msra.mxu0 0.0
    %2492 = vmatprep.subr.mxu0 0.0
    %2493 = vmatpush1.msra.mxu0 0.0
    %2494 = vmatprep.subr.mxu0 0.0
    %2495 = vmatpush1.msra.mxu0 0.0
    %2496 = vmatprep.subr.mxu0 0.0
    %2497 = vmatpush1.msra.mxu0 0.0
    %2498 = vmatprep.subr.mxu0 0.0
    %2499 = vmatpush1.msra.mxu0 0.0
    %2500 = vmatprep.subr.mxu0 0.0
    %2501 = vmatpush1.msra.mxu0 0.0
    %2502 = vmatprep.subr.mxu0 0.0
    %2503 = vmatpush1.msra.mxu0 0.0
    %2504 = vmatprep.subr.mxu0 0.0
    %2505 = vmatpush1.msra.mxu0 0.0
    %2506 = vmatprep.subr.mxu0 0.0
    %2507 = vmatpush1.msra.mxu0 0.0
    %2508 = vmatprep.subr.mxu0 0.0
    %2509 = vmatpush1.msra.mxu0 0.0
    %2510 = vmatprep.subr.mxu0 0.0
    %2511 = vmatpush1.msra.mxu0 0.0
    %2512 = vmatprep.subr.mxu0 0.0
    %2513 = vmatpush1.msra.mxu0 0.0
    %2514 = vmatprep.subr.mxu0 0.0
    %2515 = vmatpush1.msra.mxu0 0.0
    %2516 = vmatprep.subr.mxu0 0.0
    %2517 = vmatpush1.msra.mxu0 0.0
    %2518 = vmatprep.subr.mxu0 0.0
    %2519 = vmatpush1.msra.mxu0 0.0
    %2520 = vmatprep.subr.mxu0 0.0
    %2521 = vmatpush1.msra.mxu0 0.0
    %2522 = vmatprep.mubr.f32.mxu0 0.0
    %2523 = vmatmul.mubr.f32.gmra.mrb[0].mxu0 %v732
    %v2524 = vpop.f32.mrb[0].mxu0
    %v2525 = vadd.f32 0.0, %v2524
    %v2526 = vpop.f32.mrb[0].mxu0
    %v2527 = vadd.f32 0.0, %v2526
    %2528 = vmatprep.mubr.f32.mxu0 0.0
    %2529 = vmatmul.mubr.f32.gmra.mrb[0].mxu0 %v735
    %v2530 = vpop.f32.mrb[0].mxu0
    %v2531 = vadd.f32 0.0, %v2530
    %v2532 = vpop.f32.mrb[0].mxu0
    %v2533 = vadd.f32 0.0, %v2532
    %2534 = vdwg.mxu0
    %2535 = vmatprep.subr.mxu0 %v2445
    %2536 = vmatpush1.msra.mxu0 %v2444
    %2537 = vmatprep.subr.mxu0 %v2447
    %2538 = vmatpush1.msra.mxu0 %v2446
    %2539 = vmatprep.subr.mxu0 %v2449
    %2540 = vmatpush1.msra.mxu0 %v2448
    %2541 = vmatprep.subr.mxu0 %v2456
    %2542 = vmatpush1.msra.mxu0 %v2453
    %2543 = vmatprep.subr.mxu0 0.0
    %2544 = vmatpush1.msra.mxu0 0.0
    %2545 = vmatprep.subr.mxu0 0.0
    %2546 = vmatpush1.msra.mxu0 0.0
    %2547 = vmatprep.subr.mxu0 0.0
    %2548 = vmatpush1.msra.mxu0 0.0
    %2549 = vmatprep.subr.mxu0 0.0
    %2550 = vmatpush1.msra.mxu0 0.0
    %2551 = vmatprep.subr.mxu0 0.0
    %2552 = vmatpush1.msra.mxu0 0.0
    %2553 = vmatprep.subr.mxu0 0.0
    %2554 = vmatpush1.msra.mxu0 0.0
    %2555 = vmatprep.subr.mxu0 0.0
    %2556 = vmatpush1.msra.mxu0 0.0
    %2557 = vmatprep.subr.mxu0 0.0
    %2558 = vmatpush1.msra.mxu0 0.0
    %2559 = vmatprep.subr.mxu0 0.0
    %2560 = vmatpush1.msra.mxu0 0.0
    %2561 = vmatprep.subr.mxu0 0.0
    %2562 = vmatpush1.msra.mxu0 0.0
    %2563 = vmatprep.subr.mxu0 0.0
    %2564 = vmatpush1.msra.mxu0 0.0
    %2565 = vmatprep.subr.mxu0 0.0
    %2566 = vmatpush1.msra.mxu0 0.0
    %2567 = vmatprep.subr.mxu0 0.0
    %2568 = vmatpush1.msra.mxu0 0.0
    %2569 = vmatprep.subr.mxu0 0.0
    %2570 = vmatpush1.msra.mxu0 0.0
    %2571 = vmatprep.subr.mxu0 0.0
    %2572 = vmatpush1.msra.mxu0 0.0
    %2573 = vmatprep.subr.mxu0 0.0
    %2574 = vmatpush1.msra.mxu0 0.0
    %2575 = vmatprep.subr.mxu0 0.0
    %2576 = vmatpush1.msra.mxu0 0.0
    %2577 = vmatprep.subr.mxu0 0.0
    %2578 = vmatpush1.msra.mxu0 0.0
    %2579 = vmatprep.subr.mxu0 0.0
    %2580 = vmatpush1.msra.mxu0 0.0
    %2581 = vmatprep.subr.mxu0 0.0
    %2582 = vmatpush1.msra.mxu0 0.0
    %2583 = vmatprep.subr.mxu0 0.0
    %2584 = vmatpush1.msra.mxu0 0.0
    %2585 = vmatprep.subr.mxu0 0.0
    %2586 = vmatpush1.msra.mxu0 0.0
    %2587 = vmatprep.subr.mxu0 0.0
    %2588 = vmatpush1.msra.mxu0 0.0
    %2589 = vmatprep.subr.mxu0 0.0
    %2590 = vmatpush1.msra.mxu0 0.0
    %2591 = vmatprep.subr.mxu0 0.0
    %2592 = vmatpush1.msra.mxu0 0.0
    %2593 = vmatprep.subr.mxu0 0.0
    %2594 = vmatpush1.msra.mxu0 0.0
    %2595 = vmatprep.subr.mxu0 0.0
    %2596 = vmatpush1.msra.mxu0 0.0
    %2597 = vmatprep.subr.mxu0 0.0
    %2598 = vmatpush1.msra.mxu0 0.0
    %2599 = vmatprep.mubr.f32.mxu0 0.0
    %2600 = vmatmul.mubr.f32.gmra.mrb[0].mxu0 %v821
    %v2601 = vpop.f32.mrb[0].mxu0
    %v2602 = vadd.f32 0.0, %v2601
    %v2603 = vpop.f32.mrb[0].mxu0
    %v2604 = vadd.f32 0.0, %v2603
    %2605 = vmatprep.mubr.f32.mxu0 0.0
    %2606 = vmatmul.mubr.f32.gmra.mrb[0].mxu0 %v824
    %v2607 = vpop.f32.mrb[0].mxu0
    %v2608 = vadd.f32 0.0, %v2607
    %v2609 = vpop.f32.mrb[0].mxu0
    %v2610 = vadd.f32 0.0, %v2609
    %2611 = vdwg.mxu0
    %v2612 = vmax.f32 %v2525, %v2602
    %v2613 = vmax.f32 %v2527, %v2604
    %v2614 = vmax.f32 %v2531, %v2608
    %v2615 = vmax.f32 %v2533, %v2610
    %v2617 = vsel %vm907, %v2613, 0
    %v2620 = vsel %vm907, %v2615, 0
    %2622 = vmatprep.subr.mxu0 0.0
    %2623 = vmatpush1.msra.mxu0 %v123
    %2624 = vmatprep.subr.mxu0 0.0
    %2625 = vmatpush1.msra.mxu0 %v124
    %2626 = vmatprep.subr.mxu0 0.0
    %2627 = vmatpush1.msra.mxu0 %v125
    %2628 = vmatprep.subr.mxu0 0.0
    %2629 = vmatpush1.msra.mxu0 %v126
    %2630 = vmatprep.subr.mxu0 0.0
    %2631 = vmatpush1.msra.mxu0 %v127
    %2632 = vmatprep.subr.mxu0 0.0
    %2633 = vmatpush1.msra.mxu0 %v128
    %2634 = vmatprep.subr.mxu0 0.0
    %2635 = vmatpush1.msra.mxu0 %v129
    %2636 = vmatprep.subr.mxu0 0.0
    %2637 = vmatpush1.msra.mxu0 %v130
    %2638 = vmatprep.subr.mxu0 0.0
    %2639 = vmatpush1.msra.mxu0 %v131
    %2640 = vmatprep.subr.mxu0 0.0
    %2641 = vmatpush1.msra.mxu0 %v132
    %2642 = vmatprep.subr.mxu0 0.0
    %2643 = vmatpush1.msra.mxu0 %v133
    %2644 = vmatprep.subr.mxu0 0.0
    %2645 = vmatpush1.msra.mxu0 %v134
    %2646 = vmatprep.subr.mxu0 0.0
    %2647 = vmatpush1.msra.mxu0 %v135
    %2648 = vmatprep.subr.mxu0 0.0
    %2649 = vmatpush1.msra.mxu0 %v136
    %2650 = vmatprep.subr.mxu0 0.0
    %2651 = vmatpush1.msra.mxu0 %v137
    %2652 = vmatprep.subr.mxu0 0.0
    %2653 = vmatpush1.msra.mxu0 %v138
    %2654 = vmatprep.subr.mxu0 0.0
    %2655 = vmatpush1.msra.mxu0 %v139
    %2656 = vmatprep.subr.mxu0 0.0
    %2657 = vmatpush1.msra.mxu0 %v140
    %2658 = vmatprep.subr.mxu0 0.0
    %2659 = vmatpush1.msra.mxu0 %v141
    %2660 = vmatprep.subr.mxu0 0.0
    %2661 = vmatpush1.msra.mxu0 %v142
    %2662 = vmatprep.subr.mxu0 0.0
    %2663 = vmatpush1.msra.mxu0 %v143
    %2664 = vmatprep.subr.mxu0 0.0
    %2665 = vmatpush1.msra.mxu0 %v144
    %2666 = vmatprep.subr.mxu0 0.0
    %2667 = vmatpush1.msra.mxu0 %v916
    %2668 = vmatprep.subr.mxu0 0.0
    %2669 = vmatpush1.msra.mxu0 0.0
    %2670 = vmatprep.subr.mxu0 0.0
    %2671 = vmatpush1.msra.mxu0 0.0
    %2672 = vmatprep.subr.mxu0 0.0
    %2673 = vmatpush1.msra.mxu0 0.0
    %2674 = vmatprep.subr.mxu0 0.0
    %2675 = vmatpush1.msra.mxu0 0.0
    %2676 = vmatprep.subr.mxu0 0.0
    %2677 = vmatpush1.msra.mxu0 0.0
    %2678 = vmatprep.subr.mxu0 0.0
    %2679 = vmatpush1.msra.mxu0 0.0
    %2680 = vmatprep.subr.mxu0 0.0
    %2681 = vmatpush1.msra.mxu0 0.0
    %2682 = vmatprep.subr.mxu0 0.0
    %2683 = vmatpush1.msra.mxu0 0.0
    %2684 = vmatprep.subr.mxu0 0.0
    %2685 = vmatpush1.msra.mxu0 0.0
    %2686 = vmatprep.mubr.f32.mxu0 %v2617
    %2687 = vmatmul.mubr.f32.gmra.mrb[0].mxu0 %v2612
    %v2688 = vpop.f32.mrb[0].mxu0
    %v2689 = vadd.f32 0.0, %v2688
    %v2690 = vpop.f32.mrb[0].mxu0
    %2691 = vmatprep.mubr.f32.mxu0 %v2620
    %2692 = vmatmul.mubr.f32.gmra.mrb[0].mxu0 %v2614
    %v2693 = vpop.f32.mrb[0].mxu0
    %v2694 = vadd.f32 0.0, %v2693
    %v2695 = vpop.f32.mrb[0].mxu0
    %2696 = vdwg.mxu0
    %2697 = vmatprep.subr.mxu0 0.0
    %2698 = vmatpush1.msra.mxu0 %v147
    %2699 = vmatprep.subr.mxu0 0.0
    %2700 = vmatpush1.msra.mxu0 %v148
    %2701 = vmatprep.subr.mxu0 0.0
    %2702 = vmatpush1.msra.mxu0 %v149
    %2703 = vmatprep.subr.mxu0 0.0
    %2704 = vmatpush1.msra.mxu0 %v150
    %2705 = vmatprep.subr.mxu0 0.0
    %2706 = vmatpush1.msra.mxu0 %v151
    %2707 = vmatprep.subr.mxu0 0.0
    %2708 = vmatpush1.msra.mxu0 %v152
    %2709 = vmatprep.subr.mxu0 0.0
    %2710 = vmatpush1.msra.mxu0 %v153
    %2711 = vmatprep.subr.mxu0 0.0
    %2712 = vmatpush1.msra.mxu0 %v154
    %2713 = vmatprep.subr.mxu0 0.0
    %2714 = vmatpush1.msra.mxu0 %v155
    %2715 = vmatprep.subr.mxu0 0.0
    %2716 = vmatpush1.msra.mxu0 %v156
    %2717 = vmatprep.subr.mxu0 0.0
    %2718 = vmatpush1.msra.mxu0 %v157
    %2719 = vmatprep.subr.mxu0 0.0
    %2720 = vmatpush1.msra.mxu0 %v158
    %2721 = vmatprep.subr.mxu0 0.0
    %2722 = vmatpush1.msra.mxu0 %v159
    %2723 = vmatprep.subr.mxu0 0.0
    %2724 = vmatpush1.msra.mxu0 %v160
    %2725 = vmatprep.subr.mxu0 0.0
    %2726 = vmatpush1.msra.mxu0 %v161
    %2727 = vmatprep.subr.mxu0 0.0
    %2728 = vmatpush1.msra.mxu0 %v162
    %2729 = vmatprep.subr.mxu0 0.0
    %2730 = vmatpush1.msra.mxu0 %v163
    %2731 = vmatprep.subr.mxu0 0.0
    %2732 = vmatpush1.msra.mxu0 %v164
    %2733 = vmatprep.subr.mxu0 0.0
    %2734 = vmatpush1.msra.mxu0 %v165
    %2735 = vmatprep.subr.mxu0 0.0
    %2736 = vmatpush1.msra.mxu0 %v166
    %2737 = vmatprep.subr.mxu0 0.0
    %2738 = vmatpush1.msra.mxu0 %v167
    %2739 = vmatprep.subr.mxu0 0.0
    %2740 = vmatpush1.msra.mxu0 %v168
    %2741 = vmatprep.subr.mxu0 0.0
    %2742 = vmatpush1.msra.mxu0 %v994
    %2743 = vmatprep.subr.mxu0 0.0
    %2744 = vmatpush1.msra.mxu0 0.0
    %2745 = vmatprep.subr.mxu0 0.0
    %2746 = vmatpush1.msra.mxu0 0.0
    %2747 = vmatprep.subr.mxu0 0.0
    %2748 = vmatpush1.msra.mxu0 0.0
    %2749 = vmatprep.subr.mxu0 0.0
    %2750 = vmatpush1.msra.mxu0 0.0
    %2751 = vmatprep.subr.mxu0 0.0
    %2752 = vmatpush1.msra.mxu0 0.0
    %2753 = vmatprep.subr.mxu0 0.0
    %2754 = vmatpush1.msra.mxu0 0.0
    %2755 = vmatprep.subr.mxu0 0.0
    %2756 = vmatpush1.msra.mxu0 0.0
    %2757 = vmatprep.subr.mxu0 0.0
    %2758 = vmatpush1.msra.mxu0 0.0
    %2759 = vmatprep.subr.mxu0 0.0
    %2760 = vmatpush1.msra.mxu0 0.0
    %2761 = vmatprep.mubr.f32.mxu0 %v2617
    %2762 = vmatmul.mubr.f32.gmra.mrb[0].mxu0 %v2612
    %v2763 = vpop.f32.mrb[0].mxu0
    %v2764 = vadd.f32 0.0, %v2763
    %v2765 = vpop.f32.mrb[0].mxu0
    %2766 = vmatprep.mubr.f32.mxu0 %v2620
    %2767 = vmatmul.mubr.f32.gmra.mrb[0].mxu0 %v2614
    %v2768 = vpop.f32.mrb[0].mxu0
    %v2769 = vadd.f32 0.0, %v2768
    %v2770 = vpop.f32.mrb[0].mxu0
    %2771 = vdwg.mxu0
    %v2772 = vmax.f32 %v2689, %v2764
    %v2773 = vmax.f32 %v2694, %v2769
    %v2776 = vrot.slane %v2772, 1
    %v2777 = vrot.slane %v2773, 1
    %v2778 = vsel %vm387, %v2776, %v2777
    %v2779 = vsel %vm1078, %v2778, 0
    %v2781 = vsel %vm1078, %v2777, 0
    %2783 = vmatprep.subr.mxu0 %v196
    %2784 = vmatpush1.msra.mxu0 %v195
    %2785 = vmatprep.subr.mxu0 %v198
    %2786 = vmatpush1.msra.mxu0 %v197
    %2787 = vmatprep.subr.mxu0 %v200
    %2788 = vmatpush1.msra.mxu0 %v199
    %2789 = vmatprep.subr.mxu0 %v202
    %2790 = vmatpush1.msra.mxu0 %v201
    %2791 = vmatprep.subr.mxu0 %v204
    %2792 = vmatpush1.msra.mxu0 %v203
    %2793 = vmatprep.subr.mxu0 %v206
    %2794 = vmatpush1.msra.mxu0 %v205
    %2795 = vmatprep.subr.mxu0 %v208
    %2796 = vmatpush1.msra.mxu0 %v207
    %2797 = vmatprep.subr.mxu0 %v210
    %2798 = vmatpush1.msra.mxu0 %v209
    %2799 = vmatprep.subr.mxu0 %v212
    %2800 = vmatpush1.msra.mxu0 %v211
    %2801 = vmatprep.subr.mxu0 %v214
    %2802 = vmatpush1.msra.mxu0 %v213
    %2803 = vmatprep.subr.mxu0 %v216
    %2804 = vmatpush1.msra.mxu0 %v215
    %2805 = vmatprep.subr.mxu0 %v1088
    %2806 = vmatpush1.msra.mxu0 %v1085
    %2807 = vmatprep.subr.mxu0 0.0
    %2808 = vmatpush1.msra.mxu0 0.0
    %2809 = vmatprep.subr.mxu0 0.0
    %2810 = vmatpush1.msra.mxu0 0.0
    %2811 = vmatprep.subr.mxu0 0.0
    %2812 = vmatpush1.msra.mxu0 0.0
    %2813 = vmatprep.subr.mxu0 0.0
    %2814 = vmatpush1.msra.mxu0 0.0
    %2815 = vmatprep.subr.mxu0 0.0
    %2816 = vmatpush1.msra.mxu0 0.0
    %2817 = vmatprep.subr.mxu0 0.0
    %2818 = vmatpush1.msra.mxu0 0.0
    %2819 = vmatprep.subr.mxu0 0.0
    %2820 = vmatpush1.msra.mxu0 0.0
    %2821 = vmatprep.subr.mxu0 0.0
    %2822 = vmatpush1.msra.mxu0 0.0
    %2823 = vmatprep.subr.mxu0 0.0
    %2824 = vmatpush1.msra.mxu0 0.0
    %2825 = vmatprep.subr.mxu0 0.0
    %2826 = vmatpush1.msra.mxu0 0.0
    %2827 = vmatprep.subr.mxu0 0.0
    %2828 = vmatpush1.msra.mxu0 0.0
    %2829 = vmatprep.subr.mxu0 0.0
    %2830 = vmatpush1.msra.mxu0 0.0
    %2831 = vmatprep.subr.mxu0 0.0
    %2832 = vmatpush1.msra.mxu0 0.0
    %2833 = vmatprep.subr.mxu0 0.0
    %2834 = vmatpush1.msra.mxu0 0.0
    %2835 = vmatprep.subr.mxu0 0.0
    %2836 = vmatpush1.msra.mxu0 0.0
    %2837 = vmatprep.subr.mxu0 0.0
    %2838 = vmatpush1.msra.mxu0 0.0
    %2839 = vmatprep.subr.mxu0 0.0
    %2840 = vmatpush1.msra.mxu0 0.0
    %2841 = vmatprep.subr.mxu0 0.0
    %2842 = vmatpush1.msra.mxu0 0.0
    %2843 = vmatprep.subr.mxu0 0.0
    %2844 = vmatpush1.msra.mxu0 0.0
    %2845 = vmatprep.subr.mxu0 0.0
    %2846 = vmatpush1.msra.mxu0 0.0
    %2847 = vmatprep.mubr.f32.mxu0 0.0
    %2848 = vmatmul.mubr.f32.gmra.mrb[0].mxu0 %v2779
    %v2849 = vpop.f32.mrb[0].mxu0
    %v2850 = vadd.f32 0.0, %v2849
    %v2851 = vpop.f32.mrb[0].mxu0
    %v2852 = vadd.f32 0.0, %v2851
    %2853 = vmatprep.mubr.f32.mxu0 0.0
    %2854 = vmatmul.mubr.f32.gmra.mrb[0].mxu0 %v2781
    %v2855 = vpop.f32.mrb[0].mxu0
    %v2856 = vadd.f32 0.0, %v2855
    %v2857 = vpop.f32.mrb[0].mxu0
    %v2858 = vadd.f32 0.0, %v2857
    %2859 = vdwg.mxu0
    %v2860 = vsel %vm1078, %v2772, 0
    %v2862 = vsel %vm1078, %v2773, 0
    %2864 = vmatprep.subr.mxu0 %v171
    %2865 = vmatpush1.msra.mxu0 %v170
    %2866 = vmatprep.subr.mxu0 %v173
    %2867 = vmatpush1.msra.mxu0 %v172
    %2868 = vmatprep.subr.mxu0 %v175
    %2869 = vmatpush1.msra.mxu0 %v174
    %2870 = vmatprep.subr.mxu0 %v177
    %2871 = vmatpush1.msra.mxu0 %v176
    %2872 = vmatprep.subr.mxu0 %v179
    %2873 = vmatpush1.msra.mxu0 %v178
    %2874 = vmatprep.subr.mxu0 %v181
    %2875 = vmatpush1.msra.mxu0 %v180
    %2876 = vmatprep.subr.mxu0 %v183
    %2877 = vmatpush1.msra.mxu0 %v182
    %2878 = vmatprep.subr.mxu0 %v185
    %2879 = vmatpush1.msra.mxu0 %v184
    %2880 = vmatprep.subr.mxu0 %v187
    %2881 = vmatpush1.msra.mxu0 %v186
    %2882 = vmatprep.subr.mxu0 %v189
    %2883 = vmatpush1.msra.mxu0 %v188
    %2884 = vmatprep.subr.mxu0 %v191
    %2885 = vmatpush1.msra.mxu0 %v190
    %2886 = vmatprep.subr.mxu0 %v1175
    %2887 = vmatpush1.msra.mxu0 %v1172
    %2888 = vmatprep.subr.mxu0 0.0
    %2889 = vmatpush1.msra.mxu0 0.0
    %2890 = vmatprep.subr.mxu0 0.0
    %2891 = vmatpush1.msra.mxu0 0.0
    %2892 = vmatprep.subr.mxu0 0.0
    %2893 = vmatpush1.msra.mxu0 0.0
    %2894 = vmatprep.subr.mxu0 0.0
    %2895 = vmatpush1.msra.mxu0 0.0
    %2896 = vmatprep.subr.mxu0 0.0
    %2897 = vmatpush1.msra.mxu0 0.0
    %2898 = vmatprep.subr.mxu0 0.0
    %2899 = vmatpush1.msra.mxu0 0.0
    %2900 = vmatprep.subr.mxu0 0.0
    %2901 = vmatpush1.msra.mxu0 0.0
    %2902 = vmatprep.subr.mxu0 0.0
    %2903 = vmatpush1.msra.mxu0 0.0
    %2904 = vmatprep.subr.mxu0 0.0
    %2905 = vmatpush1.msra.mxu0 0.0
    %2906 = vmatprep.subr.mxu0 0.0
    %2907 = vmatpush1.msra.mxu0 0.0
    %2908 = vmatprep.subr.mxu0 0.0
    %2909 = vmatpush1.msra.mxu0 0.0
    %2910 = vmatprep.subr.mxu0 0.0
    %2911 = vmatpush1.msra.mxu0 0.0
    %2912 = vmatprep.subr.mxu0 0.0
    %2913 = vmatpush1.msra.mxu0 0.0
    %2914 = vmatprep.subr.mxu0 0.0
    %2915 = vmatpush1.msra.mxu0 0.0
    %2916 = vmatprep.subr.mxu0 0.0
    %2917 = vmatpush1.msra.mxu0 0.0
    %2918 = vmatprep.subr.mxu0 0.0
    %2919 = vmatpush1.msra.mxu0 0.0
    %2920 = vmatprep.subr.mxu0 0.0
    %2921 = vmatpush1.msra.mxu0 0.0
    %2922 = vmatprep.subr.mxu0 0.0
    %2923 = vmatpush1.msra.mxu0 0.0
    %2924 = vmatprep.subr.mxu0 0.0
    %2925 = vmatpush1.msra.mxu0 0.0
    %2926 = vmatprep.subr.mxu0 0.0
    %2927 = vmatpush1.msra.mxu0 0.0
    %2928 = vmatprep.mubr.f32.mxu0 0.0
    %2929 = vmatmul.mubr.f32.gmra.mrb[0].mxu0 %v2860
    %v2930 = vpop.f32.mrb[0].mxu0
    %v2931 = vadd.f32 %v2850, %v2930
    %v2932 = vpop.f32.mrb[0].mxu0
    %v2933 = vadd.f32 %v2852, %v2932
    %2934 = vmatprep.mubr.f32.mxu0 0.0
    %2935 = vmatmul.mubr.f32.gmra.mrb[0].mxu0 %v2862
    %v2936 = vpop.f32.mrb[0].mxu0
    %v2937 = vadd.f32 %v2856, %v2936
    %v2938 = vpop.f32.mrb[0].mxu0
    %v2939 = vadd.f32 %v2858, %v2938
    %2940 = vdwg.mxu0
    %v2941 = vrot.slane %v2772, 2
    %v2942 = vrot.slane %v2773, 2
    %v2943 = vsel %vm590, %v2941, %v2942
    %v2944 = vsel %vm1078, %v2943, 0
    %v2946 = vsel %vm1078, %v2942, 0
    %2948 = vmatprep.subr.mxu0 %v221
    %2949 = vmatpush1.msra.mxu0 %v220
    %2950 = vmatprep.subr.mxu0 %v223
    %2951 = vmatpush1.msra.mxu0 %v222
    %2952 = vmatprep.subr.mxu0 %v225
    %2953 = vmatpush1.msra.mxu0 %v224
    %2954 = vmatprep.subr.mxu0 %v227
    %2955 = vmatpush1.msra.mxu0 %v226
    %2956 = vmatprep.subr.mxu0 %v229
    %2957 = vmatpush1.msra.mxu0 %v228
    %2958 = vmatprep.subr.mxu0 %v231
    %2959 = vmatpush1.msra.mxu0 %v230
    %2960 = vmatprep.subr.mxu0 %v233
    %2961 = vmatpush1.msra.mxu0 %v232
    %2962 = vmatprep.subr.mxu0 %v235
    %2963 = vmatpush1.msra.mxu0 %v234
    %2964 = vmatprep.subr.mxu0 %v237
    %2965 = vmatpush1.msra.mxu0 %v236
    %2966 = vmatprep.subr.mxu0 %v239
    %2967 = vmatpush1.msra.mxu0 %v238
    %2968 = vmatprep.subr.mxu0 %v241
    %2969 = vmatpush1.msra.mxu0 %v240
    %2970 = vmatprep.subr.mxu0 %v1265
    %2971 = vmatpush1.msra.mxu0 %v1262
    %2972 = vmatprep.subr.mxu0 0.0
    %2973 = vmatpush1.msra.mxu0 0.0
    %2974 = vmatprep.subr.mxu0 0.0
    %2975 = vmatpush1.msra.mxu0 0.0
    %2976 = vmatprep.subr.mxu0 0.0
    %2977 = vmatpush1.msra.mxu0 0.0
    %2978 = vmatprep.subr.mxu0 0.0
    %2979 = vmatpush1.msra.mxu0 0.0
    %2980 = vmatprep.subr.mxu0 0.0
    %2981 = vmatpush1.msra.mxu0 0.0
    %2982 = vmatprep.subr.mxu0 0.0
    %2983 = vmatpush1.msra.mxu0 0.0
    %2984 = vmatprep.subr.mxu0 0.0
    %2985 = vmatpush1.msra.mxu0 0.0
    %2986 = vmatprep.subr.mxu0 0.0
    %2987 = vmatpush1.msra.mxu0 0.0
    %2988 = vmatprep.subr.mxu0 0.0
    %2989 = vmatpush1.msra.mxu0 0.0
    %2990 = vmatprep.subr.mxu0 0.0
    %2991 = vmatpush1.msra.mxu0 0.0
    %2992 = vmatprep.subr.mxu0 0.0
    %2993 = vmatpush1.msra.mxu0 0.0
    %2994 = vmatprep.subr.mxu0 0.0
    %2995 = vmatpush1.msra.mxu0 0.0
    %2996 = vmatprep.subr.mxu0 0.0
    %2997 = vmatpush1.msra.mxu0 0.0
    %2998 = vmatprep.subr.mxu0 0.0
    %2999 = vmatpush1.msra.mxu0 0.0
    %3000 = vmatprep.subr.mxu0 0.0
    %3001 = vmatpush1.msra.mxu0 0.0
    %3002 = vmatprep.subr.mxu0 0.0
    %3003 = vmatpush1.msra.mxu0 0.0
    %3004 = vmatprep.subr.mxu0 0.0
    %3005 = vmatpush1.msra.mxu0 0.0
    %3006 = vmatprep.subr.mxu0 0.0
    %3007 = vmatpush1.msra.mxu0 0.0
    %3008 = vmatprep.subr.mxu0 0.0
    %3009 = vmatpush1.msra.mxu0 0.0
    %3010 = vmatprep.subr.mxu0 0.0
    %3011 = vmatpush1.msra.mxu0 0.0
    %3012 = vmatprep.mubr.f32.mxu0 0.0
    %3013 = vmatmul.mubr.f32.gmra.mrb[0].mxu0 %v2944
    %v3014 = vpop.f32.mrb[0].mxu0
    %v3015 = vadd.f32 0.0, %v3014
    %v3016 = vpop.f32.mrb[0].mxu0
    %v3017 = vadd.f32 0.0, %v3016
    %3018 = vmatprep.mubr.f32.mxu0 0.0
    %3019 = vmatmul.mubr.f32.gmra.mrb[0].mxu0 %v2946
    %v3020 = vpop.f32.mrb[0].mxu0
    %v3021 = vadd.f32 0.0, %v3020
    %v3022 = vpop.f32.mrb[0].mxu0
    %v3023 = vadd.f32 0.0, %v3022
    %3024 = vdwg.mxu0
    %v3025 = vadd.f32 %v2931, %v3015
    %v3026 = vadd.f32 %v2933, %v3017
    %v3027 = vadd.f32 %v2937, %v3021
    %v3028 = vadd.f32 %v2939, %v3023
    %v3029 = vadd.f32 %v3025, %v1352
    %v3030 = vadd.f32 %v3026, %v1356
    %v3031 = vadd.f32 %v3027, %v1352
    %v3032 = vadd.f32 %v3028, %v1356
    %v3033 = vmax.f32 %v3029, 0.0
    %v3034 = vmax.f32 %v3030, 0.0
    %v3035 = vmax.f32 %v3031, 0.0
    %v3036 = vmax.f32 %v3032, 0.0
    %v3038 = vsel %vm1371, %v3035, 0
    %v3041 = vsel %vm1371, %v3036, 0
    %3043 = vmatprep.subr.mxu0 %v3034
    %3044 = vmatpush1.msra.mxu0 %v3033
    %3045 = vmatprep.subr.mxu0 %v3041
    %3046 = vmatpush1.msra.mxu0 %v3038
    %3047 = vmatprep.subr.mxu0 0.0
    %3048 = vmatpush1.msra.mxu0 0.0
    %3049 = vmatprep.subr.mxu0 0.0
    %3050 = vmatpush1.msra.mxu0 0.0
    %3051 = vmatprep.subr.mxu0 0.0
    %3052 = vmatpush1.msra.mxu0 0.0
    %3053 = vmatprep.subr.mxu0 0.0
    %3054 = vmatpush1.msra.mxu0 0.0
    %3055 = vmatprep.subr.mxu0 0.0
    %3056 = vmatpush1.msra.mxu0 0.0
    %3057 = vmatprep.subr.mxu0 0.0
    %3058 = vmatpush1.msra.mxu0 0.0
    %3059 = vmatprep.subr.mxu0 0.0
    %3060 = vmatpush1.msra.mxu0 0.0
    %3061 = vmatprep.subr.mxu0 0.0
    %3062 = vmatpush1.msra.mxu0 0.0
    %3063 = vmatprep.subr.mxu0 0.0
    %3064 = vmatpush1.msra.mxu0 0.0
    %3065 = vmatprep.subr.mxu0 0.0
    %3066 = vmatpush1.msra.mxu0 0.0
    %3067 = vmatprep.subr.mxu0 0.0
    %3068 = vmatpush1.msra.mxu0 0.0
    %3069 = vmatprep.subr.mxu0 0.0
    %3070 = vmatpush1.msra.mxu0 0.0
    %3071 = vmatprep.subr.mxu0 0.0
    %3072 = vmatpush1.msra.mxu0 0.0
    %3073 = vmatprep.subr.mxu0 0.0
    %3074 = vmatpush1.msra.mxu0 0.0
    %3075 = vmatprep.subr.mxu0 0.0
    %3076 = vmatpush1.msra.mxu0 0.0
    %3077 = vmatprep.subr.mxu0 0.0
    %3078 = vmatpush1.msra.mxu0 0.0
    %3079 = vmatprep.subr.mxu0 0.0
    %3080 = vmatpush1.msra.mxu0 0.0
    %3081 = vmatprep.subr.mxu0 0.0
    %3082 = vmatpush1.msra.mxu0 0.0
    %3083 = vmatprep.subr.mxu0 0.0
    %3084 = vmatpush1.msra.mxu0 0.0
    %3085 = vmatprep.subr.mxu0 0.0
    %3086 = vmatpush1.msra.mxu0 0.0
    %3087 = vmatprep.subr.mxu0 0.0
    %3088 = vmatpush1.msra.mxu0 0.0
    %3089 = vmatprep.subr.mxu0 0.0
    %3090 = vmatpush1.msra.mxu0 0.0
    %3091 = vmatprep.subr.mxu0 0.0
    %3092 = vmatpush1.msra.mxu0 0.0
    %3093 = vmatprep.subr.mxu0 0.0
    %3094 = vmatpush1.msra.mxu0 0.0
    %3095 = vmatprep.subr.mxu0 0.0
    %3096 = vmatpush1.msra.mxu0 0.0
    %3097 = vmatprep.subr.mxu0 0.0
    %3098 = vmatpush1.msra.mxu0 0.0
    %3099 = vmatprep.subr.mxu0 0.0
    %3100 = vmatpush1.msra.mxu0 0.0
    %3101 = vmatprep.subr.mxu0 0.0
    %3102 = vmatpush1.msra.mxu0 0.0
    %3103 = vmatprep.subr.mxu0 0.0
    %3104 = vmatpush1.msra.mxu0 0.0
    %3105 = vmatprep.subr.mxu0 0.0
    %3106 = vmatpush1.msra.mxu0 0.0
    %3107 = vmatprep.mubr.f32.mxu0 0.0
    %3108 = vmatmul.mubr.f32.gmra.mrb[0].mxu0 %v1369
    %v3109 = vpop.f32.mrb[0].mxu0
    %v3110 = vadd.f32 0.0, %v3109
    %v3111 = vpop.f32.mrb[0].mxu0
    %v3112 = vadd.f32 0.0, %v3111
    %3113 = vdwg.mxu0
    %3114 = vmatprep.subr.mxu0 %v3034
    %3115 = vmatpush1.msra.mxu0 %v3033
    %3116 = vmatprep.subr.mxu0 %v3041
    %3117 = vmatpush1.msra.mxu0 %v3038
    %3118 = vmatprep.subr.mxu0 0.0
    %3119 = vmatpush1.msra.mxu0 0.0
    %3120 = vmatprep.subr.mxu0 0.0
    %3121 = vmatpush1.msra.mxu0 0.0
    %3122 = vmatprep.subr.mxu0 0.0
    %3123 = vmatpush1.msra.mxu0 0.0
    %3124 = vmatprep.subr.mxu0 0.0
    %3125 = vmatpush1.msra.mxu0 0.0
    %3126 = vmatprep.subr.mxu0 0.0
    %3127 = vmatpush1.msra.mxu0 0.0
    %3128 = vmatprep.subr.mxu0 0.0
    %3129 = vmatpush1.msra.mxu0 0.0
    %3130 = vmatprep.subr.mxu0 0.0
    %3131 = vmatpush1.msra.mxu0 0.0
    %3132 = vmatprep.subr.mxu0 0.0
    %3133 = vmatpush1.msra.mxu0 0.0
    %3134 = vmatprep.subr.mxu0 0.0
    %3135 = vmatpush1.msra.mxu0 0.0
    %3136 = vmatprep.subr.mxu0 0.0
    %3137 = vmatpush1.msra.mxu0 0.0
    %3138 = vmatprep.subr.mxu0 0.0
    %3139 = vmatpush1.msra.mxu0 0.0
    %3140 = vmatprep.subr.mxu0 0.0
    %3141 = vmatpush1.msra.mxu0 0.0
    %3142 = vmatprep.subr.mxu0 0.0
    %3143 = vmatpush1.msra.mxu0 0.0
    %3144 = vmatprep.subr.mxu0 0.0
    %3145 = vmatpush1.msra.mxu0 0.0
    %3146 = vmatprep.subr.mxu0 0.0
    %3147 = vmatpush1.msra.mxu0 0.0
    %3148 = vmatprep.subr.mxu0 0.0
    %3149 = vmatpush1.msra.mxu0 0.0
    %3150 = vmatprep.subr.mxu0 0.0
    %3151 = vmatpush1.msra.mxu0 0.0
    %3152 = vmatprep.subr.mxu0 0.0
    %3153 = vmatpush1.msra.mxu0 0.0
    %3154 = vmatprep.subr.mxu0 0.0
    %3155 = vmatpush1.msra.mxu0 0.0
    %3156 = vmatprep.subr.mxu0 0.0
    %3157 = vmatpush1.msra.mxu0 0.0
    %3158 = vmatprep.subr.mxu0 0.0
    %3159 = vmatpush1.msra.mxu0 0.0
    %3160 = vmatprep.subr.mxu0 0.0
    %3161 = vmatpush1.msra.mxu0 0.0
    %3162 = vmatprep.subr.mxu0 0.0
    %3163 = vmatpush1.msra.mxu0 0.0
    %3164 = vmatprep.subr.mxu0 0.0
    %3165 = vmatpush1.msra.mxu0 0.0
    %3166 = vmatprep.subr.mxu0 0.0
    %3167 = vmatpush1.msra.mxu0 0.0
    %3168 = vmatprep.subr.mxu0 0.0
    %3169 = vmatpush1.msra.mxu0 0.0
    %3170 = vmatprep.subr.mxu0 0.0
    %3171 = vmatpush1.msra.mxu0 0.0
    %3172 = vmatprep.subr.mxu0 0.0
    %3173 = vmatpush1.msra.mxu0 0.0
    %3174 = vmatprep.subr.mxu0 0.0
    %3175 = vmatpush1.msra.mxu0 0.0
    %3176 = vmatprep.subr.mxu0 0.0
    %3177 = vmatpush1.msra.mxu0 0.0
    %3178 = vmatprep.mubr.f32.mxu0 0.0
    %3179 = vmatmul.mubr.f32.gmra.mrb[0].mxu0 %v1450
    %v3180 = vpop.f32.mrb[0].mxu0
    %v3181 = vadd.f32 0.0, %v3180
    %v3182 = vpop.f32.mrb[0].mxu0
    %v3183 = vadd.f32 0.0, %v3182
    %3184 = vdwg.mxu0
    %v3185 = vmax.f32 %v3110, %v3181
    %v3186 = vmax.f32 %v3112, %v3183
    %v3188 = vsel %vm1525, %v3186, 0
    %3190 = vmatprep.subr.mxu0 0.0
    %3191 = vmatpush1.msra.mxu0 %v247
    %3192 = vmatprep.subr.mxu0 0.0
    %3193 = vmatpush1.msra.mxu0 %v248
    %3194 = vmatprep.subr.mxu0 0.0
    %3195 = vmatpush1.msra.mxu0 %v249
    %3196 = vmatprep.subr.mxu0 0.0
    %3197 = vmatpush1.msra.mxu0 %v250
    %3198 = vmatprep.subr.mxu0 0.0
    %3199 = vmatpush1.msra.mxu0 %v251
    %3200 = vmatprep.subr.mxu0 0.0
    %3201 = vmatpush1.msra.mxu0 %v252
    %3202 = vmatprep.subr.mxu0 0.0
    %3203 = vmatpush1.msra.mxu0 %v253
    %3204 = vmatprep.subr.mxu0 0.0
    %3205 = vmatpush1.msra.mxu0 %v254
    %3206 = vmatprep.subr.mxu0 0.0
    %3207 = vmatpush1.msra.mxu0 %v255
    %3208 = vmatprep.subr.mxu0 0.0
    %3209 = vmatpush1.msra.mxu0 %v256
    %3210 = vmatprep.subr.mxu0 0.0
    %3211 = vmatpush1.msra.mxu0 %v257
    %3212 = vmatprep.subr.mxu0 0.0
    %3213 = vmatpush1.msra.mxu0 %v258
    %3214 = vmatprep.subr.mxu0 0.0
    %3215 = vmatpush1.msra.mxu0 %v259
    %3216 = vmatprep.subr.mxu0 0.0
    %3217 = vmatpush1.msra.mxu0 %v260
    %3218 = vmatprep.subr.mxu0 0.0
    %3219 = vmatpush1.msra.mxu0 %v261
    %3220 = vmatprep.subr.mxu0 0.0
    %3221 = vmatpush1.msra.mxu0 %v262
    %3222 = vmatprep.subr.mxu0 0.0
    %3223 = vmatpush1.msra.mxu0 %v263
    %3224 = vmatprep.subr.mxu0 0.0
    %3225 = vmatpush1.msra.mxu0 %v264
    %3226 = vmatprep.subr.mxu0 0.0
    %3227 = vmatpush1.msra.mxu0 %v265
    %3228 = vmatprep.subr.mxu0 0.0
    %3229 = vmatpush1.msra.mxu0 %v266
    %3230 = vmatprep.subr.mxu0 0.0
    %3231 = vmatpush1.msra.mxu0 %v267
    %3232 = vmatprep.subr.mxu0 0.0
    %3233 = vmatpush1.msra.mxu0 %v268
    %3234 = vmatprep.subr.mxu0 0.0
    %3235 = vmatpush1.msra.mxu0 %v269
    %3236 = vmatprep.subr.mxu0 0.0
    %3237 = vmatpush1.msra.mxu0 %v270
    %3238 = vmatprep.subr.mxu0 0.0
    %3239 = vmatpush1.msra.mxu0 %v271
    %3240 = vmatprep.subr.mxu0 0.0
    %3241 = vmatpush1.msra.mxu0 %v272
    %3242 = vmatprep.subr.mxu0 0.0
    %3243 = vmatpush1.msra.mxu0 0.0
    %3244 = vmatprep.subr.mxu0 0.0
    %3245 = vmatpush1.msra.mxu0 0.0
    %3246 = vmatprep.subr.mxu0 0.0
    %3247 = vmatpush1.msra.mxu0 0.0
    %3248 = vmatprep.subr.mxu0 0.0
    %3249 = vmatpush1.msra.mxu0 0.0
    %3250 = vmatprep.subr.mxu0 0.0
    %3251 = vmatpush1.msra.mxu0 0.0
    %3252 = vmatprep.subr.mxu0 0.0
    %3253 = vmatpush1.msra.mxu0 0.0
    %3254 = vmatprep.mubr.f32.mxu0 %v3188
    %3255 = vmatmul.mubr.f32.gmra.mrb[0].mxu0 %v3185
    %v3256 = vpop.f32.mrb[0].mxu0
    %v3257 = vadd.f32 0.0, %v3256
    %v3258 = vpop.f32.mrb[0].mxu0
    %3259 = vdwg.mxu0
    %3260 = vmatprep.subr.mxu0 0.0
    %3261 = vmatpush1.msra.mxu0 %v274
    %3262 = vmatprep.subr.mxu0 0.0
    %3263 = vmatpush1.msra.mxu0 %v275
    %3264 = vmatprep.subr.mxu0 0.0
    %3265 = vmatpush1.msra.mxu0 %v276
    %3266 = vmatprep.subr.mxu0 0.0
    %3267 = vmatpush1.msra.mxu0 %v277
    %3268 = vmatprep.subr.mxu0 0.0
    %3269 = vmatpush1.msra.mxu0 %v278
    %3270 = vmatprep.subr.mxu0 0.0
    %3271 = vmatpush1.msra.mxu0 %v279
    %3272 = vmatprep.subr.mxu0 0.0
    %3273 = vmatpush1.msra.mxu0 %v280
    %3274 = vmatprep.subr.mxu0 0.0
    %3275 = vmatpush1.msra.mxu0 %v281
    %3276 = vmatprep.subr.mxu0 0.0
    %3277 = vmatpush1.msra.mxu0 %v282
    %3278 = vmatprep.subr.mxu0 0.0
    %3279 = vmatpush1.msra.mxu0 %v283
    %3280 = vmatprep.subr.mxu0 0.0
    %3281 = vmatpush1.msra.mxu0 %v284
    %3282 = vmatprep.subr.mxu0 0.0
    %3283 = vmatpush1.msra.mxu0 %v285
    %3284 = vmatprep.subr.mxu0 0.0
    %3285 = vmatpush1.msra.mxu0 %v286
    %3286 = vmatprep.subr.mxu0 0.0
    %3287 = vmatpush1.msra.mxu0 %v287
    %3288 = vmatprep.subr.mxu0 0.0
    %3289 = vmatpush1.msra.mxu0 %v288
    %3290 = vmatprep.subr.mxu0 0.0
    %3291 = vmatpush1.msra.mxu0 %v289
    %3292 = vmatprep.subr.mxu0 0.0
    %3293 = vmatpush1.msra.mxu0 %v290
    %3294 = vmatprep.subr.mxu0 0.0
    %3295 = vmatpush1.msra.mxu0 %v291
    %3296 = vmatprep.subr.mxu0 0.0
    %3297 = vmatpush1.msra.mxu0 %v292
    %3298 = vmatprep.subr.mxu0 0.0
    %3299 = vmatpush1.msra.mxu0 %v293
    %3300 = vmatprep.subr.mxu0 0.0
    %3301 = vmatpush1.msra.mxu0 %v294
    %3302 = vmatprep.subr.mxu0 0.0
    %3303 = vmatpush1.msra.mxu0 %v295
    %3304 = vmatprep.subr.mxu0 0.0
    %3305 = vmatpush1.msra.mxu0 %v296
    %3306 = vmatprep.subr.mxu0 0.0
    %3307 = vmatpush1.msra.mxu0 %v297
    %3308 = vmatprep.subr.mxu0 0.0
    %3309 = vmatpush1.msra.mxu0 %v298
    %3310 = vmatprep.subr.mxu0 0.0
    %3311 = vmatpush1.msra.mxu0 %v299
    %3312 = vmatprep.subr.mxu0 0.0
    %3313 = vmatpush1.msra.mxu0 0.0
    %3314 = vmatprep.subr.mxu0 0.0
    %3315 = vmatpush1.msra.mxu0 0.0
    %3316 = vmatprep.subr.mxu0 0.0
    %3317 = vmatpush1.msra.mxu0 0.0
    %3318 = vmatprep.subr.mxu0 0.0
    %3319 = vmatpush1.msra.mxu0 0.0
    %3320 = vmatprep.subr.mxu0 0.0
    %3321 = vmatpush1.msra.mxu0 0.0
    %3322 = vmatprep.subr.mxu0 0.0
    %3323 = vmatpush1.msra.mxu0 0.0
    %3324 = vmatprep.mubr.f32.mxu0 %v3188
    %3325 = vmatmul.mubr.f32.gmra.mrb[0].mxu0 %v3185
    %v3326 = vpop.f32.mrb[0].mxu0
    %v3327 = vadd.f32 0.0, %v3326
    %v3328 = vpop.f32.mrb[0].mxu0
    %3329 = vdwg.mxu0
    %v3330 = vmax.f32 %v3257, %v3327
    %v3332 = vrot.slane %v3330, 1
    %v3333 = vsel %vm1672, %v3332, 0
    %3335 = vmatprep.subr.mxu0 0.0
    %3336 = vmatpush1.msra.mxu0 %v313
    %3337 = vmatprep.subr.mxu0 0.0
    %3338 = vmatpush1.msra.mxu0 %v314
    %3339 = vmatprep.subr.mxu0 0.0
    %3340 = vmatpush1.msra.mxu0 %v315
    %3341 = vmatprep.subr.mxu0 0.0
    %3342 = vmatpush1.msra.mxu0 %v316
    %3343 = vmatprep.subr.mxu0 0.0
    %3344 = vmatpush1.msra.mxu0 %v317
    %3345 = vmatprep.subr.mxu0 0.0
    %3346 = vmatpush1.msra.mxu0 %v318
    %3347 = vmatprep.subr.mxu0 0.0
    %3348 = vmatpush1.msra.mxu0 %v319
    %3349 = vmatprep.subr.mxu0 0.0
    %3350 = vmatpush1.msra.mxu0 %v320
    %3351 = vmatprep.subr.mxu0 0.0
    %3352 = vmatpush1.msra.mxu0 %v321
    %3353 = vmatprep.subr.mxu0 0.0
    %3354 = vmatpush1.msra.mxu0 %v322
    %3355 = vmatprep.subr.mxu0 0.0
    %3356 = vmatpush1.msra.mxu0 %v323
    %3357 = vmatprep.subr.mxu0 0.0
    %3358 = vmatpush1.msra.mxu0 %v324
    %3359 = vmatprep.subr.mxu0 0.0
    %3360 = vmatpush1.msra.mxu0 0.0
    %3361 = vmatprep.subr.mxu0 0.0
    %3362 = vmatpush1.msra.mxu0 0.0
    %3363 = vmatprep.subr.mxu0 0.0
    %3364 = vmatpush1.msra.mxu0 0.0
    %3365 = vmatprep.subr.mxu0 0.0
    %3366 = vmatpush1.msra.mxu0 0.0
    %3367 = vmatprep.subr.mxu0 0.0
    %3368 = vmatpush1.msra.mxu0 0.0
    %3369 = vmatprep.subr.mxu0 0.0
    %3370 = vmatpush1.msra.mxu0 0.0
    %3371 = vmatprep.subr.mxu0 0.0
    %3372 = vmatpush1.msra.mxu0 0.0
    %3373 = vmatprep.subr.mxu0 0.0
    %3374 = vmatpush1.msra.mxu0 0.0
    %3375 = vmatprep.subr.mxu0 0.0
    %3376 = vmatpush1.msra.mxu0 0.0
    %3377 = vmatprep.subr.mxu0 0.0
    %3378 = vmatpush1.msra.mxu0 0.0
    %3379 = vmatprep.subr.mxu0 0.0
    %3380 = vmatpush1.msra.mxu0 0.0
    %3381 = vmatprep.subr.mxu0 0.0
    %3382 = vmatpush1.msra.mxu0 0.0
    %3383 = vmatprep.subr.mxu0 0.0
    %3384 = vmatpush1.msra.mxu0 0.0
    %3385 = vmatprep.subr.mxu0 0.0
    %3386 = vmatpush1.msra.mxu0 0.0
    %3387 = vmatprep.subr.mxu0 0.0
    %3388 = vmatpush1.msra.mxu0 0.0
    %3389 = vmatprep.subr.mxu0 0.0
    %3390 = vmatpush1.msra.mxu0 0.0
    %3391 = vmatprep.subr.mxu0 0.0
    %3392 = vmatpush1.msra.mxu0 0.0
    %3393 = vmatprep.subr.mxu0 0.0
    %3394 = vmatpush1.msra.mxu0 0.0
    %3395 = vmatprep.subr.mxu0 0.0
    %3396 = vmatpush1.msra.mxu0 0.0
    %3397 = vmatprep.subr.mxu0 0.0
    %3398 = vmatpush1.msra.mxu0 0.0
    %3399 = vmatprep.mubr.f32.mxu0 0.0
    %3400 = vmatmul.mubr.f32.gmra.mrb[0].mxu0 %v3333
    %v3401 = vpop.f32.mrb[0].mxu0
    %v3402 = vadd.f32 0.0, %v3401
    %v3403 = vpop.f32.mrb[0].mxu0
    %3404 = vdwg.mxu0
    %v3405 = vsel %vm1672, %v3330, 0
    %3407 = vmatprep.subr.mxu0 0.0
    %3408 = vmatpush1.msra.mxu0 %v300
    %3409 = vmatprep.subr.mxu0 0.0
    %3410 = vmatpush1.msra.mxu0 %v301
    %3411 = vmatprep.subr.mxu0 0.0
    %3412 = vmatpush1.msra.mxu0 %v302
    %3413 = vmatprep.subr.mxu0 0.0
    %3414 = vmatpush1.msra.mxu0 %v303
    %3415 = vmatprep.subr.mxu0 0.0
    %3416 = vmatpush1.msra.mxu0 %v304
    %3417 = vmatprep.subr.mxu0 0.0
    %3418 = vmatpush1.msra.mxu0 %v305
    %3419 = vmatprep.subr.mxu0 0.0
    %3420 = vmatpush1.msra.mxu0 %v306
    %3421 = vmatprep.subr.mxu0 0.0
    %3422 = vmatpush1.msra.mxu0 %v307
    %3423 = vmatprep.subr.mxu0 0.0
    %3424 = vmatpush1.msra.mxu0 %v308
    %3425 = vmatprep.subr.mxu0 0.0
    %3426 = vmatpush1.msra.mxu0 %v309
    %3427 = vmatprep.subr.mxu0 0.0
    %3428 = vmatpush1.msra.mxu0 %v310
    %3429 = vmatprep.subr.mxu0 0.0
    %3430 = vmatpush1.msra.mxu0 %v311
    %3431 = vmatprep.subr.mxu0 0.0
    %3432 = vmatpush1.msra.mxu0 0.0
    %3433 = vmatprep.subr.mxu0 0.0
    %3434 = vmatpush1.msra.mxu0 0.0
    %3435 = vmatprep.subr.mxu0 0.0
    %3436 = vmatpush1.msra.mxu0 0.0
    %3437 = vmatprep.subr.mxu0 0.0
    %3438 = vmatpush1.msra.mxu0 0.0
    %3439 = vmatprep.subr.mxu0 0.0
    %3440 = vmatpush1.msra.mxu0 0.0
    %3441 = vmatprep.subr.mxu0 0.0
    %3442 = vmatpush1.msra.mxu0 0.0
    %3443 = vmatprep.subr.mxu0 0.0
    %3444 = vmatpush1.msra.mxu0 0.0
    %3445 = vmatprep.subr.mxu0 0.0
    %3446 = vmatpush1.msra.mxu0 0.0
    %3447 = vmatprep.subr.mxu0 0.0
    %3448 = vmatpush1.msra.mxu0 0.0
    %3449 = vmatprep.subr.mxu0 0.0
    %3450 = vmatpush1.msra.mxu0 0.0
    %3451 = vmatprep.subr.mxu0 0.0
    %3452 = vmatpush1.msra.mxu0 0.0
    %3453 = vmatprep.subr.mxu0 0.0
    %3454 = vmatpush1.msra.mxu0 0.0
    %3455 = vmatprep.subr.mxu0 0.0
    %3456 = vmatpush1.msra.mxu0 0.0
    %3457 = vmatprep.subr.mxu0 0.0
    %3458 = vmatpush1.msra.mxu0 0.0
    %3459 = vmatprep.subr.mxu0 0.0
    %3460 = vmatpush1.msra.mxu0 0.0
    %3461 = vmatprep.subr.mxu0 0.0
    %3462 = vmatpush1.msra.mxu0 0.0
    %3463 = vmatprep.subr.mxu0 0.0
    %3464 = vmatpush1.msra.mxu0 0.0
    %3465 = vmatprep.subr.mxu0 0.0
    %3466 = vmatpush1.msra.mxu0 0.0
    %3467 = vmatprep.subr.mxu0 0.0
    %3468 = vmatpush1.msra.mxu0 0.0
    %3469 = vmatprep.subr.mxu0 0.0
    %3470 = vmatpush1.msra.mxu0 0.0
    %3471 = vmatprep.mubr.f32.mxu0 0.0
    %3472 = vmatmul.mubr.f32.gmra.mrb[0].mxu0 %v3405
    %v3473 = vpop.f32.mrb[0].mxu0
    %v3474 = vadd.f32 %v3402, %v3473
    %v3475 = vpop.f32.mrb[0].mxu0
    %3476 = vdwg.mxu0
    %v3477 = vrot.slane %v3330, 2
    %v3478 = vsel %vm1672, %v3477, 0
    %3480 = vmatprep.subr.mxu0 0.0
    %3481 = vmatpush1.msra.mxu0 %v326
    %3482 = vmatprep.subr.mxu0 0.0
    %3483 = vmatpush1.msra.mxu0 %v327
    %3484 = vmatprep.subr.mxu0 0.0
    %3485 = vmatpush1.msra.mxu0 %v328
    %3486 = vmatprep.subr.mxu0 0.0
    %3487 = vmatpush1.msra.mxu0 %v329
    %3488 = vmatprep.subr.mxu0 0.0
    %3489 = vmatpush1.msra.mxu0 %v330
    %3490 = vmatprep.subr.mxu0 0.0
    %3491 = vmatpush1.msra.mxu0 %v331
    %3492 = vmatprep.subr.mxu0 0.0
    %3493 = vmatpush1.msra.mxu0 %v332
    %3494 = vmatprep.subr.mxu0 0.0
    %3495 = vmatpush1.msra.mxu0 %v333
    %3496 = vmatprep.subr.mxu0 0.0
    %3497 = vmatpush1.msra.mxu0 %v334
    %3498 = vmatprep.subr.mxu0 0.0
    %3499 = vmatpush1.msra.mxu0 %v335
    %3500 = vmatprep.subr.mxu0 0.0
    %3501 = vmatpush1.msra.mxu0 %v336
    %3502 = vmatprep.subr.mxu0 0.0
    %3503 = vmatpush1.msra.mxu0 %v337
    %3504 = vmatprep.subr.mxu0 0.0
    %3505 = vmatpush1.msra.mxu0 0.0
    %3506 = vmatprep.subr.mxu0 0.0
    %3507 = vmatpush1.msra.mxu0 0.0
    %3508 = vmatprep.subr.mxu0 0.0
    %3509 = vmatpush1.msra.mxu0 0.0
    %3510 = vmatprep.subr.mxu0 0.0
    %3511 = vmatpush1.msra.mxu0 0.0
    %3512 = vmatprep.subr.mxu0 0.0
    %3513 = vmatpush1.msra.mxu0 0.0
    %3514 = vmatprep.subr.mxu0 0.0
    %3515 = vmatpush1.msra.mxu0 0.0
    %3516 = vmatprep.subr.mxu0 0.0
    %3517 = vmatpush1.msra.mxu0 0.0
    %3518 = vmatprep.subr.mxu0 0.0
    %3519 = vmatpush1.msra.mxu0 0.0
    %3520 = vmatprep.subr.mxu0 0.0
    %3521 = vmatpush1.msra.mxu0 0.0
    %3522 = vmatprep.subr.mxu0 0.0
    %3523 = vmatpush1.msra.mxu0 0.0
    %3524 = vmatprep.subr.mxu0 0.0
    %3525 = vmatpush1.msra.mxu0 0.0
    %3526 = vmatprep.subr.mxu0 0.0
    %3527 = vmatpush1.msra.mxu0 0.0
    %3528 = vmatprep.subr.mxu0 0.0
    %3529 = vmatpush1.msra.mxu0 0.0
    %3530 = vmatprep.subr.mxu0 0.0
    %3531 = vmatpush1.msra.mxu0 0.0
    %3532 = vmatprep.subr.mxu0 0.0
    %3533 = vmatpush1.msra.mxu0 0.0
    %3534 = vmatprep.subr.mxu0 0.0
    %3535 = vmatpush1.msra.mxu0 0.0
    %3536 = vmatprep.subr.mxu0 0.0
    %3537 = vmatpush1.msra.mxu0 0.0
    %3538 = vmatprep.subr.mxu0 0.0
    %3539 = vmatpush1.msra.mxu0 0.0
    %3540 = vmatprep.subr.mxu0 0.0
    %3541 = vmatpush1.msra.mxu0 0.0
    %3542 = vmatprep.subr.mxu0 0.0
    %3543 = vmatpush1.msra.mxu0 0.0
    %3544 = vmatprep.mubr.f32.mxu0 0.0
    %3545 = vmatmul.mubr.f32.gmra.mrb[0].mxu0 %v3478
    %v3546 = vpop.f32.mrb[0].mxu0
    %v3547 = vadd.f32 0.0, %v3546
    %v3548 = vpop.f32.mrb[0].mxu0
    %3549 = vdwg.mxu0
    %v3550 = vadd.f32 %v3474, %v3547
    %v3551 = vrot.slane %v3330, 3
    %v3552 = vsel %vm1672, %v3551, 0
    %3554 = vmatprep.subr.mxu0 0.0
    %3555 = vmatpush1.msra.mxu0 %v339
    %3556 = vmatprep.subr.mxu0 0.0
    %3557 = vmatpush1.msra.mxu0 %v340
    %3558 = vmatprep.subr.mxu0 0.0
    %3559 = vmatpush1.msra.mxu0 %v341
    %3560 = vmatprep.subr.mxu0 0.0
    %3561 = vmatpush1.msra.mxu0 %v342
    %3562 = vmatprep.subr.mxu0 0.0
    %3563 = vmatpush1.msra.mxu0 %v343
    %3564 = vmatprep.subr.mxu0 0.0
    %3565 = vmatpush1.msra.mxu0 %v344
    %3566 = vmatprep.subr.mxu0 0.0
    %3567 = vmatpush1.msra.mxu0 %v345
    %3568 = vmatprep.subr.mxu0 0.0
    %3569 = vmatpush1.msra.mxu0 %v346
    %3570 = vmatprep.subr.mxu0 0.0
    %3571 = vmatpush1.msra.mxu0 %v347
    %3572 = vmatprep.subr.mxu0 0.0
    %3573 = vmatpush1.msra.mxu0 %v348
    %3574 = vmatprep.subr.mxu0 0.0
    %3575 = vmatpush1.msra.mxu0 %v349
    %3576 = vmatprep.subr.mxu0 0.0
    %3577 = vmatpush1.msra.mxu0 %v350
    %3578 = vmatprep.subr.mxu0 0.0
    %3579 = vmatpush1.msra.mxu0 0.0
    %3580 = vmatprep.subr.mxu0 0.0
    %3581 = vmatpush1.msra.mxu0 0.0
    %3582 = vmatprep.subr.mxu0 0.0
    %3583 = vmatpush1.msra.mxu0 0.0
    %3584 = vmatprep.subr.mxu0 0.0
    %3585 = vmatpush1.msra.mxu0 0.0
    %3586 = vmatprep.subr.mxu0 0.0
    %3587 = vmatpush1.msra.mxu0 0.0
    %3588 = vmatprep.subr.mxu0 0.0
    %3589 = vmatpush1.msra.mxu0 0.0
    %3590 = vmatprep.subr.mxu0 0.0
    %3591 = vmatpush1.msra.mxu0 0.0
    %3592 = vmatprep.subr.mxu0 0.0
    %3593 = vmatpush1.msra.mxu0 0.0
    %3594 = vmatprep.subr.mxu0 0.0
    %3595 = vmatpush1.msra.mxu0 0.0
    %3596 = vmatprep.subr.mxu0 0.0
    %3597 = vmatpush1.msra.mxu0 0.0
    %3598 = vmatprep.subr.mxu0 0.0
    %3599 = vmatpush1.msra.mxu0 0.0
    %3600 = vmatprep.subr.mxu0 0.0
    %3601 = vmatpush1.msra.mxu0 0.0
    %3602 = vmatprep.subr.mxu0 0.0
    %3603 = vmatpush1.msra.mxu0 0.0
    %3604 = vmatprep.subr.mxu0 0.0
    %3605 = vmatpush1.msra.mxu0 0.0
    %3606 = vmatprep.subr.mxu0 0.0
    %3607 = vmatpush1.msra.mxu0 0.0
    %3608 = vmatprep.subr.mxu0 0.0
    %3609 = vmatpush1.msra.mxu0 0.0
    %3610 = vmatprep.subr.mxu0 0.0
    %3611 = vmatpush1.msra.mxu0 0.0
    %3612 = vmatprep.subr.mxu0 0.0
    %3613 = vmatpush1.msra.mxu0 0.0
    %3614 = vmatprep.subr.mxu0 0.0
    %3615 = vmatpush1.msra.mxu0 0.0
    %3616 = vmatprep.subr.mxu0 0.0
    %3617 = vmatpush1.msra.mxu0 0.0
    %3618 = vmatprep.mubr.f32.mxu0 0.0
    %3619 = vmatmul.mubr.f32.gmra.mrb[0].mxu0 %v3552
    %v3620 = vpop.f32.mrb[0].mxu0
    %v3621 = vadd.f32 0.0, %v3620
    %v3622 = vpop.f32.mrb[0].mxu0
    %3623 = vdwg.mxu0
    %v3624 = vadd.f32 %v3550, %v3621
    %v3625 = vrot.slane %v3330, 4
    %v3626 = vsel %vm1672, %v3625, 0
    %3628 = vmatprep.subr.mxu0 0.0
    %3629 = vmatpush1.msra.mxu0 %v352
    %3630 = vmatprep.subr.mxu0 0.0
    %3631 = vmatpush1.msra.mxu0 %v353
    %3632 = vmatprep.subr.mxu0 0.0
    %3633 = vmatpush1.msra.mxu0 %v354
    %3634 = vmatprep.subr.mxu0 0.0
    %3635 = vmatpush1.msra.mxu0 %v355
    %3636 = vmatprep.subr.mxu0 0.0
    %3637 = vmatpush1.msra.mxu0 %v356
    %3638 = vmatprep.subr.mxu0 0.0
    %3639 = vmatpush1.msra.mxu0 %v357
    %3640 = vmatprep.subr.mxu0 0.0
    %3641 = vmatpush1.msra.mxu0 %v358
    %3642 = vmatprep.subr.mxu0 0.0
    %3643 = vmatpush1.msra.mxu0 %v359
    %3644 = vmatprep.subr.mxu0 0.0
    %3645 = vmatpush1.msra.mxu0 %v360
    %3646 = vmatprep.subr.mxu0 0.0
    %3647 = vmatpush1.msra.mxu0 %v361
    %3648 = vmatprep.subr.mxu0 0.0
    %3649 = vmatpush1.msra.mxu0 %v362
    %3650 = vmatprep.subr.mxu0 0.0
    %3651 = vmatpush1.msra.mxu0 %v363
    %3652 = vmatprep.subr.mxu0 0.0
    %3653 = vmatpush1.msra.mxu0 0.0
    %3654 = vmatprep.subr.mxu0 0.0
    %3655 = vmatpush1.msra.mxu0 0.0
    %3656 = vmatprep.subr.mxu0 0.0
    %3657 = vmatpush1.msra.mxu0 0.0
    %3658 = vmatprep.subr.mxu0 0.0
    %3659 = vmatpush1.msra.mxu0 0.0
    %3660 = vmatprep.subr.mxu0 0.0
    %3661 = vmatpush1.msra.mxu0 0.0
    %3662 = vmatprep.subr.mxu0 0.0
    %3663 = vmatpush1.msra.mxu0 0.0
    %3664 = vmatprep.subr.mxu0 0.0
    %3665 = vmatpush1.msra.mxu0 0.0
    %3666 = vmatprep.subr.mxu0 0.0
    %3667 = vmatpush1.msra.mxu0 0.0
    %3668 = vmatprep.subr.mxu0 0.0
    %3669 = vmatpush1.msra.mxu0 0.0
    %3670 = vmatprep.subr.mxu0 0.0
    %3671 = vmatpush1.msra.mxu0 0.0
    %3672 = vmatprep.subr.mxu0 0.0
    %3673 = vmatpush1.msra.mxu0 0.0
    %3674 = vmatprep.subr.mxu0 0.0
    %3675 = vmatpush1.msra.mxu0 0.0
    %3676 = vmatprep.subr.mxu0 0.0
    %3677 = vmatpush1.msra.mxu0 0.0
    %3678 = vmatprep.subr.mxu0 0.0
    %3679 = vmatpush1.msra.mxu0 0.0
    %3680 = vmatprep.subr.mxu0 0.0
    %3681 = vmatpush1.msra.mxu0 0.0
    %3682 = vmatprep.subr.mxu0 0.0
    %3683 = vmatpush1.msra.mxu0 0.0
    %3684 = vmatprep.subr.mxu0 0.0
    %3685 = vmatpush1.msra.mxu0 0.0
    %3686 = vmatprep.subr.mxu0 0.0
    %3687 = vmatpush1.msra.mxu0 0.0
    %3688 = vmatprep.subr.mxu0 0.0
    %3689 = vmatpush1.msra.mxu0 0.0
    %3690 = vmatprep.subr.mxu0 0.0
    %3691 = vmatpush1.msra.mxu0 0.0
    %3692 = vmatprep.mubr.f32.mxu0 0.0
    %3693 = vmatmul.mubr.f32.gmra.mrb[0].mxu0 %v3626
    %v3694 = vpop.f32.mrb[0].mxu0
    %v3695 = vadd.f32 0.0, %v3694
    %v3696 = vpop.f32.mrb[0].mxu0
    %3697 = vdwg.mxu0
    %v3698 = vadd.f32 %v3624, %v3695
    %v3699 = vrot.slane %v3330, 5
    %v3700 = vsel %vm1672, %v3699, 0
    %3702 = vmatprep.subr.mxu0 0.0
    %3703 = vmatpush1.msra.mxu0 %v365
    %3704 = vmatprep.subr.mxu0 0.0
    %3705 = vmatpush1.msra.mxu0 %v366
    %3706 = vmatprep.subr.mxu0 0.0
    %3707 = vmatpush1.msra.mxu0 %v367
    %3708 = vmatprep.subr.mxu0 0.0
    %3709 = vmatpush1.msra.mxu0 %v368
    %3710 = vmatprep.subr.mxu0 0.0
    %3711 = vmatpush1.msra.mxu0 %v369
    %3712 = vmatprep.subr.mxu0 0.0
    %3713 = vmatpush1.msra.mxu0 %v370
    %3714 = vmatprep.subr.mxu0 0.0
    %3715 = vmatpush1.msra.mxu0 %v371
    %3716 = vmatprep.subr.mxu0 0.0
    %3717 = vmatpush1.msra.mxu0 %v372
    %3718 = vmatprep.subr.mxu0 0.0
    %3719 = vmatpush1.msra.mxu0 %v373
    %3720 = vmatprep.subr.mxu0 0.0
    %3721 = vmatpush1.msra.mxu0 %v374
    %3722 = vmatprep.subr.mxu0 0.0
    %3723 = vmatpush1.msra.mxu0 %v375
    %3724 = vmatprep.subr.mxu0 0.0
    %3725 = vmatpush1.msra.mxu0 %v376
    %3726 = vmatprep.subr.mxu0 0.0
    %3727 = vmatpush1.msra.mxu0 0.0
    %3728 = vmatprep.subr.mxu0 0.0
    %3729 = vmatpush1.msra.mxu0 0.0
    %3730 = vmatprep.subr.mxu0 0.0
    %3731 = vmatpush1.msra.mxu0 0.0
    %3732 = vmatprep.subr.mxu0 0.0
    %3733 = vmatpush1.msra.mxu0 0.0
    %3734 = vmatprep.subr.mxu0 0.0
    %3735 = vmatpush1.msra.mxu0 0.0
    %3736 = vmatprep.subr.mxu0 0.0
    %3737 = vmatpush1.msra.mxu0 0.0
    %3738 = vmatprep.subr.mxu0 0.0
    %3739 = vmatpush1.msra.mxu0 0.0
    %3740 = vmatprep.subr.mxu0 0.0
    %3741 = vmatpush1.msra.mxu0 0.0
    %3742 = vmatprep.subr.mxu0 0.0
    %3743 = vmatpush1.msra.mxu0 0.0
    %3744 = vmatprep.subr.mxu0 0.0
    %3745 = vmatpush1.msra.mxu0 0.0
    %3746 = vmatprep.subr.mxu0 0.0
    %3747 = vmatpush1.msra.mxu0 0.0
    %3748 = vmatprep.subr.mxu0 0.0
    %3749 = vmatpush1.msra.mxu0 0.0
    %3750 = vmatprep.subr.mxu0 0.0
    %3751 = vmatpush1.msra.mxu0 0.0
    %3752 = vmatprep.subr.mxu0 0.0
    %3753 = vmatpush1.msra.mxu0 0.0
    %3754 = vmatprep.subr.mxu0 0.0
    %3755 = vmatpush1.msra.mxu0 0.0
    %3756 = vmatprep.subr.mxu0 0.0
    %3757 = vmatpush1.msra.mxu0 0.0
    %3758 = vmatprep.subr.mxu0 0.0
    %3759 = vmatpush1.msra.mxu0 0.0
    %3760 = vmatprep.subr.mxu0 0.0
    %3761 = vmatpush1.msra.mxu0 0.0
    %3762 = vmatprep.subr.mxu0 0.0
    %3763 = vmatpush1.msra.mxu0 0.0
    %3764 = vmatprep.subr.mxu0 0.0
    %3765 = vmatpush1.msra.mxu0 0.0
    %3766 = vmatprep.mubr.f32.mxu0 0.0
    %3767 = vmatmul.mubr.f32.gmra.mrb[0].mxu0 %v3700
    %v3768 = vpop.f32.mrb[0].mxu0
    %v3769 = vadd.f32 0.0, %v3768
    %v3770 = vpop.f32.mrb[0].mxu0
    %3771 = vdwg.mxu0
    %v3772 = vadd.f32 %v3698, %v3769
    %3773 = vst [vmem:[#allocation8 + $0x1] sm:$0x1] %v3772
    %v3774 = vld [vmem:[#allocation8] sm:$0x3]
    %v3775 = vld [vmem:[%s10] sm:$0x1]
    %v3777 = vlaneseq
    %v3778 = vshrl.u32 %v3777, 7
    %v3779 = vsub.s32 0, %v3778
    %v3780 = vrot.slane %v3775, %v3779
    %v3782 = vadd.f32 %v3774, %v3780
    %v3783 = vmax.f32 %v3782, 0.0
    %v3784 = vld [vmem:[#allocation5] sm:$0xff]
    %v3785 = vld [vmem:[#allocation5 + $0x8] sm:$0xff]
    %v3786 = vld [vmem:[#allocation5 + $0x10] sm:$0xff]
    %v3787 = vld [vmem:[#allocation5 + $0x18] sm:$0xff]
    %v3788 = vld [vmem:[#allocation5 + $0x20] sm:$0xff]
    %v3789 = vld [vmem:[#allocation5 + $0x28] sm:$0xff]
    %v3790 = vld [vmem:[#allocation5 + $0x30] sm:$0xff]
    %v3791 = vld [vmem:[#allocation5 + $0x38] sm:$0xff]
    %v3792 = vld [vmem:[#allocation5 + $0x40] sm:$0xff]
    %v3793 = vld [vmem:[#allocation5 + $0x48] sm:$0xff]
    %v3794 = vld [vmem:[#allocation5 + $0x50] sm:$0xff]
    %v3795 = vld [vmem:[#allocation5 + $0x58] sm:$0xff]
    %v3796 = vld [vmem:[#allocation5 + $0x60] sm:$0xff]
    %v3797 = vld [vmem:[#allocation5 + $0x68] sm:$0xff]
    %v3798 = vld [vmem:[#allocation5 + $0x70] sm:$0xff]
    %v3799 = vld [vmem:[#allocation5 + $0x78] sm:$0xff]
    %v3800 = vld [vmem:[%s12] sm:$0x1]
    %v3802 = vlaneseq
    %v3803 = vshrl.u32 %v3802, 7
    %v3804 = vsub.s32 0, %v3803
    %v3805 = vrot.slane %v3800, %v3804
    %3807 = vmatprep.subr.mxu0 0.0
    %3808 = vmatpush1.msra.mxu0 %v3784
    %3809 = vmatprep.subr.mxu0 0.0
    %3810 = vmatpush1.msra.mxu0 %v3785
    %3811 = vmatprep.subr.mxu0 0.0
    %3812 = vmatpush1.msra.mxu0 %v3786
    %3813 = vmatprep.subr.mxu0 0.0
    %3814 = vmatpush1.msra.mxu0 %v3787
    %3815 = vmatprep.subr.mxu0 0.0
    %3816 = vmatpush1.msra.mxu0 %v3788
    %3817 = vmatprep.subr.mxu0 0.0
    %3818 = vmatpush1.msra.mxu0 %v3789
    %3819 = vmatprep.subr.mxu0 0.0
    %3820 = vmatpush1.msra.mxu0 %v3790
    %3821 = vmatprep.subr.mxu0 0.0
    %3822 = vmatpush1.msra.mxu0 %v3791
    %3823 = vmatprep.subr.mxu0 0.0
    %3824 = vmatpush1.msra.mxu0 %v3792
    %3825 = vmatprep.subr.mxu0 0.0
    %3826 = vmatpush1.msra.mxu0 %v3793
    %3827 = vmatprep.subr.mxu0 0.0
    %3828 = vmatpush1.msra.mxu0 %v3794
    %3829 = vmatprep.subr.mxu0 0.0
    %3830 = vmatpush1.msra.mxu0 %v3795
    %3831 = vmatprep.subr.mxu0 0.0
    %3832 = vmatpush1.msra.mxu0 %v3796
    %3833 = vmatprep.subr.mxu0 0.0
    %3834 = vmatpush1.msra.mxu0 %v3797
    %3835 = vmatprep.subr.mxu0 0.0
    %3836 = vmatpush1.msra.mxu0 %v3798
    %3837 = vmatprep.subr.mxu0 0.0
    %3838 = vmatpush1.msra.mxu0 %v3799
    %3839 = vmatprep.subr.mxu0 0.0
    %3840 = vmatpush1.msra.mxu0 0.0
    %3841 = vmatprep.subr.mxu0 0.0
    %3842 = vmatpush1.msra.mxu0 0.0
    %3843 = vmatprep.subr.mxu0 0.0
    %3844 = vmatpush1.msra.mxu0 0.0
    %3845 = vmatprep.subr.mxu0 0.0
    %3846 = vmatpush1.msra.mxu0 0.0
    %3847 = vmatprep.subr.mxu0 0.0
    %3848 = vmatpush1.msra.mxu0 0.0
    %3849 = vmatprep.subr.mxu0 0.0
    %3850 = vmatpush1.msra.mxu0 0.0
    %3851 = vmatprep.subr.mxu0 0.0
    %3852 = vmatpush1.msra.mxu0 0.0
    %3853 = vmatprep.subr.mxu0 0.0
    %3854 = vmatpush1.msra.mxu0 0.0
    %3855 = vmatprep.subr.mxu0 0.0
    %3856 = vmatpush1.msra.mxu0 0.0
    %3857 = vmatprep.subr.mxu0 0.0
    %3858 = vmatpush1.msra.mxu0 0.0
    %3859 = vmatprep.subr.mxu0 0.0
    %3860 = vmatpush1.msra.mxu0 0.0
    %3861 = vmatprep.subr.mxu0 0.0
    %3862 = vmatpush1.msra.mxu0 0.0
    %3863 = vmatprep.subr.mxu0 0.0
    %3864 = vmatpush1.msra.mxu0 0.0
    %3865 = vmatprep.subr.mxu0 0.0
    %3866 = vmatpush1.msra.mxu0 0.0
    %3867 = vmatprep.subr.mxu0 0.0
    %3868 = vmatpush1.msra.mxu0 0.0
    %3869 = vmatprep.subr.mxu0 0.0
    %3870 = vmatpush1.msra.mxu0 0.0
    %3871 = vmatprep.mubr.f32.mxu0 0.0
    %3872 = vmatmul.mubr.f32.gmra.mrb[0].mxu0 %v3783
    %v3873 = vpop.f32.mrb[0].mxu0
    %v3874 = vadd.f32 %v3805, %v3873
    %v3875 = vpop.f32.mrb[0].mxu0
    %3876 = vdwg.mxu0
    %v3877 = vmax.f32 %v3874, 0.0
    %v3878 = vld [vmem:[#allocation7] sm:$0xff]
    %v3879 = vld [vmem:[#allocation7 + $0x8] sm:$0xff]
    %v3880 = vld [vmem:[#allocation7 + $0x10] sm:$0xff]
    %v3881 = vld [vmem:[#allocation7 + $0x18] sm:$0xff]
    %v3882 = vld [vmem:[#allocation7 + $0x20] sm:$0xff]
    %v3883 = vld [vmem:[#allocation7 + $0x28] sm:$0xff]
    %v3884 = vld [vmem:[#allocation7 + $0x30] sm:$0xff]
    %v3885 = vld [vmem:[#allocation7 + $0x38] sm:$0xff]
    %v3886 = vld [vmem:[#allocation7 + $0x40] sm:$0xff]
    %v3887 = vld [vmem:[#allocation7 + $0x48] sm:$0xff]
    %v3888 = vld [vmem:[#allocation7 + $0x50] sm:$0xff]
    %v3889 = vld [vmem:[#allocation7 + $0x58] sm:$0xff]
    %v3890 = vld [vmem:[#allocation7 + $0x60] sm:$0xff]
    %v3891 = vld [vmem:[#allocation7 + $0x68] sm:$0xff]
    %v3892 = vld [vmem:[#allocation7 + $0x70] sm:$0xff]
    %v3893 = vld [vmem:[#allocation7 + $0x78] sm:$0xff]
    %v3894 = vld [vmem:[%s14] sm:$0x1]
    %v3896 = vlaneseq
    %v3897 = vshrl.u32 %v3896, 7
    %v3898 = vsub.s32 0, %v3897
    %v3899 = vrot.slane %v3894, %v3898
    %3901 = vmatprep.subr.mxu0 0.0
    %3902 = vmatpush1.msra.mxu0 %v3878
    %3903 = vmatprep.subr.mxu0 0.0
    %3904 = vmatpush1.msra.mxu0 %v3879
    %3905 = vmatprep.subr.mxu0 0.0
    %3906 = vmatpush1.msra.mxu0 %v3880
    %3907 = vmatprep.subr.mxu0 0.0
    %3908 = vmatpush1.msra.mxu0 %v3881
    %3909 = vmatprep.subr.mxu0 0.0
    %3910 = vmatpush1.msra.mxu0 %v3882
    %3911 = vmatprep.subr.mxu0 0.0
    %3912 = vmatpush1.msra.mxu0 %v3883
    %3913 = vmatprep.subr.mxu0 0.0
    %3914 = vmatpush1.msra.mxu0 %v3884
    %3915 = vmatprep.subr.mxu0 0.0
    %3916 = vmatpush1.msra.mxu0 %v3885
    %3917 = vmatprep.subr.mxu0 0.0
    %3918 = vmatpush1.msra.mxu0 %v3886
    %3919 = vmatprep.subr.mxu0 0.0
    %3920 = vmatpush1.msra.mxu0 %v3887
    %3921 = vmatprep.subr.mxu0 0.0
    %3922 = vmatpush1.msra.mxu0 %v3888
    %3923 = vmatprep.subr.mxu0 0.0
    %3924 = vmatpush1.msra.mxu0 %v3889
    %3925 = vmatprep.subr.mxu0 0.0
    %3926 = vmatpush1.msra.mxu0 %v3890
    %3927 = vmatprep.subr.mxu0 0.0
    %3928 = vmatpush1.msra.mxu0 %v3891
    %3929 = vmatprep.subr.mxu0 0.0
    %3930 = vmatpush1.msra.mxu0 %v3892
    %3931 = vmatprep.subr.mxu0 0.0
    %3932 = vmatpush1.msra.mxu0 %v3893
    %3933 = vmatprep.subr.mxu0 0.0
    %3934 = vmatpush1.msra.mxu0 0.0
    %3935 = vmatprep.subr.mxu0 0.0
    %3936 = vmatpush1.msra.mxu0 0.0
    %3937 = vmatprep.subr.mxu0 0.0
    %3938 = vmatpush1.msra.mxu0 0.0
    %3939 = vmatprep.subr.mxu0 0.0
    %3940 = vmatpush1.msra.mxu0 0.0
    %3941 = vmatprep.subr.mxu0 0.0
    %3942 = vmatpush1.msra.mxu0 0.0
    %3943 = vmatprep.subr.mxu0 0.0
    %3944 = vmatpush1.msra.mxu0 0.0
    %3945 = vmatprep.subr.mxu0 0.0
    %3946 = vmatpush1.msra.mxu0 0.0
    %3947 = vmatprep.subr.mxu0 0.0
    %3948 = vmatpush1.msra.mxu0 0.0
    %3949 = vmatprep.subr.mxu0 0.0
    %3950 = vmatpush1.msra.mxu0 0.0
    %3951 = vmatprep.subr.mxu0 0.0
    %3952 = vmatpush1.msra.mxu0 0.0
    %3953 = vmatprep.subr.mxu0 0.0
    %3954 = vmatpush1.msra.mxu0 0.0
    %3955 = vmatprep.subr.mxu0 0.0
    %3956 = vmatpush1.msra.mxu0 0.0
    %3957 = vmatprep.subr.mxu0 0.0
    %3958 = vmatpush1.msra.mxu0 0.0
    %3959 = vmatprep.subr.mxu0 0.0
    %3960 = vmatpush1.msra.mxu0 0.0
    %3961 = vmatprep.subr.mxu0 0.0
    %3962 = vmatpush1.msra.mxu0 0.0
    %3963 = vmatprep.subr.mxu0 0.0
    %3964 = vmatpush1.msra.mxu0 0.0
    %3965 = vmatprep.mubr.f32.mxu0 0.0
    %3966 = vmatmul.mubr.f32.gmra.mrb[0].mxu0 %v3877
    %v3967 = vpop.f32.mrb[0].mxu0
    %v3968 = vadd.f32 %v3899, %v3967
    %v3969 = vpop.f32.mrb[0].mxu0
    %3970 = vdwg.mxu0
    %3971 = vst [vmem:[#allocation8] sm:$0x3] %v3968
    // Predicated region
    $region74: #{net_forward.1} parent=1 // pred_check
      _
    $region75: #{net_forward.1} parent=1 // pred_check_branch
      %3973 = sbr.rel (0) target = $region77
    $region76: #{net_forward.1} parent=1 // pred_region
      %s3975 = ssub.s32 32, 32
      %3976 = vsyncadd [#allocation4], %s3975
      %s3978 = sshll.u32 [#allocation8], 4
      %s3979 = int_to_ptr.vmem [resolvable:$true] %s3978
      %3981 = dma.vmem_to_hbm [thread:$0]  %s3979, 32, %s15, [#allocation4]
    $region77: #{net_forward.1} parent=1 // pred_fallthru
      _
    // Predicated region
    $region78: #{net_forward.1} parent=1 // pred_check
      _
    $region79: #{net_forward.1} parent=1 // pred_check_branch
      %3983 = sbr.rel (0) target = $region81
    $region80: #{net_forward.1} parent=1 // pred_region
      %3984 = dma.done [#allocation4], 32
    $region81: #{net_forward.1} parent=1 // pred_fallthru
      _
    %3985 = vsyncpa [#allocation3], 1
    %3986 = vsyncpa [#allocation6], 1
    %3987 = vsyncpa [#allocation4], 1

</llo_original>
